<compile_context>
chip_gen: v7x
topology: tpu7x:2x2x1
jax: 0.10.0
libtpu: 0.0.40
codegen_flags: <defaults>
</compile_context>

<pallas_src>
import functools

import jax
import jax.numpy as jnp
from jax.experimental import pallas as pl
from jax.experimental.pallas import tpu as pltpu


# ---------------------------------------------------------------------------
# Hardware helpers
# ---------------------------------------------------------------------------
def _num_tensorcores_per_chip():
    """Best-effort TensorCore count (v7x = 2, v5e/v6e = 1); clamped to [1, 2]."""
    try:
        info = pltpu.get_tpu_info()
        for attr in ("num_tensorcores", "tensorcore_count", "num_cores", "core_count"):
            n = getattr(info, attr, None)
            if isinstance(n, int) and n > 0:
                return max(1, min(n, 2))
    except Exception:
        pass
    try:
        kind = (jax.devices()[0].device_kind or "").lower()
        if "v7" in kind:
            return 2
    except Exception:
        pass
    return 1


def _qkv_tile_rows(M, min_steps, cap=2048):
    """Row tile for the fused projection: as fat as possible (amortizes the
    ~0.35us per-grid-step overhead), multiple of 8, capped for VMEM, and giving
    >= min_steps grid steps so both v7x TensorCores get work."""
    tm = -(-M // max(min_steps, 1))     # cdiv
    tm = -(-tm // 8) * 8                # round up to a multiple of 8
    return max(8, min(tm, cap))


# ---------------------------------------------------------------------------
# Pallas kernels
# ---------------------------------------------------------------------------
def _qkv_proj_kernel(x_ref, w_ref, b_ref, o_ref):
    # x_ref: (tm, C), w_ref: (C, 3C), b_ref: (1, 3C), o_ref: (tm, 3C)
    acc = jnp.dot(x_ref[...], w_ref[...], preferred_element_type=jnp.float32)
    o_ref[...] = (acc + b_ref[...]).astype(o_ref.dtype)


def _window_attn_kernel(qkl_ref, v_ref, o_ref, *, num_heads, scale):
    # qkl_ref: (1, H_sp, W_sp, 3C)  = [q5 | k5 | lepe]  (fused depthwise-conv output)
    # v_ref  : (1, H_sp, W_sp, C)   = v projection (pre-conv)
    # o_ref  : (1, H_sp, W_sp, C)   = softmax(q k^T) v  + lepe, already in image layout
    _, Hs, Ws, C3 = qkl_ref.shape
    C = C3 // 3
    N = Hs * Ws
    hd = C // num_heads

    qkl = qkl_ref[...].reshape(N, C3).astype(jnp.float32)
    v = v_ref[...].reshape(N, C).astype(jnp.float32)

    lepe = qkl[:, 2 * C:]
    q = (qkl[:, :C] + lepe) * scale          # tiny (N, C) VPU work, fused in-kernel
    k = qkl[:, C:2 * C] + lepe

    head_outs = []
    for h in range(num_heads):                # static unroll (num_heads == 2)
        sl = slice(h * hd, (h + 1) * hd)
        qs, ks, vs = q[:, sl], k[:, sl], v[:, sl]
        # scores: (N, hd) x (N, hd)^T -> (N, N), lane-dense
        s = jax.lax.dot_general(qs, ks, (((1,), (1,)), ((), ())),
                                preferred_element_type=jnp.float32)
        m = jnp.max(s, axis=-1, keepdims=True)
        p = jnp.exp(s - m)
        l = jnp.sum(p, axis=-1, keepdims=True)
        # natural (N, N) @ (N, hd) PV matmul: no (N, N) transpose materialized;
        # normalize the small (N, hd) result with an EXACT division.
        o = jnp.dot(p, vs, preferred_element_type=jnp.float32)
        head_outs.append(o / l)

    out = jnp.concatenate(head_outs, axis=-1) + lepe     # (N, C), residual fused
    o_ref[...] = out.reshape(1, Hs, Ws, C).astype(o_ref.dtype)


# ---------------------------------------------------------------------------
# Pallas wrappers
# ---------------------------------------------------------------------------
def qkv_proj_pallas(x_nhwc, w_qk, b_qk, w_v, b_v, *, min_steps):
    """Fused 1x1 q/k/v projection: one (M, C) @ (C, 3C) Pallas matmul.
    Returns NHWC (B, Hp, Wp, 3C) with channel order [q | k | v]."""
    B, Hp, Wp, C = x_nhwc.shape
    w = jnp.concatenate([w_qk.reshape(2 * C, C), w_v.reshape(C, C)], axis=0).T  # (C, 3C)
    b = jnp.concatenate([b_qk, b_v]).reshape(1, 3 * C)

    M = B * Hp * Wp
    xm = x_nhwc.reshape(M, C)
    tm = _qkv_tile_rows(M, min_steps)
    Mp = (-(-M // tm)) * tm
    if Mp != M:                                  # pad rows; no giant-tile fallback
        xm = jnp.pad(xm, ((0, Mp - M), (0, 0)))

    cost = pl.CostEstimate(
        flops=2 * Mp * C * 3 * C,
        transcendentals=0,
        bytes_accessed=4 * (Mp * C + C * 3 * C + 3 * C + Mp * 3 * C))

    out = pl.pallas_call(
        _qkv_proj_kernel,
        out_shape=jax.ShapeDtypeStruct((Mp, 3 * C), jnp.float32),
        grid=(Mp // tm,),
        in_specs=[
            pl.BlockSpec((tm, C), lambda i: (i, 0)),
            pl.BlockSpec((C, 3 * C), lambda i: (0, 0)),
            pl.BlockSpec((1, 3 * C), lambda i: (0, 0)),
        ],
        out_specs=pl.BlockSpec((tm, 3 * C), lambda i: (i, 0)),
        compiler_params=pltpu.CompilerParams(dimension_semantics=("parallel",)),
        cost_estimate=cost,
    )(xm, w, b)

    if Mp != M:
        out = out[:M]
    return out.reshape(B, Hp, Wp, 3 * C)


def window_attention_pallas(qkl_img, v_img, *, H_sp, W_sp, num_heads, scale):
    """qkl_img: (B, Hp, Wp, 3C) = [q5 | k5 | lepe]; v_img: (B, Hp, Wp, C).
    Grid over (B, nH, nW) windows; the window partition / merge is expressed
    purely through BlockSpec index_maps (no XLA re-layout round trips).
    Output: (B, Hp, Wp, C) image already including the `+ lepe` residual."""
    B, Hp, Wp, C3 = qkl_img.shape
    C = C3 // 3
    hd = C // num_heads
    nH, nW = Hp // H_sp, Wp // W_sp
    N = H_sp * W_sp
    nwin = B * nH * nW

    kern = functools.partial(_window_attn_kernel, num_heads=num_heads, scale=scale)
    cost = pl.CostEstimate(
        flops=nwin * num_heads * 4 * N * N * hd,
        transcendentals=nwin * num_heads * N * N,
        bytes_accessed=4 * B * Hp * Wp * (C3 + 2 * C))

    return pl.pallas_call(
        kern,
        out_shape=jax.ShapeDtypeStruct((B, Hp, Wp, C), jnp.float32),
        grid=(B, nH, nW),
        in_specs=[
            pl.BlockSpec((1, H_sp, W_sp, C3), lambda b, i, j: (b, i, j, 0)),
            pl.BlockSpec((1, H_sp, W_sp, C), lambda b, i, j: (b, i, j, 0)),
        ],
        out_specs=pl.BlockSpec((1, H_sp, W_sp, C), lambda b, i, j: (b, i, j, 0)),
        compiler_params=pltpu.CompilerParams(
            dimension_semantics=("parallel", "parallel", "parallel"),
            vmem_limit_bytes=32 << 20),
        cost_estimate=cost,
    )(qkl_img, v_img)


# ---------------------------------------------------------------------------
# Full forward (matches LePEAttention.forward), channels-last internally
# ---------------------------------------------------------------------------
def lepe_attention_forward(x, params, *, H_sp, W_sp, num_heads, shift_size, scale):
    B, C, H, W = x.shape
    pad_r = (W_sp - W % W_sp) % W_sp
    pad_b = (H_sp - H % H_sp) % H_sp

    min_steps = _num_tensorcores_per_chip()

    # Exactly one NCHW -> NHWC transpose in; everything downstream is channels-last.
    x = jnp.transpose(x, (0, 2, 3, 1))                                 # (B, H, W, C)
    x = jnp.pad(x, ((0, 0), (0, pad_b), (0, pad_r), (0, 0)))
    Hp, Wp = x.shape[1], x.shape[2]
    if shift_size > 0:
        x = jnp.roll(x, shift=(-H_sp // 2, -W_sp // 2), axis=(1, 2))

    # Fused q/k/v 1x1 projection (single Pallas matmul).
    qkv = qkv_proj_pallas(x, params["w_qk"], params["b_qk"],
                          params["w_v"], params["b_v"], min_steps=min_steps)  # (B,Hp,Wp,3C)

    # Single grouped depthwise 5x5 conv over all 3C channels -> [q5 | k5 | lepe].
    # TODO(synk): a halo-exchange Pallas kernel would be needed to move this conv on-chip.
    w5 = jnp.concatenate([params["w_q5"], params["w_k5"], params["w_lepe"]], axis=0)  # (3C,1,5,5)
    b5 = jnp.concatenate([params["b_q5"], params["b_k5"], params["b_lepe"]])
    w5 = jnp.transpose(w5, (2, 3, 1, 0))                               # (5,5,1,3C) HWIO
    qkl = jax.lax.conv_general_dilated(
        qkv, w5, window_strides=(1, 1), padding=((2, 2), (2, 2)),
        dimension_numbers=("NHWC", "HWIO", "NHWC"),
        feature_group_count=3 * C) + b5

    v = qkv[..., 2 * C:]

    # Window attention with the window partition/merge, q/k lepe adds, scale and
    # the final `+ lepe` residual all fused into the Pallas call.
    # NOTE: attn_drop is a no-op (p=0.0 / eval mode).
    xw = window_attention_pallas(qkl, v, H_sp=H_sp, W_sp=W_sp,
                                 num_heads=num_heads, scale=scale)     # (B, Hp, Wp, C)

    if shift_size > 0:
        xw = jnp.roll(xw, shift=(H_sp // 2, W_sp // 2), axis=(1, 2))
    if pad_r > 0 or pad_b > 0:
        xw = xw[:, :H, :W, :]
    return jnp.transpose(xw, (0, 3, 1, 2))                             # back to NCHW


# ---------------------------------------------------------------------------
# Plain-JAX reference (mirrors the PyTorch module, NCHW)
# ---------------------------------------------------------------------------
def _conv1x1_ref(x_nchw, w, b):
    Cout, Cin = w.shape[0], w.shape[1]
    y = jnp.einsum("bchw,oc->bohw", x_nchw, w.reshape(Cout, Cin),
                   precision=jax.lax.Precision.HIGHEST)
    return y + b[None, :, None, None]


def _dwconv5x5_nchw(x, w, b):
    out = jax.lax.conv_general_dilated(
        x, w, window_strides=(1, 1), padding=((2, 2), (2, 2)),
        dimension_numbers=("NCHW", "OIHW", "NCHW"),
        feature_group_count=x.shape[1])
    return out + b[None, :, None, None]


def _img2windows_nchw(img, H_sp, W_sp):
    B, C, H, W = img.shape
    img = img.reshape(B, C, H // H_sp, H_sp, W // W_sp, W_sp)
    return jnp.transpose(img, (0, 2, 4, 3, 5, 1)).reshape(-1, H_sp * W_sp, C)


def _windows2img_nchw(img_splits_hw, H_sp, W_sp, H, W):
    B = img_splits_hw.shape[0] // (H * W // H_sp // W_sp)
    img = img_splits_hw.reshape(B, H // H_sp, W // W_sp, H_sp, W_sp, -1)
    return jnp.transpose(img, (0, 5, 1, 3, 2, 4)).reshape(B, -1, H, W)


def _im2cswin_nchw(x, H_sp, W_sp, num_heads):
    B, C, H, W = x.shape
    x = _img2windows_nchw(x, H_sp, W_sp)
    x = x.reshape(-1, H_sp * W_sp, num_heads, C // num_heads)
    return jnp.transpose(x, (0, 2, 1, 3))


def lepe_attention_ref(x, params, *, H_sp, W_sp, num_heads, shift_size, scale):
    B, C, H, W = x.shape
    pad_r = (W_sp - W % W_sp) % W_sp
    pad_b = (H_sp - H % H_sp) % H_sp
    x = jnp.pad(x, ((0, 0), (0, 0), (0, pad_b), (0, pad_r)))
    Hp, Wp = x.shape[2], x.shape[3]
    if shift_size > 0:
        x = jnp.roll(x, shift=(-H_sp // 2, -W_sp // 2), axis=(2, 3))

    qk = _conv1x1_ref(x, params["w_qk"], params["b_qk"])
    q, k = jnp.split(qk, 2, axis=1)
    v = _conv1x1_ref(x, params["w_v"], params["b_v"])

    lepe = _dwconv5x5_nchw(v, params["w_lepe"], params["b_lepe"])
    q = _dwconv5x5_nchw(q, params["w_q5"], params["b_q5"]) + lepe
    k = _dwconv5x5_nchw(k, params["w_k5"], params["b_k5"]) + lepe

    qw = _im2cswin_nchw(q, H_sp, W_sp, num_heads)
    kw = _im2cswin_nchw(k, H_sp, W_sp, num_heads)
    vw = _im2cswin_nchw(v, H_sp, W_sp, num_heads)

    attn = jnp.einsum("bhnd,bhmd->bhnm", qw * scale, kw,
                      precision=jax.lax.Precision.HIGHEST)
    attn = jax.nn.softmax(attn, axis=-1)
    out = jnp.einsum("bhnm,bhmd->bhnd", attn, vw,
                     precision=jax.lax.Precision.HIGHEST)

    Bp, h, N, hd = out.shape
    out = jnp.transpose(out, (0, 2, 1, 3)).reshape(Bp, N, C)
    xw = _windows2img_nchw(out, H_sp, W_sp, Hp, Wp) + lepe

    if shift_size > 0:
        xw = jnp.roll(xw, shift=(H_sp // 2, W_sp // 2), axis=(2, 3))
    if pad_r > 0 or pad_b > 0:
        xw = xw[:, :, :H, :W]
    return xw


# ---------------------------------------------------------------------------
# Main
# ---------------------------------------------------------------------------
if __name__ == "__main__":
    # Module config (idx=0 -> H_sp, W_sp = 32, 8; shift_size=0; num_heads=2)
    dim = 16
    num_heads = 2
    idx = 0
    shift_size = 0
    if idx == 0:
        H_sp, W_sp = 32, 8
    elif idx in (1, 2):
        H_sp, W_sp = 8, 32
    else:
        H_sp, W_sp = 32, 32
    head_dim = dim // num_heads
    scale = head_dim ** (-0.5)

    B, H, W = 2, 16, 16

    key = jax.random.PRNGKey(0)
    ks = jax.random.split(key, 11)
    s = 0.05
    params = {
        "w_qk":   s * jax.random.normal(ks[0], (2 * dim, dim, 1, 1), jnp.float32),
        "b_qk":   s * jax.random.normal(ks[1], (2 * dim,), jnp.float32),
        "w_v":    s * jax.random.normal(ks[2], (dim, dim, 1, 1), jnp.float32),
        "b_v":    s * jax.random.normal(ks[3], (dim,), jnp.float32),
        "w_q5":   s * jax.random.normal(ks[4], (dim, 1, 5, 5), jnp.float32),
        "b_q5":   s * jax.random.normal(ks[5], (dim,), jnp.float32),
        "w_k5":   s * jax.random.normal(ks[6], (dim, 1, 5, 5), jnp.float32),
        "b_k5":   s * jax.random.normal(ks[7], (dim,), jnp.float32),
        "w_lepe": s * jax.random.normal(ks[8], (dim, 1, 5, 5), jnp.float32),
        "b_lepe": s * jax.random.normal(ks[9], (dim,), jnp.float32),
    }

    x = jax.random.normal(ks[10], (B, dim, H, W), jnp.float32)

    fwd = jax.jit(functools.partial(
        lepe_attention_forward, H_sp=H_sp, W_sp=W_sp, num_heads=num_heads,
        shift_size=shift_size, scale=scale))
    out = jax.block_until_ready(fwd(x, params))

    ref = lepe_attention_ref(
        x, params, H_sp=H_sp, W_sp=W_sp, num_heads=num_heads,
        shift_size=shift_size, scale=scale)
    ref = jax.block_until_ready(ref)

    assert out.shape == (B, dim, H, W), out.shape
    max_err = float(jnp.max(jnp.abs(out - ref)))
    assert jnp.allclose(out, ref, atol=2e-3, rtol=2e-3), max_err

    print("KERNEL_OK")
</pallas_src>

<mosaic_0001>
module attributes {stable_mosaic.version = 11 : i64} {
  func.func @_qkv_proj_kernel(%arg0: i32, %arg1: memref<1024x16xf32, #tpu.memory_space<vmem>>, %arg2: memref<16x48xf32, #tpu.memory_space<vmem>>, %arg3: memref<1x48xf32, #tpu.memory_space<vmem>>, %arg4: memref<1024x48xf32, #tpu.memory_space<vmem>>) attributes {dimension_semantics = [#tpu.dimension_semantics<parallel>], iteration_bounds = array<i64: 1>, scalar_prefetch = 0 : i64, scratch_operands = 0 : i64, tpu.core_type = #tpu.core_type<tc>, window_params = [{transform_indices = @transform_0, window_bounds = array<i64: 1024, 16>}, {pipeline_mode = #tpu.pipeline_mode<synchronous>, transform_indices = @transform_1, window_bounds = array<i64: 16, 48>}, {pipeline_mode = #tpu.pipeline_mode<synchronous>, transform_indices = @transform_2, window_bounds = array<i64: 1, 48>}, {transform_indices = @transform_3, window_bounds = array<i64: 1024, 48>}]} {
    %c0 = arith.constant 0 : index
    %c0_0 = arith.constant 0 : index
    %0 = vector.load %arg1[%c0, %c0_0] : memref<1024x16xf32, #tpu.memory_space<vmem>>, vector<1024x16xf32>
    %c0_1 = arith.constant 0 : index
    %c0_2 = arith.constant 0 : index
    %1 = vector.load %arg2[%c0_1, %c0_2] : memref<16x48xf32, #tpu.memory_space<vmem>>, vector<16x48xf32>
    %cst = arith.constant dense<0.000000e+00> : vector<1024x48xf32>
    %2 = tpu.matmul %0, %1, %cst {dimension_numbers = #tpu.dot_dimension_numbers<[1], [0], [0], [1], [0, 0, 1, 1], [], []>} : vector<1024x16xf32>, vector<16x48xf32>, vector<1024x48xf32> -> vector<1024x48xf32>
    %c0_3 = arith.constant 0 : index
    %c0_4 = arith.constant 0 : index
    %3 = vector.load %arg3[%c0_3, %c0_4] : memref<1x48xf32, #tpu.memory_space<vmem>>, vector<1x48xf32>
    %4 = vector.broadcast %3 : vector<1x48xf32> to vector<1024x48xf32>
    %5 = arith.addf %2, %4 : vector<1024x48xf32>
    %c0_5 = arith.constant 0 : index
    %c0_6 = arith.constant 0 : index
    %6 = vector.load %arg4[%c0_5, %c0_6] : memref<1024x48xf32, #tpu.memory_space<vmem>>, vector<1024x48xf32>
    tpu.vector_store %arg4[%c0_5, %c0_6], %5 {strides = array<i32>} : memref<1024x48xf32, #tpu.memory_space<vmem>>, vector<1024x48xf32>,
    return
  }
  func.func @transform_0(%arg0: i32) -> (i32, i32) {
    %c0_i32 = arith.constant 0 : i32
    %c0_i32_0 = arith.constant 0 : i32
    return %arg0, %c0_i32 : i32, i32
  }
  func.func @transform_1(%arg0: i32) -> (i32, i32) {
    %c0_i32 = arith.constant 0 : i32
    %c0_i32_0 = arith.constant 0 : i32
    %c0_i32_1 = arith.constant 0 : i32
    return %c0_i32, %c0_i32_0 : i32, i32
  }
  func.func @transform_2(%arg0: i32) -> (i32, i32) {
    %c0_i32 = arith.constant 0 : i32
    %c0_i32_0 = arith.constant 0 : i32
    %c0_i32_1 = arith.constant 0 : i32
    return %c0_i32, %c0_i32_0 : i32, i32
  }
  func.func @transform_3(%arg0: i32) -> (i32, i32) {
    %c0_i32 = arith.constant 0 : i32
    %c0_i32_0 = arith.constant 0 : i32
    return %arg0, %c0_i32 : i32, i32
  }
}

module attributes {stable_mosaic.version = 11 : i64} {
  func.func @_window_attn_kernel(%arg0: i32, %arg1: i32, %arg2: i32, %arg3: memref<1x32x8x48xf32, #tpu.memory_space<vmem>>, %arg4: memref<1x32x8x16xf32, #tpu.memory_space<vmem>>, %arg5: memref<1x32x8x16xf32, #tpu.memory_space<vmem>>) attributes {dimension_semantics = [#tpu.dimension_semantics<parallel>, #tpu.dimension_semantics<parallel>, #tpu.dimension_semantics<parallel>], iteration_bounds = array<i64: 2, 1, 2>, scalar_prefetch = 0 : i64, scratch_operands = 0 : i64, tpu.core_type = #tpu.core_type<tc>, window_params = [{transform_indices = @transform_0, window_bounds = array<i64: 1, 32, 8, 48>}, {transform_indices = @transform_1, window_bounds = array<i64: 1, 32, 8, 16>}, {transform_indices = @transform_2, window_bounds = array<i64: 1, 32, 8, 16>}]} {
    %c0 = arith.constant 0 : index
    %c0_0 = arith.constant 0 : index
    %c0_1 = arith.constant 0 : index
    %c0_2 = arith.constant 0 : index
    %0 = vector.load %arg3[%c0, %c0_0, %c0_1, %c0_2] : memref<1x32x8x48xf32, #tpu.memory_space<vmem>>, vector<1x32x8x48xf32>
    %1 = vector.shape_cast %0 : vector<1x32x8x48xf32> to vector<256x48xf32>
    %c0_3 = arith.constant 0 : index
    %c0_4 = arith.constant 0 : index
    %c0_5 = arith.constant 0 : index
    %c0_6 = arith.constant 0 : index
    %2 = vector.load %arg4[%c0_3, %c0_4, %c0_5, %c0_6] : memref<1x32x8x16xf32, #tpu.memory_space<vmem>>, vector<1x32x8x16xf32>
    %3 = vector.shape_cast %2 : vector<1x32x8x16xf32> to vector<256x16xf32>
    %4 = vector.extract_strided_slice %1 {offsets = [0, 32], sizes = [256, 16], strides = [1, 1]} : vector<256x48xf32> to vector<256x16xf32>
    %5 = vector.extract_strided_slice %1 {offsets = [0, 0], sizes = [256, 16], strides = [1, 1]} : vector<256x48xf32> to vector<256x16xf32>
    %6 = arith.addf %5, %4 : vector<256x16xf32>
    %cst = arith.constant 0.353553385 : f32
    %7 = vector.broadcast %cst : f32 to vector<256x16xf32>
    %8 = arith.mulf %6, %7 : vector<256x16xf32>
    %9 = vector.extract_strided_slice %1 {offsets = [0, 16], sizes = [256, 16], strides = [1, 1]} : vector<256x48xf32> to vector<256x16xf32>
    %10 = arith.addf %9, %4 : vector<256x16xf32>
    %11 = vector.extract_strided_slice %8 {offsets = [0, 0], sizes = [256, 8], strides = [1, 1]} : vector<256x16xf32> to vector<256x8xf32>
    %12 = vector.extract_strided_slice %10 {offsets = [0, 0], sizes = [256, 8], strides = [1, 1]} : vector<256x16xf32> to vector<256x8xf32>
    %13 = vector.extract_strided_slice %3 {offsets = [0, 0], sizes = [256, 8], strides = [1, 1]} : vector<256x16xf32> to vector<256x8xf32>
    %cst_7 = arith.constant dense<0.000000e+00> : vector<256x256xf32>
    %14 = tpu.matmul %11, %12, %cst_7 {dimension_numbers = #tpu.dot_dimension_numbers<[1], [1], [0], [0], [0, 0, 1, 0], [], []>} : vector<256x8xf32>, vector<256x8xf32>, vector<256x256xf32> -> vector<256x256xf32>
    %cst_8 = arith.constant dense<0xFF800000> : vector<256xf32>
    %15 = vector.multi_reduction <maximumf>, %14, %cst_8 [1] : vector<256x256xf32> to vector<256xf32>
    %16 = vector.shape_cast %15 : vector<256xf32> to vector<256x1xf32>
    %17 = vector.broadcast %16 : vector<256x1xf32> to vector<256x256xf32>
    %18 = arith.subf %14, %17 : vector<256x256xf32>
    %19 = math.exp %18 : vector<256x256xf32>
    %cst_9 = arith.constant dense<0.000000e+00> : vector<256xf32>
    %20 = vector.multi_reduction <add>, %19, %cst_9 [1] : vector<256x256xf32> to vector<256xf32>
    %21 = vector.shape_cast %20 : vector<256xf32> to vector<256x1xf32>
    %cst_10 = arith.constant dense<0.000000e+00> : vector<256x8xf32>
    %22 = tpu.matmul %19, %13, %cst_10 {dimension_numbers = #tpu.dot_dimension_numbers<[1], [0], [0], [1], [0, 0, 1, 1], [], []>} : vector<256x256xf32>, vector<256x8xf32>, vector<256x8xf32> -> vector<256x8xf32>
    %23 = vector.broadcast %21 : vector<256x1xf32> to vector<256x8xf32>
    %24 = arith.divf %22, %23 : vector<256x8xf32>
    %25 = vector.extract_strided_slice %8 {offsets = [0, 8], sizes = [256, 8], strides = [1, 1]} : vector<256x16xf32> to vector<256x8xf32>
    %26 = vector.extract_strided_slice %10 {offsets = [0, 8], sizes = [256, 8], strides = [1, 1]} : vector<256x16xf32> to vector<256x8xf32>
    %27 = vector.extract_strided_slice %3 {offsets = [0, 8], sizes = [256, 8], strides = [1, 1]} : vector<256x16xf32> to vector<256x8xf32>
    %cst_11 = arith.constant dense<0.000000e+00> : vector<256x256xf32>
    %28 = tpu.matmul %25, %26, %cst_11 {dimension_numbers = #tpu.dot_dimension_numbers<[1], [1], [0], [0], [0, 0, 1, 0], [], []>} : vector<256x8xf32>, vector<256x8xf32>, vector<256x256xf32> -> vector<256x256xf32>
    %cst_12 = arith.constant dense<0xFF800000> : vector<256xf32>
    %29 = vector.multi_reduction <maximumf>, %28, %cst_12 [1] : vector<256x256xf32> to vector<256xf32>
    %30 = vector.shape_cast %29 : vector<256xf32> to vector<256x1xf32>
    %31 = vector.broadcast %30 : vector<256x1xf32> to vector<256x256xf32>
    %32 = arith.subf %28, %31 : vector<256x256xf32>
    %33 = math.exp %32 : vector<256x256xf32>
    %cst_13 = arith.constant dense<0.000000e+00> : vector<256xf32>
    %34 = vector.multi_reduction <add>, %33, %cst_13 [1] : vector<256x256xf32> to vector<256xf32>
    %35 = vector.shape_cast %34 : vector<256xf32> to vector<256x1xf32>
    %cst_14 = arith.constant dense<0.000000e+00> : vector<256x8xf32>
    %36 = tpu.matmul %33, %27, %cst_14 {dimension_numbers = #tpu.dot_dimension_numbers<[1], [0], [0], [1], [0, 0, 1, 1], [], []>} : vector<256x256xf32>, vector<256x8xf32>, vector<256x8xf32> -> vector<256x8xf32>
    %37 = vector.broadcast %35 : vector<256x1xf32> to vector<256x8xf32>
    %38 = arith.divf %36, %37 : vector<256x8xf32>
    %39 = tpu.concatenate %24, %38 in 1 : vector<256x8xf32>, vector<256x8xf32> -> vector<256x16xf32>
    %40 = arith.addf %39, %4 : vector<256x16xf32>
    %41 = vector.shape_cast %40 : vector<256x16xf32> to vector<1x32x8x16xf32>
    %c0_15 = arith.constant 0 : index
    %c0_16 = arith.constant 0 : index
    %c0_17 = arith.constant 0 : index
    %c0_18 = arith.constant 0 : index
    %42 = vector.load %arg5[%c0_15, %c0_16, %c0_17, %c0_18] : memref<1x32x8x16xf32, #tpu.memory_space<vmem>>, vector<1x32x8x16xf32>
    tpu.vector_store %arg5[%c0_15, %c0_16, %c0_17, %c0_18], %41 {strides = array<i32>} : memref<1x32x8x16xf32, #tpu.memory_space<vmem>>, vector<1x32x8x16xf32>,
    return
  }
  func.func @transform_0(%arg0: i32, %arg1: i32, %arg2: i32) -> (i32, i32, i32, i32) {
    %c0_i32 = arith.constant 0 : i32
    %c0_i32_0 = arith.constant 0 : i32
    return %arg0, %arg1, %arg2, %c0_i32 : i32, i32, i32, i32
  }
  func.func @transform_1(%arg0: i32, %arg1: i32, %arg2: i32) -> (i32, i32, i32, i32) {
    %c0_i32 = arith.constant 0 : i32
    %c0_i32_0 = arith.constant 0 : i32
    return %arg0, %arg1, %arg2, %c0_i32 : i32, i32, i32, i32
  }
  func.func @transform_2(%arg0: i32, %arg1: i32, %arg2: i32) -> (i32, i32, i32, i32) {
    %c0_i32 = arith.constant 0 : i32
    %c0_i32_0 = arith.constant 0 : i32
    return %arg0, %arg1, %arg2, %c0_i32 : i32, i32, i32, i32
  }
}

</mosaic_0001>

<llo_original>
// kernel: lepe_attention_forward.2
$region0: #{lepe_attention_forward.2}
  #allocation0 [shape = 'u32[]', space=smem, size = 0x4, offset = 0x4, fixed_abs, tag = 'smem constant byte address 0x4 - core index']
  #allocation1 [shape = 'u32[144,128]{1,0:T(1,128)}', space=vmem, size = 0x12000, scoped, tag = 'internal scratch']
  %s0 = inlined_call_operand.vmem [shape: f32[1024,16], index: 0, kind: input, shape index: {}]
  %s1 = inlined_call_operand.vmem [shape: f32[16,48], index: 1, kind: input, shape index: {}]
  %s2 = inlined_call_operand.vmem [shape: f32[1,48], index: 2, kind: input, shape index: {}]
  %s3 = inlined_call_operand.vmem [shape: f32[1024,48], index: 3, kind: output, shape index: {}]
  %s4 = sld [smem:[#allocation0]]
  $region22: #{lepe_attention_forward.2} parent=0
    _
  %s6 = ssub.s32 1, %s4
  %s7 = scalar_select 0, %s6, %s4
  // Predicated region
  $region2: #{lepe_attention_forward.2} parent=0 // pred_check
    _
  $region3: #{lepe_attention_forward.2} parent=0 // pred_check_branch
    %9 = sbr.rel (0) target = $region5
  $region4: #{lepe_attention_forward.2} parent=0 // pred_region
    _
  $region5: #{lepe_attention_forward.2} parent=0 // pred_fallthru
    _
  // Predicated region
  $region6: #{lepe_attention_forward.2} parent=0 // pred_check
    _
  $region7: #{lepe_attention_forward.2} parent=0 // pred_check_branch
    %11 = sbr.rel (0) target = $region9
  $region8: #{lepe_attention_forward.2} parent=0 // pred_region
    _
  $region9: #{lepe_attention_forward.2} parent=0 // pred_fallthru
    _
  // Predicated region
  $region10: #{lepe_attention_forward.2} parent=0 // pred_check
    _
  $region11: #{lepe_attention_forward.2} parent=0 // pred_check_branch
    %13 = sbr.rel (0) target = $region13
  $region12: #{lepe_attention_forward.2} parent=0 // pred_region
    _
  $region13: #{lepe_attention_forward.2} parent=0 // pred_fallthru
    _
  %v14 = vld [vmem:[%s0] sm:$0xff]
  %v15 = vld [vmem:[%s0 + $0x8] sm:$0xff]
  %v16 = vld [vmem:[%s0 + $0x10] sm:$0xff]
  %v17 = vld [vmem:[%s0 + $0x18] sm:$0xff]
  %v18 = vld [vmem:[%s0 + $0x20] sm:$0xff]
  %v19 = vld [vmem:[%s0 + $0x28] sm:$0xff]
  %v20 = vld [vmem:[%s0 + $0x30] sm:$0xff]
  %v21 = vld [vmem:[%s0 + $0x38] sm:$0xff]
  %v22 = vld [vmem:[%s0 + $0x40] sm:$0xff]
  %v23 = vld [vmem:[%s0 + $0x48] sm:$0xff]
  %v24 = vld [vmem:[%s0 + $0x50] sm:$0xff]
  %v25 = vld [vmem:[%s0 + $0x58] sm:$0xff]
  %v26 = vld [vmem:[%s0 + $0x60] sm:$0xff]
  %v27 = vld [vmem:[%s0 + $0x68] sm:$0xff]
  %v28 = vld [vmem:[%s0 + $0x70] sm:$0xff]
  %v29 = vld [vmem:[%s0 + $0x78] sm:$0xff]
  %v30 = vld [vmem:[%s0 + $0x80] sm:$0xff]
  %v31 = vld [vmem:[%s0 + $0x88] sm:$0xff]
  %v32 = vld [vmem:[%s0 + $0x90] sm:$0xff]
  %v33 = vld [vmem:[%s0 + $0x98] sm:$0xff]
  %v34 = vld [vmem:[%s0 + $0xa0] sm:$0xff]
  %v35 = vld [vmem:[%s0 + $0xa8] sm:$0xff]
  %v36 = vld [vmem:[%s0 + $0xb0] sm:$0xff]
  %v37 = vld [vmem:[%s0 + $0xb8] sm:$0xff]
  %v38 = vld [vmem:[%s0 + $0xc0] sm:$0xff]
  %v39 = vld [vmem:[%s0 + $0xc8] sm:$0xff]
  %v40 = vld [vmem:[%s0 + $0xd0] sm:$0xff]
  %v41 = vld [vmem:[%s0 + $0xd8] sm:$0xff]
  %v42 = vld [vmem:[%s0 + $0xe0] sm:$0xff]
  %v43 = vld [vmem:[%s0 + $0xe8] sm:$0xff]
  %v44 = vld [vmem:[%s0 + $0xf0] sm:$0xff]
  %v45 = vld [vmem:[%s0 + $0xf8] sm:$0xff]
  %v46 = vld [vmem:[%s0 + $0x100] sm:$0xff]
  %v47 = vld [vmem:[%s0 + $0x108] sm:$0xff]
  %v48 = vld [vmem:[%s0 + $0x110] sm:$0xff]
  %v49 = vld [vmem:[%s0 + $0x118] sm:$0xff]
  %v50 = vld [vmem:[%s0 + $0x120] sm:$0xff]
  %v51 = vld [vmem:[%s0 + $0x128] sm:$0xff]
  %v52 = vld [vmem:[%s0 + $0x130] sm:$0xff]
  %v53 = vld [vmem:[%s0 + $0x138] sm:$0xff]
  %v54 = vld [vmem:[%s0 + $0x140] sm:$0xff]
  %v55 = vld [vmem:[%s0 + $0x148] sm:$0xff]
  %v56 = vld [vmem:[%s0 + $0x150] sm:$0xff]
  %v57 = vld [vmem:[%s0 + $0x158] sm:$0xff]
  %v58 = vld [vmem:[%s0 + $0x160] sm:$0xff]
  %v59 = vld [vmem:[%s0 + $0x168] sm:$0xff]
  %v60 = vld [vmem:[%s0 + $0x170] sm:$0xff]
  %v61 = vld [vmem:[%s0 + $0x178] sm:$0xff]
  %v62 = vld [vmem:[%s0 + $0x180] sm:$0xff]
  %v63 = vld [vmem:[%s0 + $0x188] sm:$0xff]
  %v64 = vld [vmem:[%s0 + $0x190] sm:$0xff]
  %v65 = vld [vmem:[%s0 + $0x198] sm:$0xff]
  %v66 = vld [vmem:[%s0 + $0x1a0] sm:$0xff]
  %v67 = vld [vmem:[%s0 + $0x1a8] sm:$0xff]
  %v68 = vld [vmem:[%s0 + $0x1b0] sm:$0xff]
  %v69 = vld [vmem:[%s0 + $0x1b8] sm:$0xff]
  %v70 = vld [vmem:[%s0 + $0x1c0] sm:$0xff]
  %v71 = vld [vmem:[%s0 + $0x1c8] sm:$0xff]
  %v72 = vld [vmem:[%s0 + $0x1d0] sm:$0xff]
  %v73 = vld [vmem:[%s0 + $0x1d8] sm:$0xff]
  %v74 = vld [vmem:[%s0 + $0x1e0] sm:$0xff]
  %v75 = vld [vmem:[%s0 + $0x1e8] sm:$0xff]
  %v76 = vld [vmem:[%s0 + $0x1f0] sm:$0xff]
  %v77 = vld [vmem:[%s0 + $0x1f8] sm:$0xff]
  %v78 = vld [vmem:[%s0 + $0x200] sm:$0xff]
  %v79 = vld [vmem:[%s0 + $0x208] sm:$0xff]
  %v80 = vld [vmem:[%s0 + $0x210] sm:$0xff]
  %v81 = vld [vmem:[%s0 + $0x218] sm:$0xff]
  %v82 = vld [vmem:[%s0 + $0x220] sm:$0xff]
  %v83 = vld [vmem:[%s0 + $0x228] sm:$0xff]
  %v84 = vld [vmem:[%s0 + $0x230] sm:$0xff]
  %v85 = vld [vmem:[%s0 + $0x238] sm:$0xff]
  %v86 = vld [vmem:[%s0 + $0x240] sm:$0xff]
  %v87 = vld [vmem:[%s0 + $0x248] sm:$0xff]
  %v88 = vld [vmem:[%s0 + $0x250] sm:$0xff]
  %v89 = vld [vmem:[%s0 + $0x258] sm:$0xff]
  %v90 = vld [vmem:[%s0 + $0x260] sm:$0xff]
  %v91 = vld [vmem:[%s0 + $0x268] sm:$0xff]
  %v92 = vld [vmem:[%s0 + $0x270] sm:$0xff]
  %v93 = vld [vmem:[%s0 + $0x278] sm:$0xff]
  %v94 = vld [vmem:[%s0 + $0x280] sm:$0xff]
  %v95 = vld [vmem:[%s0 + $0x288] sm:$0xff]
  %v96 = vld [vmem:[%s0 + $0x290] sm:$0xff]
  %v97 = vld [vmem:[%s0 + $0x298] sm:$0xff]
  %v98 = vld [vmem:[%s0 + $0x2a0] sm:$0xff]
  %v99 = vld [vmem:[%s0 + $0x2a8] sm:$0xff]
  %v100 = vld [vmem:[%s0 + $0x2b0] sm:$0xff]
  %v101 = vld [vmem:[%s0 + $0x2b8] sm:$0xff]
  %v102 = vld [vmem:[%s0 + $0x2c0] sm:$0xff]
  %v103 = vld [vmem:[%s0 + $0x2c8] sm:$0xff]
  %v104 = vld [vmem:[%s0 + $0x2d0] sm:$0xff]
  %v105 = vld [vmem:[%s0 + $0x2d8] sm:$0xff]
  %v106 = vld [vmem:[%s0 + $0x2e0] sm:$0xff]
  %v107 = vld [vmem:[%s0 + $0x2e8] sm:$0xff]
  %v108 = vld [vmem:[%s0 + $0x2f0] sm:$0xff]
  %v109 = vld [vmem:[%s0 + $0x2f8] sm:$0xff]
  %v110 = vld [vmem:[%s0 + $0x300] sm:$0xff]
  %v111 = vld [vmem:[%s0 + $0x308] sm:$0xff]
  %v112 = vld [vmem:[%s0 + $0x310] sm:$0xff]
  %v113 = vld [vmem:[%s0 + $0x318] sm:$0xff]
  %v114 = vld [vmem:[%s0 + $0x320] sm:$0xff]
  %v115 = vld [vmem:[%s0 + $0x328] sm:$0xff]
  %v116 = vld [vmem:[%s0 + $0x330] sm:$0xff]
  %v117 = vld [vmem:[%s0 + $0x338] sm:$0xff]
  %v118 = vld [vmem:[%s0 + $0x340] sm:$0xff]
  %v119 = vld [vmem:[%s0 + $0x348] sm:$0xff]
  %v120 = vld [vmem:[%s0 + $0x350] sm:$0xff]
  %v121 = vld [vmem:[%s0 + $0x358] sm:$0xff]
  %v122 = vld [vmem:[%s0 + $0x360] sm:$0xff]
  %v123 = vld [vmem:[%s0 + $0x368] sm:$0xff]
  %v124 = vld [vmem:[%s0 + $0x370] sm:$0xff]
  %v125 = vld [vmem:[%s0 + $0x378] sm:$0xff]
  %v126 = vld [vmem:[%s0 + $0x380] sm:$0xff]
  %v127 = vld [vmem:[%s0 + $0x388] sm:$0xff]
  %v128 = vld [vmem:[%s0 + $0x390] sm:$0xff]
  %v129 = vld [vmem:[%s0 + $0x398] sm:$0xff]
  %v130 = vld [vmem:[%s0 + $0x3a0] sm:$0xff]
  %v131 = vld [vmem:[%s0 + $0x3a8] sm:$0xff]
  %v132 = vld [vmem:[%s0 + $0x3b0] sm:$0xff]
  %v133 = vld [vmem:[%s0 + $0x3b8] sm:$0xff]
  %v134 = vld [vmem:[%s0 + $0x3c0] sm:$0xff]
  %v135 = vld [vmem:[%s0 + $0x3c8] sm:$0xff]
  %v136 = vld [vmem:[%s0 + $0x3d0] sm:$0xff]
  %v137 = vld [vmem:[%s0 + $0x3d8] sm:$0xff]
  %v138 = vld [vmem:[%s0 + $0x3e0] sm:$0xff]
  %v139 = vld [vmem:[%s0 + $0x3e8] sm:$0xff]
  %v140 = vld [vmem:[%s0 + $0x3f0] sm:$0xff]
  %v141 = vld [vmem:[%s0 + $0x3f8] sm:$0xff]
  %v142 = vld [vmem:[%s1] sm:$0xff]
  %v143 = vld [vmem:[%s1 + $0x8] sm:$0xff]
  %v144 = vld [vmem:[%s2] sm:$0x1]
  %v146 = vlaneseq
  %v147 = vshrl.u32 %v146, 7
  %v148 = vsub.s32 0, %v147
  %v149 = vrot.slane %v144, %v148
  %vm151 = vcmask 130048
  %v153 = vsel %vm151, %v14, 0
  %v156 = vsel %vm151, %v15, 0
  %v159 = vsel %vm151, %v16, 0
  %v162 = vsel %vm151, %v17, 0
  %v165 = vsel %vm151, %v18, 0
  %v168 = vsel %vm151, %v19, 0
  %v171 = vsel %vm151, %v20, 0
  %v174 = vsel %vm151, %v21, 0
  %v177 = vsel %vm151, %v22, 0
  %v180 = vsel %vm151, %v23, 0
  %v183 = vsel %vm151, %v24, 0
  %v186 = vsel %vm151, %v25, 0
  %v189 = vsel %vm151, %v26, 0
  %v192 = vsel %vm151, %v27, 0
  %v195 = vsel %vm151, %v28, 0
  %v198 = vsel %vm151, %v29, 0
  %v201 = vsel %vm151, %v30, 0
  %v204 = vsel %vm151, %v31, 0
  %v207 = vsel %vm151, %v32, 0
  %v210 = vsel %vm151, %v33, 0
  %v213 = vsel %vm151, %v34, 0
  %v216 = vsel %vm151, %v35, 0
  %v219 = vsel %vm151, %v36, 0
  %v222 = vsel %vm151, %v37, 0
  %v225 = vsel %vm151, %v38, 0
  %v228 = vsel %vm151, %v39, 0
  %v231 = vsel %vm151, %v40, 0
  %v234 = vsel %vm151, %v41, 0
  %v237 = vsel %vm151, %v42, 0
  %v240 = vsel %vm151, %v43, 0
  %v243 = vsel %vm151, %v44, 0
  %v246 = vsel %vm151, %v45, 0
  %v249 = vsel %vm151, %v46, 0
  %v252 = vsel %vm151, %v47, 0
  %v255 = vsel %vm151, %v48, 0
  %v258 = vsel %vm151, %v49, 0
  %v261 = vsel %vm151, %v50, 0
  %v264 = vsel %vm151, %v51, 0
  %v267 = vsel %vm151, %v52, 0
  %v270 = vsel %vm151, %v53, 0
  %v273 = vsel %vm151, %v54, 0
  %v276 = vsel %vm151, %v55, 0
  %v279 = vsel %vm151, %v56, 0
  %v282 = vsel %vm151, %v57, 0
  %v285 = vsel %vm151, %v58, 0
  %v288 = vsel %vm151, %v59, 0
  %v291 = vsel %vm151, %v60, 0
  %v294 = vsel %vm151, %v61, 0
  %v297 = vsel %vm151, %v62, 0
  %v300 = vsel %vm151, %v63, 0
  %v303 = vsel %vm151, %v64, 0
  %v306 = vsel %vm151, %v65, 0
  %v309 = vsel %vm151, %v66, 0
  %v312 = vsel %vm151, %v67, 0
  %v315 = vsel %vm151, %v68, 0
  %v318 = vsel %vm151, %v69, 0
  %v321 = vsel %vm151, %v70, 0
  %v324 = vsel %vm151, %v71, 0
  %v327 = vsel %vm151, %v72, 0
  %v330 = vsel %vm151, %v73, 0
  %v333 = vsel %vm151, %v74, 0
  %v336 = vsel %vm151, %v75, 0
  %v339 = vsel %vm151, %v76, 0
  %v342 = vsel %vm151, %v77, 0
  %v345 = vsel %vm151, %v78, 0
  %v348 = vsel %vm151, %v79, 0
  %v351 = vsel %vm151, %v80, 0
  %v354 = vsel %vm151, %v81, 0
  %v357 = vsel %vm151, %v82, 0
  %v360 = vsel %vm151, %v83, 0
  %v363 = vsel %vm151, %v84, 0
  %v366 = vsel %vm151, %v85, 0
  %v369 = vsel %vm151, %v86, 0
  %v372 = vsel %vm151, %v87, 0
  %v375 = vsel %vm151, %v88, 0
  %v378 = vsel %vm151, %v89, 0
  %v381 = vsel %vm151, %v90, 0
  %v384 = vsel %vm151, %v91, 0
  %v387 = vsel %vm151, %v92, 0
  %v390 = vsel %vm151, %v93, 0
  %v393 = vsel %vm151, %v94, 0
  %v396 = vsel %vm151, %v95, 0
  %v399 = vsel %vm151, %v96, 0
  %v402 = vsel %vm151, %v97, 0
  %v405 = vsel %vm151, %v98, 0
  %v408 = vsel %vm151, %v99, 0
  %v411 = vsel %vm151, %v100, 0
  %v414 = vsel %vm151, %v101, 0
  %v417 = vsel %vm151, %v102, 0
  %v420 = vsel %vm151, %v103, 0
  %v423 = vsel %vm151, %v104, 0
  %v426 = vsel %vm151, %v105, 0
  %v429 = vsel %vm151, %v106, 0
  %v432 = vsel %vm151, %v107, 0
  %v435 = vsel %vm151, %v108, 0
  %v438 = vsel %vm151, %v109, 0
  %v441 = vsel %vm151, %v110, 0
  %v444 = vsel %vm151, %v111, 0
  %v447 = vsel %vm151, %v112, 0
  %v450 = vsel %vm151, %v113, 0
  %v453 = vsel %vm151, %v114, 0
  %v456 = vsel %vm151, %v115, 0
  %v459 = vsel %vm151, %v116, 0
  %v462 = vsel %vm151, %v117, 0
  %v465 = vsel %vm151, %v118, 0
  %v468 = vsel %vm151, %v119, 0
  %v471 = vsel %vm151, %v120, 0
  %v474 = vsel %vm151, %v121, 0
  %v477 = vsel %vm151, %v122, 0
  %v480 = vsel %vm151, %v123, 0
  %v483 = vsel %vm151, %v124, 0
  %v486 = vsel %vm151, %v125, 0
  %v489 = vsel %vm151, %v126, 0
  %v492 = vsel %vm151, %v127, 0
  %v495 = vsel %vm151, %v128, 0
  %v498 = vsel %vm151, %v129, 0
  %v501 = vsel %vm151, %v130, 0
  %v504 = vsel %vm151, %v131, 0
  %v507 = vsel %vm151, %v132, 0
  %v510 = vsel %vm151, %v133, 0
  %v513 = vsel %vm151, %v134, 0
  %v516 = vsel %vm151, %v135, 0
  %v519 = vsel %vm151, %v136, 0
  %v522 = vsel %vm151, %v137, 0
  %v525 = vsel %vm151, %v138, 0
  %v528 = vsel %vm151, %v139, 0
  %v531 = vsel %vm151, %v140, 0
  %v534 = vsel %vm151, %v141, 0
  %536 = vmatprep.subr.mxu0 0.0
  %537 = vmatpush1.msra.mxu0 %v142
  %538 = vmatprep.subr.mxu0 0.0
  %539 = vmatpush1.msra.mxu0 %v143
  %540 = vmatprep.subr.mxu0 0.0
  %541 = vmatpush1.msra.mxu0 0.0
  %542 = vmatprep.subr.mxu0 0.0
  %543 = vmatpush1.msra.mxu0 0.0
  %544 = vmatprep.subr.mxu0 0.0
  %545 = vmatpush1.msra.mxu0 0.0
  %546 = vmatprep.subr.mxu0 0.0
  %547 = vmatpush1.msra.mxu0 0.0
  %548 = vmatprep.subr.mxu0 0.0
  %549 = vmatpush1.msra.mxu0 0.0
  %550 = vmatprep.subr.mxu0 0.0
  %551 = vmatpush1.msra.mxu0 0.0
  %552 = vmatprep.subr.mxu0 0.0
  %553 = vmatpush1.msra.mxu0 0.0
  %554 = vmatprep.subr.mxu0 0.0
  %555 = vmatpush1.msra.mxu0 0.0
  %556 = vmatprep.subr.mxu0 0.0
  %557 = vmatpush1.msra.mxu0 0.0
  %558 = vmatprep.subr.mxu0 0.0
  %559 = vmatpush1.msra.mxu0 0.0
  %560 = vmatprep.subr.mxu0 0.0
  %561 = vmatpush1.msra.mxu0 0.0
  %562 = vmatprep.subr.mxu0 0.0
  %563 = vmatpush1.msra.mxu0 0.0
  %564 = vmatprep.subr.mxu0 0.0
  %565 = vmatpush1.msra.mxu0 0.0
  %566 = vmatprep.subr.mxu0 0.0
  %567 = vmatpush1.msra.mxu0 0.0
  %568 = vmatprep.subr.mxu0 0.0
  %569 = vmatpush1.msra.mxu0 0.0
  %570 = vmatprep.subr.mxu0 0.0
  %571 = vmatpush1.msra.mxu0 0.0
  %572 = vmatprep.subr.mxu0 0.0
  %573 = vmatpush1.msra.mxu0 0.0
  %574 = vmatprep.subr.mxu0 0.0
  %575 = vmatpush1.msra.mxu0 0.0
  %576 = vmatprep.subr.mxu0 0.0
  %577 = vmatpush1.msra.mxu0 0.0
  %578 = vmatprep.subr.mxu0 0.0
  %579 = vmatpush1.msra.mxu0 0.0
  %580 = vmatprep.subr.mxu0 0.0
  %581 = vmatpush1.msra.mxu0 0.0
  %582 = vmatprep.subr.mxu0 0.0
  %583 = vmatpush1.msra.mxu0 0.0
  %584 = vmatprep.subr.mxu0 0.0
  %585 = vmatpush1.msra.mxu0 0.0
  %586 = vmatprep.subr.mxu0 0.0
  %587 = vmatpush1.msra.mxu0 0.0
  %588 = vmatprep.subr.mxu0 0.0
  %589 = vmatpush1.msra.mxu0 0.0
  %590 = vmatprep.subr.mxu0 0.0
  %591 = vmatpush1.msra.mxu0 0.0
  %592 = vmatprep.subr.mxu0 0.0
  %593 = vmatpush1.msra.mxu0 0.0
  %594 = vmatprep.subr.mxu0 0.0
  %595 = vmatpush1.msra.mxu0 0.0
  %596 = vmatprep.subr.mxu0 0.0
  %597 = vmatpush1.msra.mxu0 0.0
  %598 = vmatprep.subr.mxu0 0.0
  %599 = vmatpush1.msra.mxu0 0.0
  %600 = vmatprep.mubr.f32.mxu0 0.0
  %601 = vmatmul.mubr.f32.gmra.mrb[0].mxu0 %v153
  %v602 = vpop.f32.mrb[0].mxu0
  %v603 = vadd.f32 %v149, %v602
  %v604 = vpop.f32.mrb[0].mxu0
  %605 = vmatprep.mubr.f32.mxu0 0.0
  %606 = vmatmul.mubr.f32.gmra.mrb[0].mxu0 %v156
  %v607 = vpop.f32.mrb[0].mxu0
  %v608 = vadd.f32 %v149, %v607
  %v609 = vpop.f32.mrb[0].mxu0
  %610 = vmatprep.mubr.f32.mxu0 0.0
  %611 = vmatmul.mubr.f32.gmra.mrb[0].mxu0 %v159
  %v612 = vpop.f32.mrb[0].mxu0
  %v613 = vadd.f32 %v149, %v612
  %v614 = vpop.f32.mrb[0].mxu0
  %615 = vmatprep.mubr.f32.mxu0 0.0
  %616 = vmatmul.mubr.f32.gmra.mrb[0].mxu0 %v162
  %v617 = vpop.f32.mrb[0].mxu0
  %v618 = vadd.f32 %v149, %v617
  %v619 = vpop.f32.mrb[0].mxu0
  %620 = vmatprep.mubr.f32.mxu0 0.0
  %621 = vmatmul.mubr.f32.gmra.mrb[0].mxu0 %v165
  %v622 = vpop.f32.mrb[0].mxu0
  %v623 = vadd.f32 %v149, %v622
  %v624 = vpop.f32.mrb[0].mxu0
  %625 = vmatprep.mubr.f32.mxu0 0.0
  %626 = vmatmul.mubr.f32.gmra.mrb[0].mxu0 %v168
  %v627 = vpop.f32.mrb[0].mxu0
  %v628 = vadd.f32 %v149, %v627
  %v629 = vpop.f32.mrb[0].mxu0
  %630 = vmatprep.mubr.f32.mxu0 0.0
  %631 = vmatmul.mubr.f32.gmra.mrb[0].mxu0 %v171
  %v632 = vpop.f32.mrb[0].mxu0
  %v633 = vadd.f32 %v149, %v632
  %v634 = vpop.f32.mrb[0].mxu0
  %635 = vmatprep.mubr.f32.mxu0 0.0
  %636 = vmatmul.mubr.f32.gmra.mrb[0].mxu0 %v174
  %v637 = vpop.f32.mrb[0].mxu0
  %v638 = vadd.f32 %v149, %v637
  %v639 = vpop.f32.mrb[0].mxu0
  %640 = vmatprep.mubr.f32.mxu0 0.0
  %641 = vmatmul.mubr.f32.gmra.mrb[0].mxu0 %v177
  %v642 = vpop.f32.mrb[0].mxu0
  %v643 = vadd.f32 %v149, %v642
  %v644 = vpop.f32.mrb[0].mxu0
  %645 = vmatprep.mubr.f32.mxu0 0.0
  %646 = vmatmul.mubr.f32.gmra.mrb[0].mxu0 %v180
  %v647 = vpop.f32.mrb[0].mxu0
  %v648 = vadd.f32 %v149, %v647
  %v649 = vpop.f32.mrb[0].mxu0
  %650 = vmatprep.mubr.f32.mxu0 0.0
  %651 = vmatmul.mubr.f32.gmra.mrb[0].mxu0 %v183
  %v652 = vpop.f32.mrb[0].mxu0
  %v653 = vadd.f32 %v149, %v652
  %v654 = vpop.f32.mrb[0].mxu0
  %655 = vmatprep.mubr.f32.mxu0 0.0
  %656 = vmatmul.mubr.f32.gmra.mrb[0].mxu0 %v186
  %v657 = vpop.f32.mrb[0].mxu0
  %v658 = vadd.f32 %v149, %v657
  %v659 = vpop.f32.mrb[0].mxu0
  %660 = vmatprep.mubr.f32.mxu0 0.0
  %661 = vmatmul.mubr.f32.gmra.mrb[0].mxu0 %v189
  %v662 = vpop.f32.mrb[0].mxu0
  %v663 = vadd.f32 %v149, %v662
  %v664 = vpop.f32.mrb[0].mxu0
  %665 = vmatprep.mubr.f32.mxu0 0.0
  %666 = vmatmul.mubr.f32.gmra.mrb[0].mxu0 %v192
  %v667 = vpop.f32.mrb[0].mxu0
  %v668 = vadd.f32 %v149, %v667
  %v669 = vpop.f32.mrb[0].mxu0
  %670 = vmatprep.mubr.f32.mxu0 0.0
  %671 = vmatmul.mubr.f32.gmra.mrb[0].mxu0 %v195
  %v672 = vpop.f32.mrb[0].mxu0
  %v673 = vadd.f32 %v149, %v672
  %v674 = vpop.f32.mrb[0].mxu0
  %675 = vmatprep.mubr.f32.mxu0 0.0
  %676 = vmatmul.mubr.f32.gmra.mrb[0].mxu0 %v198
  %v677 = vpop.f32.mrb[0].mxu0
  %v678 = vadd.f32 %v149, %v677
  %v679 = vpop.f32.mrb[0].mxu0
  %680 = vmatprep.mubr.f32.mxu0 0.0
  %681 = vmatmul.mubr.f32.gmra.mrb[0].mxu0 %v201
  %v682 = vpop.f32.mrb[0].mxu0
  %v683 = vadd.f32 %v149, %v682
  %v684 = vpop.f32.mrb[0].mxu0
  %685 = vmatprep.mubr.f32.mxu0 0.0
  %686 = vmatmul.mubr.f32.gmra.mrb[0].mxu0 %v204
  %v687 = vpop.f32.mrb[0].mxu0
  %v688 = vadd.f32 %v149, %v687
  %v689 = vpop.f32.mrb[0].mxu0
  %690 = vmatprep.mubr.f32.mxu0 0.0
  %691 = vmatmul.mubr.f32.gmra.mrb[0].mxu0 %v207
  %v692 = vpop.f32.mrb[0].mxu0
  %v693 = vadd.f32 %v149, %v692
  %v694 = vpop.f32.mrb[0].mxu0
  %695 = vmatprep.mubr.f32.mxu0 0.0
  %696 = vmatmul.mubr.f32.gmra.mrb[0].mxu0 %v210
  %v697 = vpop.f32.mrb[0].mxu0
  %v698 = vadd.f32 %v149, %v697
  %v699 = vpop.f32.mrb[0].mxu0
  %700 = vmatprep.mubr.f32.mxu0 0.0
  %701 = vmatmul.mubr.f32.gmra.mrb[0].mxu0 %v213
  %v702 = vpop.f32.mrb[0].mxu0
  %v703 = vadd.f32 %v149, %v702
  %v704 = vpop.f32.mrb[0].mxu0
  %705 = vmatprep.mubr.f32.mxu0 0.0
  %706 = vmatmul.mubr.f32.gmra.mrb[0].mxu0 %v216
  %v707 = vpop.f32.mrb[0].mxu0
  %v708 = vadd.f32 %v149, %v707
  %v709 = vpop.f32.mrb[0].mxu0
  %710 = vmatprep.mubr.f32.mxu0 0.0
  %711 = vmatmul.mubr.f32.gmra.mrb[0].mxu0 %v219
  %v712 = vpop.f32.mrb[0].mxu0
  %v713 = vadd.f32 %v149, %v712
  %v714 = vpop.f32.mrb[0].mxu0
  %715 = vmatprep.mubr.f32.mxu0 0.0
  %716 = vmatmul.mubr.f32.gmra.mrb[0].mxu0 %v222
  %v717 = vpop.f32.mrb[0].mxu0
  %v718 = vadd.f32 %v149, %v717
  %v719 = vpop.f32.mrb[0].mxu0
  %720 = vmatprep.mubr.f32.mxu0 0.0
  %721 = vmatmul.mubr.f32.gmra.mrb[0].mxu0 %v225
  %v722 = vpop.f32.mrb[0].mxu0
  %v723 = vadd.f32 %v149, %v722
  %v724 = vpop.f32.mrb[0].mxu0
  %725 = vmatprep.mubr.f32.mxu0 0.0
  %726 = vmatmul.mubr.f32.gmra.mrb[0].mxu0 %v228
  %v727 = vpop.f32.mrb[0].mxu0
  %v728 = vadd.f32 %v149, %v727
  %v729 = vpop.f32.mrb[0].mxu0
  %730 = vmatprep.mubr.f32.mxu0 0.0
  %731 = vmatmul.mubr.f32.gmra.mrb[0].mxu0 %v231
  %v732 = vpop.f32.mrb[0].mxu0
  %v733 = vadd.f32 %v149, %v732
  %v734 = vpop.f32.mrb[0].mxu0
  %735 = vmatprep.mubr.f32.mxu0 0.0
  %736 = vmatmul.mubr.f32.gmra.mrb[0].mxu0 %v234
  %v737 = vpop.f32.mrb[0].mxu0
  %v738 = vadd.f32 %v149, %v737
  %v739 = vpop.f32.mrb[0].mxu0
  %740 = vmatprep.mubr.f32.mxu0 0.0
  %741 = vmatmul.mubr.f32.gmra.mrb[0].mxu0 %v237
  %v742 = vpop.f32.mrb[0].mxu0
  %v743 = vadd.f32 %v149, %v742
  %v744 = vpop.f32.mrb[0].mxu0
  %745 = vmatprep.mubr.f32.mxu0 0.0
  %746 = vmatmul.mubr.f32.gmra.mrb[0].mxu0 %v240
  %v747 = vpop.f32.mrb[0].mxu0
  %v748 = vadd.f32 %v149, %v747
  %v749 = vpop.f32.mrb[0].mxu0
  %750 = vmatprep.mubr.f32.mxu0 0.0
  %751 = vmatmul.mubr.f32.gmra.mrb[0].mxu0 %v243
  %v752 = vpop.f32.mrb[0].mxu0
  %v753 = vadd.f32 %v149, %v752
  %v754 = vpop.f32.mrb[0].mxu0
  %755 = vmatprep.mubr.f32.mxu0 0.0
  %756 = vmatmul.mubr.f32.gmra.mrb[0].mxu0 %v246
  %v757 = vpop.f32.mrb[0].mxu0
  %v758 = vadd.f32 %v149, %v757
  %v759 = vpop.f32.mrb[0].mxu0
  %760 = vmatprep.mubr.f32.mxu0 0.0
  %761 = vmatmul.mubr.f32.gmra.mrb[0].mxu0 %v249
  %v762 = vpop.f32.mrb[0].mxu0
  %v763 = vadd.f32 %v149, %v762
  %v764 = vpop.f32.mrb[0].mxu0
  %765 = vmatprep.mubr.f32.mxu0 0.0
  %766 = vmatmul.mubr.f32.gmra.mrb[0].mxu0 %v252
  %v767 = vpop.f32.mrb[0].mxu0
  %v768 = vadd.f32 %v149, %v767
  %v769 = vpop.f32.mrb[0].mxu0
  %770 = vmatprep.mubr.f32.mxu0 0.0
  %771 = vmatmul.mubr.f32.gmra.mrb[0].mxu0 %v255
  %v772 = vpop.f32.mrb[0].mxu0
  %v773 = vadd.f32 %v149, %v772
  %v774 = vpop.f32.mrb[0].mxu0
  %775 = vmatprep.mubr.f32.mxu0 0.0
  %776 = vmatmul.mubr.f32.gmra.mrb[0].mxu0 %v258
  %v777 = vpop.f32.mrb[0].mxu0
  %v778 = vadd.f32 %v149, %v777
  %v779 = vpop.f32.mrb[0].mxu0
  %780 = vmatprep.mubr.f32.mxu0 0.0
  %781 = vmatmul.mubr.f32.gmra.mrb[0].mxu0 %v261
  %v782 = vpop.f32.mrb[0].mxu0
  %v783 = vadd.f32 %v149, %v782
  %v784 = vpop.f32.mrb[0].mxu0
  %785 = vmatprep.mubr.f32.mxu0 0.0
  %786 = vmatmul.mubr.f32.gmra.mrb[0].mxu0 %v264
  %v787 = vpop.f32.mrb[0].mxu0
  %v788 = vadd.f32 %v149, %v787
  %v789 = vpop.f32.mrb[0].mxu0
  %790 = vmatprep.mubr.f32.mxu0 0.0
  %791 = vmatmul.mubr.f32.gmra.mrb[0].mxu0 %v267
  %v792 = vpop.f32.mrb[0].mxu0
  %v793 = vadd.f32 %v149, %v792
  %v794 = vpop.f32.mrb[0].mxu0
  %795 = vmatprep.mubr.f32.mxu0 0.0
  %796 = vmatmul.mubr.f32.gmra.mrb[0].mxu0 %v270
  %v797 = vpop.f32.mrb[0].mxu0
  %v798 = vadd.f32 %v149, %v797
  %v799 = vpop.f32.mrb[0].mxu0
  %800 = vmatprep.mubr.f32.mxu0 0.0
  %801 = vmatmul.mubr.f32.gmra.mrb[0].mxu0 %v273
  %v802 = vpop.f32.mrb[0].mxu0
  %v803 = vadd.f32 %v149, %v802
  %v804 = vpop.f32.mrb[0].mxu0
  %805 = vmatprep.mubr.f32.mxu0 0.0
  %806 = vmatmul.mubr.f32.gmra.mrb[0].mxu0 %v276
  %v807 = vpop.f32.mrb[0].mxu0
  %v808 = vadd.f32 %v149, %v807
  %v809 = vpop.f32.mrb[0].mxu0
  %810 = vmatprep.mubr.f32.mxu0 0.0
  %811 = vmatmul.mubr.f32.gmra.mrb[0].mxu0 %v279
  %v812 = vpop.f32.mrb[0].mxu0
  %v813 = vadd.f32 %v149, %v812
  %v814 = vpop.f32.mrb[0].mxu0
  %815 = vmatprep.mubr.f32.mxu0 0.0
  %816 = vmatmul.mubr.f32.gmra.mrb[0].mxu0 %v282
  %v817 = vpop.f32.mrb[0].mxu0
  %v818 = vadd.f32 %v149, %v817
  %v819 = vpop.f32.mrb[0].mxu0
  %820 = vmatprep.mubr.f32.mxu0 0.0
  %821 = vmatmul.mubr.f32.gmra.mrb[0].mxu0 %v285
  %v822 = vpop.f32.mrb[0].mxu0
  %v823 = vadd.f32 %v149, %v822
  %v824 = vpop.f32.mrb[0].mxu0
  %825 = vmatprep.mubr.f32.mxu0 0.0
  %826 = vmatmul.mubr.f32.gmra.mrb[0].mxu0 %v288
  %v827 = vpop.f32.mrb[0].mxu0
  %v828 = vadd.f32 %v149, %v827
  %v829 = vpop.f32.mrb[0].mxu0
  %830 = vmatprep.mubr.f32.mxu0 0.0
  %831 = vmatmul.mubr.f32.gmra.mrb[0].mxu0 %v291
  %v832 = vpop.f32.mrb[0].mxu0
  %v833 = vadd.f32 %v149, %v832
  %v834 = vpop.f32.mrb[0].mxu0
  %835 = vmatprep.mubr.f32.mxu0 0.0
  %836 = vmatmul.mubr.f32.gmra.mrb[0].mxu0 %v294
  %v837 = vpop.f32.mrb[0].mxu0
  %v838 = vadd.f32 %v149, %v837
  %v839 = vpop.f32.mrb[0].mxu0
  %840 = vmatprep.mubr.f32.mxu0 0.0
  %841 = vmatmul.mubr.f32.gmra.mrb[0].mxu0 %v297
  %v842 = vpop.f32.mrb[0].mxu0
  %v843 = vadd.f32 %v149, %v842
  %v844 = vpop.f32.mrb[0].mxu0
  %845 = vmatprep.mubr.f32.mxu0 0.0
  %846 = vmatmul.mubr.f32.gmra.mrb[0].mxu0 %v300
  %v847 = vpop.f32.mrb[0].mxu0
  %v848 = vadd.f32 %v149, %v847
  %v849 = vpop.f32.mrb[0].mxu0
  %850 = vmatprep.mubr.f32.mxu0 0.0
  %851 = vmatmul.mubr.f32.gmra.mrb[0].mxu0 %v303
  %v852 = vpop.f32.mrb[0].mxu0
  %v853 = vadd.f32 %v149, %v852
  %v854 = vpop.f32.mrb[0].mxu0
  %855 = vmatprep.mubr.f32.mxu0 0.0
  %856 = vmatmul.mubr.f32.gmra.mrb[0].mxu0 %v306
  %v857 = vpop.f32.mrb[0].mxu0
  %v858 = vadd.f32 %v149, %v857
  %v859 = vpop.f32.mrb[0].mxu0
  %860 = vmatprep.mubr.f32.mxu0 0.0
  %861 = vmatmul.mubr.f32.gmra.mrb[0].mxu0 %v309
  %v862 = vpop.f32.mrb[0].mxu0
  %v863 = vadd.f32 %v149, %v862
  %v864 = vpop.f32.mrb[0].mxu0
  %865 = vmatprep.mubr.f32.mxu0 0.0
  %866 = vmatmul.mubr.f32.gmra.mrb[0].mxu0 %v312
  %v867 = vpop.f32.mrb[0].mxu0
  %v868 = vadd.f32 %v149, %v867
  %v869 = vpop.f32.mrb[0].mxu0
  %870 = vmatprep.mubr.f32.mxu0 0.0
  %871 = vmatmul.mubr.f32.gmra.mrb[0].mxu0 %v315
  %v872 = vpop.f32.mrb[0].mxu0
  %v873 = vadd.f32 %v149, %v872
  %v874 = vpop.f32.mrb[0].mxu0
  %875 = vmatprep.mubr.f32.mxu0 0.0
  %876 = vmatmul.mubr.f32.gmra.mrb[0].mxu0 %v318
  %v877 = vpop.f32.mrb[0].mxu0
  %v878 = vadd.f32 %v149, %v877
  %v879 = vpop.f32.mrb[0].mxu0
  %880 = vmatprep.mubr.f32.mxu0 0.0
  %881 = vmatmul.mubr.f32.gmra.mrb[0].mxu0 %v321
  %v882 = vpop.f32.mrb[0].mxu0
  %v883 = vadd.f32 %v149, %v882
  %v884 = vpop.f32.mrb[0].mxu0
  %885 = vmatprep.mubr.f32.mxu0 0.0
  %886 = vmatmul.mubr.f32.gmra.mrb[0].mxu0 %v324
  %v887 = vpop.f32.mrb[0].mxu0
  %v888 = vadd.f32 %v149, %v887
  %v889 = vpop.f32.mrb[0].mxu0
  %890 = vmatprep.mubr.f32.mxu0 0.0
  %891 = vmatmul.mubr.f32.gmra.mrb[0].mxu0 %v327
  %v892 = vpop.f32.mrb[0].mxu0
  %v893 = vadd.f32 %v149, %v892
  %v894 = vpop.f32.mrb[0].mxu0
  %895 = vmatprep.mubr.f32.mxu0 0.0
  %896 = vmatmul.mubr.f32.gmra.mrb[0].mxu0 %v330
  %v897 = vpop.f32.mrb[0].mxu0
  %v898 = vadd.f32 %v149, %v897
  %v899 = vpop.f32.mrb[0].mxu0
  %900 = vmatprep.mubr.f32.mxu0 0.0
  %901 = vmatmul.mubr.f32.gmra.mrb[0].mxu0 %v333
  %v902 = vpop.f32.mrb[0].mxu0
  %v903 = vadd.f32 %v149, %v902
  %v904 = vpop.f32.mrb[0].mxu0
  %905 = vmatprep.mubr.f32.mxu0 0.0
  %906 = vmatmul.mubr.f32.gmra.mrb[0].mxu0 %v336
  %v907 = vpop.f32.mrb[0].mxu0
  %v908 = vadd.f32 %v149, %v907
  %v909 = vpop.f32.mrb[0].mxu0
  %910 = vmatprep.mubr.f32.mxu0 0.0
  %911 = vmatmul.mubr.f32.gmra.mrb[0].mxu0 %v339
  %v912 = vpop.f32.mrb[0].mxu0
  %v913 = vadd.f32 %v149, %v912
  %v914 = vpop.f32.mrb[0].mxu0
  %915 = vmatprep.mubr.f32.mxu0 0.0
  %916 = vmatmul.mubr.f32.gmra.mrb[0].mxu0 %v342
  %v917 = vpop.f32.mrb[0].mxu0
  %v918 = vadd.f32 %v149, %v917
  %v919 = vpop.f32.mrb[0].mxu0
  %920 = vmatprep.mubr.f32.mxu0 0.0
  %921 = vmatmul.mubr.f32.gmra.mrb[0].mxu0 %v345
  %v922 = vpop.f32.mrb[0].mxu0
  %v923 = vadd.f32 %v149, %v922
  %v924 = vpop.f32.mrb[0].mxu0
  %925 = vmatprep.mubr.f32.mxu0 0.0
  %926 = vmatmul.mubr.f32.gmra.mrb[0].mxu0 %v348
  %v927 = vpop.f32.mrb[0].mxu0
  %v928 = vadd.f32 %v149, %v927
  %v929 = vpop.f32.mrb[0].mxu0
  %930 = vmatprep.mubr.f32.mxu0 0.0
  %931 = vmatmul.mubr.f32.gmra.mrb[0].mxu0 %v351
  %v932 = vpop.f32.mrb[0].mxu0
  %v933 = vadd.f32 %v149, %v932
  %v934 = vpop.f32.mrb[0].mxu0
  %935 = vmatprep.mubr.f32.mxu0 0.0
  %936 = vmatmul.mubr.f32.gmra.mrb[0].mxu0 %v354
  %v937 = vpop.f32.mrb[0].mxu0
  %v938 = vadd.f32 %v149, %v937
  %v939 = vpop.f32.mrb[0].mxu0
  %940 = vmatprep.mubr.f32.mxu0 0.0
  %941 = vmatmul.mubr.f32.gmra.mrb[0].mxu0 %v357
  %v942 = vpop.f32.mrb[0].mxu0
  %v943 = vadd.f32 %v149, %v942
  %v944 = vpop.f32.mrb[0].mxu0
  %945 = vmatprep.mubr.f32.mxu0 0.0
  %946 = vmatmul.mubr.f32.gmra.mrb[0].mxu0 %v360
  %v947 = vpop.f32.mrb[0].mxu0
  %v948 = vadd.f32 %v149, %v947
  %v949 = vpop.f32.mrb[0].mxu0
  %950 = vmatprep.mubr.f32.mxu0 0.0
  %951 = vmatmul.mubr.f32.gmra.mrb[0].mxu0 %v363
  %v952 = vpop.f32.mrb[0].mxu0
  %v953 = vadd.f32 %v149, %v952
  %v954 = vpop.f32.mrb[0].mxu0
  %955 = vmatprep.mubr.f32.mxu0 0.0
  %956 = vmatmul.mubr.f32.gmra.mrb[0].mxu0 %v366
  %v957 = vpop.f32.mrb[0].mxu0
  %v958 = vadd.f32 %v149, %v957
  %v959 = vpop.f32.mrb[0].mxu0
  %960 = vmatprep.mubr.f32.mxu0 0.0
  %961 = vmatmul.mubr.f32.gmra.mrb[0].mxu0 %v369
  %v962 = vpop.f32.mrb[0].mxu0
  %v963 = vadd.f32 %v149, %v962
  %v964 = vpop.f32.mrb[0].mxu0
  %965 = vmatprep.mubr.f32.mxu0 0.0
  %966 = vmatmul.mubr.f32.gmra.mrb[0].mxu0 %v372
  %v967 = vpop.f32.mrb[0].mxu0
  %v968 = vadd.f32 %v149, %v967
  %v969 = vpop.f32.mrb[0].mxu0
  %970 = vmatprep.mubr.f32.mxu0 0.0
  %971 = vmatmul.mubr.f32.gmra.mrb[0].mxu0 %v375
  %v972 = vpop.f32.mrb[0].mxu0
  %v973 = vadd.f32 %v149, %v972
  %v974 = vpop.f32.mrb[0].mxu0
  %975 = vmatprep.mubr.f32.mxu0 0.0
  %976 = vmatmul.mubr.f32.gmra.mrb[0].mxu0 %v378
  %v977 = vpop.f32.mrb[0].mxu0
  %v978 = vadd.f32 %v149, %v977
  %v979 = vpop.f32.mrb[0].mxu0
  %980 = vmatprep.mubr.f32.mxu0 0.0
  %981 = vmatmul.mubr.f32.gmra.mrb[0].mxu0 %v381
  %v982 = vpop.f32.mrb[0].mxu0
  %v983 = vadd.f32 %v149, %v982
  %v984 = vpop.f32.mrb[0].mxu0
  %985 = vmatprep.mubr.f32.mxu0 0.0
  %986 = vmatmul.mubr.f32.gmra.mrb[0].mxu0 %v384
  %v987 = vpop.f32.mrb[0].mxu0
  %v988 = vadd.f32 %v149, %v987
  %v989 = vpop.f32.mrb[0].mxu0
  %990 = vmatprep.mubr.f32.mxu0 0.0
  %991 = vmatmul.mubr.f32.gmra.mrb[0].mxu0 %v387
  %v992 = vpop.f32.mrb[0].mxu0
  %v993 = vadd.f32 %v149, %v992
  %v994 = vpop.f32.mrb[0].mxu0
  %995 = vmatprep.mubr.f32.mxu0 0.0
  %996 = vmatmul.mubr.f32.gmra.mrb[0].mxu0 %v390
  %v997 = vpop.f32.mrb[0].mxu0
  %v998 = vadd.f32 %v149, %v997
  %v999 = vpop.f32.mrb[0].mxu0
  %1000 = vmatprep.mubr.f32.mxu0 0.0
  %1001 = vmatmul.mubr.f32.gmra.mrb[0].mxu0 %v393
  %v1002 = vpop.f32.mrb[0].mxu0
  %v1003 = vadd.f32 %v149, %v1002
  %v1004 = vpop.f32.mrb[0].mxu0
  %1005 = vmatprep.mubr.f32.mxu0 0.0
  %1006 = vmatmul.mubr.f32.gmra.mrb[0].mxu0 %v396
  %v1007 = vpop.f32.mrb[0].mxu0
  %v1008 = vadd.f32 %v149, %v1007
  %v1009 = vpop.f32.mrb[0].mxu0
  %1010 = vmatprep.mubr.f32.mxu0 0.0
  %1011 = vmatmul.mubr.f32.gmra.mrb[0].mxu0 %v399
  %v1012 = vpop.f32.mrb[0].mxu0
  %v1013 = vadd.f32 %v149, %v1012
  %v1014 = vpop.f32.mrb[0].mxu0
  %1015 = vmatprep.mubr.f32.mxu0 0.0
  %1016 = vmatmul.mubr.f32.gmra.mrb[0].mxu0 %v402
  %v1017 = vpop.f32.mrb[0].mxu0
  %v1018 = vadd.f32 %v149, %v1017
  %v1019 = vpop.f32.mrb[0].mxu0
  %1020 = vmatprep.mubr.f32.mxu0 0.0
  %1021 = vmatmul.mubr.f32.gmra.mrb[0].mxu0 %v405
  %v1022 = vpop.f32.mrb[0].mxu0
  %v1023 = vadd.f32 %v149, %v1022
  %v1024 = vpop.f32.mrb[0].mxu0
  %1025 = vmatprep.mubr.f32.mxu0 0.0
  %1026 = vmatmul.mubr.f32.gmra.mrb[0].mxu0 %v408
  %v1027 = vpop.f32.mrb[0].mxu0
  %v1028 = vadd.f32 %v149, %v1027
  %v1029 = vpop.f32.mrb[0].mxu0
  %1030 = vmatprep.mubr.f32.mxu0 0.0
  %1031 = vmatmul.mubr.f32.gmra.mrb[0].mxu0 %v411
  %v1032 = vpop.f32.mrb[0].mxu0
  %v1033 = vadd.f32 %v149, %v1032
  %v1034 = vpop.f32.mrb[0].mxu0
  %1035 = vmatprep.mubr.f32.mxu0 0.0
  %1036 = vmatmul.mubr.f32.gmra.mrb[0].mxu0 %v414
  %v1037 = vpop.f32.mrb[0].mxu0
  %v1038 = vadd.f32 %v149, %v1037
  %v1039 = vpop.f32.mrb[0].mxu0
  %1040 = vmatprep.mubr.f32.mxu0 0.0
  %1041 = vmatmul.mubr.f32.gmra.mrb[0].mxu0 %v417
  %v1042 = vpop.f32.mrb[0].mxu0
  %v1043 = vadd.f32 %v149, %v1042
  %v1044 = vpop.f32.mrb[0].mxu0
  %1045 = vmatprep.mubr.f32.mxu0 0.0
  %1046 = vmatmul.mubr.f32.gmra.mrb[0].mxu0 %v420
  %v1047 = vpop.f32.mrb[0].mxu0
  %v1048 = vadd.f32 %v149, %v1047
  %v1049 = vpop.f32.mrb[0].mxu0
  %1050 = vmatprep.mubr.f32.mxu0 0.0
  %1051 = vmatmul.mubr.f32.gmra.mrb[0].mxu0 %v423
  %v1052 = vpop.f32.mrb[0].mxu0
  %v1053 = vadd.f32 %v149, %v1052
  %v1054 = vpop.f32.mrb[0].mxu0
  %1055 = vmatprep.mubr.f32.mxu0 0.0
  %1056 = vmatmul.mubr.f32.gmra.mrb[0].mxu0 %v426
  %v1057 = vpop.f32.mrb[0].mxu0
  %v1058 = vadd.f32 %v149, %v1057
  %v1059 = vpop.f32.mrb[0].mxu0
  %1060 = vmatprep.mubr.f32.mxu0 0.0
  %1061 = vmatmul.mubr.f32.gmra.mrb[0].mxu0 %v429
  %v1062 = vpop.f32.mrb[0].mxu0
  %v1063 = vadd.f32 %v149, %v1062
  %v1064 = vpop.f32.mrb[0].mxu0
  %1065 = vmatprep.mubr.f32.mxu0 0.0
  %1066 = vmatmul.mubr.f32.gmra.mrb[0].mxu0 %v432
  %v1067 = vpop.f32.mrb[0].mxu0
  %v1068 = vadd.f32 %v149, %v1067
  %v1069 = vpop.f32.mrb[0].mxu0
  %1070 = vmatprep.mubr.f32.mxu0 0.0
  %1071 = vmatmul.mubr.f32.gmra.mrb[0].mxu0 %v435
  %v1072 = vpop.f32.mrb[0].mxu0
  %v1073 = vadd.f32 %v149, %v1072
  %v1074 = vpop.f32.mrb[0].mxu0
  %1075 = vmatprep.mubr.f32.mxu0 0.0
  %1076 = vmatmul.mubr.f32.gmra.mrb[0].mxu0 %v438
  %v1077 = vpop.f32.mrb[0].mxu0
  %v1078 = vadd.f32 %v149, %v1077
  %v1079 = vpop.f32.mrb[0].mxu0
  %1080 = vmatprep.mubr.f32.mxu0 0.0
  %1081 = vmatmul.mubr.f32.gmra.mrb[0].mxu0 %v441
  %v1082 = vpop.f32.mrb[0].mxu0
  %v1083 = vadd.f32 %v149, %v1082
  %v1084 = vpop.f32.mrb[0].mxu0
  %1085 = vmatprep.mubr.f32.mxu0 0.0
  %1086 = vmatmul.mubr.f32.gmra.mrb[0].mxu0 %v444
  %v1087 = vpop.f32.mrb[0].mxu0
  %v1088 = vadd.f32 %v149, %v1087
  %v1089 = vpop.f32.mrb[0].mxu0
  %1090 = vmatprep.mubr.f32.mxu0 0.0
  %1091 = vmatmul.mubr.f32.gmra.mrb[0].mxu0 %v447
  %v1092 = vpop.f32.mrb[0].mxu0
  %v1093 = vadd.f32 %v149, %v1092
  %v1094 = vpop.f32.mrb[0].mxu0
  %1095 = vmatprep.mubr.f32.mxu0 0.0
  %1096 = vmatmul.mubr.f32.gmra.mrb[0].mxu0 %v450
  %v1097 = vpop.f32.mrb[0].mxu0
  %v1098 = vadd.f32 %v149, %v1097
  %v1099 = vpop.f32.mrb[0].mxu0
  %1100 = vmatprep.mubr.f32.mxu0 0.0
  %1101 = vmatmul.mubr.f32.gmra.mrb[0].mxu0 %v453
  %v1102 = vpop.f32.mrb[0].mxu0
  %v1103 = vadd.f32 %v149, %v1102
  %v1104 = vpop.f32.mrb[0].mxu0
  %1105 = vmatprep.mubr.f32.mxu0 0.0
  %1106 = vmatmul.mubr.f32.gmra.mrb[0].mxu0 %v456
  %v1107 = vpop.f32.mrb[0].mxu0
  %v1108 = vadd.f32 %v149, %v1107
  %v1109 = vpop.f32.mrb[0].mxu0
  %1110 = vmatprep.mubr.f32.mxu0 0.0
  %1111 = vmatmul.mubr.f32.gmra.mrb[0].mxu0 %v459
  %v1112 = vpop.f32.mrb[0].mxu0
  %v1113 = vadd.f32 %v149, %v1112
  %v1114 = vpop.f32.mrb[0].mxu0
  %1115 = vmatprep.mubr.f32.mxu0 0.0
  %1116 = vmatmul.mubr.f32.gmra.mrb[0].mxu0 %v462
  %v1117 = vpop.f32.mrb[0].mxu0
  %v1118 = vadd.f32 %v149, %v1117
  %v1119 = vpop.f32.mrb[0].mxu0
  %1120 = vmatprep.mubr.f32.mxu0 0.0
  %1121 = vmatmul.mubr.f32.gmra.mrb[0].mxu0 %v465
  %v1122 = vpop.f32.mrb[0].mxu0
  %v1123 = vadd.f32 %v149, %v1122
  %v1124 = vpop.f32.mrb[0].mxu0
  %1125 = vmatprep.mubr.f32.mxu0 0.0
  %1126 = vmatmul.mubr.f32.gmra.mrb[0].mxu0 %v468
  %v1127 = vpop.f32.mrb[0].mxu0
  %v1128 = vadd.f32 %v149, %v1127
  %v1129 = vpop.f32.mrb[0].mxu0
  %1130 = vmatprep.mubr.f32.mxu0 0.0
  %1131 = vmatmul.mubr.f32.gmra.mrb[0].mxu0 %v471
  %v1132 = vpop.f32.mrb[0].mxu0
  %v1133 = vadd.f32 %v149, %v1132
  %v1134 = vpop.f32.mrb[0].mxu0
  %1135 = vmatprep.mubr.f32.mxu0 0.0
  %1136 = vmatmul.mubr.f32.gmra.mrb[0].mxu0 %v474
  %v1137 = vpop.f32.mrb[0].mxu0
  %v1138 = vadd.f32 %v149, %v1137
  %v1139 = vpop.f32.mrb[0].mxu0
  %1140 = vmatprep.mubr.f32.mxu0 0.0
  %1141 = vmatmul.mubr.f32.gmra.mrb[0].mxu0 %v477
  %v1142 = vpop.f32.mrb[0].mxu0
  %v1143 = vadd.f32 %v149, %v1142
  %v1144 = vpop.f32.mrb[0].mxu0
  %1145 = vmatprep.mubr.f32.mxu0 0.0
  %1146 = vmatmul.mubr.f32.gmra.mrb[0].mxu0 %v480
  %v1147 = vpop.f32.mrb[0].mxu0
  %v1148 = vadd.f32 %v149, %v1147
  %v1149 = vpop.f32.mrb[0].mxu0
  %1150 = vmatprep.mubr.f32.mxu0 0.0
  %1151 = vmatmul.mubr.f32.gmra.mrb[0].mxu0 %v483
  %v1152 = vpop.f32.mrb[0].mxu0
  %v1153 = vadd.f32 %v149, %v1152
  %v1154 = vpop.f32.mrb[0].mxu0
  %1155 = vmatprep.mubr.f32.mxu0 0.0
  %1156 = vmatmul.mubr.f32.gmra.mrb[0].mxu0 %v486
  %v1157 = vpop.f32.mrb[0].mxu0
  %v1158 = vadd.f32 %v149, %v1157
  %v1159 = vpop.f32.mrb[0].mxu0
  %1160 = vmatprep.mubr.f32.mxu0 0.0
  %1161 = vmatmul.mubr.f32.gmra.mrb[0].mxu0 %v489
  %v1162 = vpop.f32.mrb[0].mxu0
  %v1163 = vadd.f32 %v149, %v1162
  %v1164 = vpop.f32.mrb[0].mxu0
  %1165 = vmatprep.mubr.f32.mxu0 0.0
  %1166 = vmatmul.mubr.f32.gmra.mrb[0].mxu0 %v492
  %v1167 = vpop.f32.mrb[0].mxu0
  %v1168 = vadd.f32 %v149, %v1167
  %v1169 = vpop.f32.mrb[0].mxu0
  %1170 = vmatprep.mubr.f32.mxu0 0.0
  %1171 = vmatmul.mubr.f32.gmra.mrb[0].mxu0 %v495
  %v1172 = vpop.f32.mrb[0].mxu0
  %v1173 = vadd.f32 %v149, %v1172
  %v1174 = vpop.f32.mrb[0].mxu0
  %1175 = vmatprep.mubr.f32.mxu0 0.0
  %1176 = vmatmul.mubr.f32.gmra.mrb[0].mxu0 %v498
  %v1177 = vpop.f32.mrb[0].mxu0
  %v1178 = vadd.f32 %v149, %v1177
  %v1179 = vpop.f32.mrb[0].mxu0
  %1180 = vmatprep.mubr.f32.mxu0 0.0
  %1181 = vmatmul.mubr.f32.gmra.mrb[0].mxu0 %v501
  %v1182 = vpop.f32.mrb[0].mxu0
  %v1183 = vadd.f32 %v149, %v1182
  %v1184 = vpop.f32.mrb[0].mxu0
  %1185 = vmatprep.mubr.f32.mxu0 0.0
  %1186 = vmatmul.mubr.f32.gmra.mrb[0].mxu0 %v504
  %v1187 = vpop.f32.mrb[0].mxu0
  %v1188 = vadd.f32 %v149, %v1187
  %v1189 = vpop.f32.mrb[0].mxu0
  %1190 = vmatprep.mubr.f32.mxu0 0.0
  %1191 = vmatmul.mubr.f32.gmra.mrb[0].mxu0 %v507
  %v1192 = vpop.f32.mrb[0].mxu0
  %v1193 = vadd.f32 %v149, %v1192
  %v1194 = vpop.f32.mrb[0].mxu0
  %1195 = vmatprep.mubr.f32.mxu0 0.0
  %1196 = vmatmul.mubr.f32.gmra.mrb[0].mxu0 %v510
  %v1197 = vpop.f32.mrb[0].mxu0
  %v1198 = vadd.f32 %v149, %v1197
  %v1199 = vpop.f32.mrb[0].mxu0
  %1200 = vmatprep.mubr.f32.mxu0 0.0
  %1201 = vmatmul.mubr.f32.gmra.mrb[0].mxu0 %v513
  %v1202 = vpop.f32.mrb[0].mxu0
  %v1203 = vadd.f32 %v149, %v1202
  %v1204 = vpop.f32.mrb[0].mxu0
  %1205 = vmatprep.mubr.f32.mxu0 0.0
  %1206 = vmatmul.mubr.f32.gmra.mrb[0].mxu0 %v516
  %v1207 = vpop.f32.mrb[0].mxu0
  %v1208 = vadd.f32 %v149, %v1207
  %v1209 = vpop.f32.mrb[0].mxu0
  %1210 = vmatprep.mubr.f32.mxu0 0.0
  %1211 = vmatmul.mubr.f32.gmra.mrb[0].mxu0 %v519
  %v1212 = vpop.f32.mrb[0].mxu0
  %v1213 = vadd.f32 %v149, %v1212
  %v1214 = vpop.f32.mrb[0].mxu0
  %1215 = vmatprep.mubr.f32.mxu0 0.0
  %1216 = vmatmul.mubr.f32.gmra.mrb[0].mxu0 %v522
  %v1217 = vpop.f32.mrb[0].mxu0
  %v1218 = vadd.f32 %v149, %v1217
  %v1219 = vpop.f32.mrb[0].mxu0
  %1220 = vmatprep.mubr.f32.mxu0 0.0
  %1221 = vmatmul.mubr.f32.gmra.mrb[0].mxu0 %v525
  %v1222 = vpop.f32.mrb[0].mxu0
  %v1223 = vadd.f32 %v149, %v1222
  %v1224 = vpop.f32.mrb[0].mxu0
  %1225 = vmatprep.mubr.f32.mxu0 0.0
  %1226 = vmatmul.mubr.f32.gmra.mrb[0].mxu0 %v528
  %v1227 = vpop.f32.mrb[0].mxu0
  %v1228 = vadd.f32 %v149, %v1227
  %v1229 = vpop.f32.mrb[0].mxu0
  %1230 = vmatprep.mubr.f32.mxu0 0.0
  %1231 = vmatmul.mubr.f32.gmra.mrb[0].mxu0 %v531
  %v1232 = vpop.f32.mrb[0].mxu0
  %v1233 = vadd.f32 %v149, %v1232
  %v1234 = vpop.f32.mrb[0].mxu0
  %1235 = vmatprep.mubr.f32.mxu0 0.0
  %1236 = vmatmul.mubr.f32.gmra.mrb[0].mxu0 %v534
  %v1237 = vpop.f32.mrb[0].mxu0
  %v1238 = vadd.f32 %v149, %v1237
  %v1239 = vpop.f32.mrb[0].mxu0
  %1240 = vdwg.mxu0
  %vm1241 = vcmask 392192
  %1242 = vst.msk [vmem:[%s3] sm:$0xff] %vm1241, %v603
  %1243 = vst.msk [vmem:[%s3 + $0x8] sm:$0xff] %vm1241, %v608
  %1244 = vst.msk [vmem:[%s3 + $0x10] sm:$0xff] %vm1241, %v613
  %1245 = vst.msk [vmem:[%s3 + $0x18] sm:$0xff] %vm1241, %v618
  %1246 = vst.msk [vmem:[%s3 + $0x20] sm:$0xff] %vm1241, %v623
  %1247 = vst.msk [vmem:[%s3 + $0x28] sm:$0xff] %vm1241, %v628
  %1248 = vst.msk [vmem:[%s3 + $0x30] sm:$0xff] %vm1241, %v633
  %1249 = vst.msk [vmem:[%s3 + $0x38] sm:$0xff] %vm1241, %v638
  %1250 = vst.msk [vmem:[%s3 + $0x40] sm:$0xff] %vm1241, %v643
  %1251 = vst.msk [vmem:[%s3 + $0x48] sm:$0xff] %vm1241, %v648
  %1252 = vst.msk [vmem:[%s3 + $0x50] sm:$0xff] %vm1241, %v653
  %1253 = vst.msk [vmem:[%s3 + $0x58] sm:$0xff] %vm1241, %v658
  %1254 = vst.msk [vmem:[%s3 + $0x60] sm:$0xff] %vm1241, %v663
  %1255 = vst.msk [vmem:[%s3 + $0x68] sm:$0xff] %vm1241, %v668
  %1256 = vst.msk [vmem:[%s3 + $0x70] sm:$0xff] %vm1241, %v673
  %1257 = vst.msk [vmem:[%s3 + $0x78] sm:$0xff] %vm1241, %v678
  %1258 = vst.msk [vmem:[%s3 + $0x80] sm:$0xff] %vm1241, %v683
  %1259 = vst.msk [vmem:[%s3 + $0x88] sm:$0xff] %vm1241, %v688
  %1260 = vst.msk [vmem:[%s3 + $0x90] sm:$0xff] %vm1241, %v693
  %1261 = vst.msk [vmem:[%s3 + $0x98] sm:$0xff] %vm1241, %v698
  %1262 = vst.msk [vmem:[%s3 + $0xa0] sm:$0xff] %vm1241, %v703
  %1263 = vst.msk [vmem:[%s3 + $0xa8] sm:$0xff] %vm1241, %v708
  %1264 = vst.msk [vmem:[%s3 + $0xb0] sm:$0xff] %vm1241, %v713
  %1265 = vst.msk [vmem:[%s3 + $0xb8] sm:$0xff] %vm1241, %v718
  %1266 = vst.msk [vmem:[%s3 + $0xc0] sm:$0xff] %vm1241, %v723
  %1267 = vst.msk [vmem:[%s3 + $0xc8] sm:$0xff] %vm1241, %v728
  %1268 = vst.msk [vmem:[%s3 + $0xd0] sm:$0xff] %vm1241, %v733
  %1269 = vst.msk [vmem:[%s3 + $0xd8] sm:$0xff] %vm1241, %v738
  %1270 = vst.msk [vmem:[%s3 + $0xe0] sm:$0xff] %vm1241, %v743
  %1271 = vst.msk [vmem:[%s3 + $0xe8] sm:$0xff] %vm1241, %v748
  %1272 = vst.msk [vmem:[%s3 + $0xf0] sm:$0xff] %vm1241, %v753
  %1273 = vst.msk [vmem:[%s3 + $0xf8] sm:$0xff] %vm1241, %v758
  %1274 = vst.msk [vmem:[%s3 + $0x100] sm:$0xff] %vm1241, %v763
  %1275 = vst.msk [vmem:[%s3 + $0x108] sm:$0xff] %vm1241, %v768
  %1276 = vst.msk [vmem:[%s3 + $0x110] sm:$0xff] %vm1241, %v773
  %1277 = vst.msk [vmem:[%s3 + $0x118] sm:$0xff] %vm1241, %v778
  %1278 = vst.msk [vmem:[%s3 + $0x120] sm:$0xff] %vm1241, %v783
  %1279 = vst.msk [vmem:[%s3 + $0x128] sm:$0xff] %vm1241, %v788
  %1280 = vst.msk [vmem:[%s3 + $0x130] sm:$0xff] %vm1241, %v793
  %1281 = vst.msk [vmem:[%s3 + $0x138] sm:$0xff] %vm1241, %v798
  %1282 = vst.msk [vmem:[%s3 + $0x140] sm:$0xff] %vm1241, %v803
  %1283 = vst.msk [vmem:[%s3 + $0x148] sm:$0xff] %vm1241, %v808
  %1284 = vst.msk [vmem:[%s3 + $0x150] sm:$0xff] %vm1241, %v813
  %1285 = vst.msk [vmem:[%s3 + $0x158] sm:$0xff] %vm1241, %v818
  %1286 = vst.msk [vmem:[%s3 + $0x160] sm:$0xff] %vm1241, %v823
  %1287 = vst.msk [vmem:[%s3 + $0x168] sm:$0xff] %vm1241, %v828
  %1288 = vst.msk [vmem:[%s3 + $0x170] sm:$0xff] %vm1241, %v833
  %1289 = vst.msk [vmem:[%s3 + $0x178] sm:$0xff] %vm1241, %v838
  %1290 = vst.msk [vmem:[%s3 + $0x180] sm:$0xff] %vm1241, %v843
  %1291 = vst.msk [vmem:[%s3 + $0x188] sm:$0xff] %vm1241, %v848
  %1292 = vst.msk [vmem:[%s3 + $0x190] sm:$0xff] %vm1241, %v853
  %1293 = vst.msk [vmem:[%s3 + $0x198] sm:$0xff] %vm1241, %v858
  %1294 = vst.msk [vmem:[%s3 + $0x1a0] sm:$0xff] %vm1241, %v863
  %1295 = vst.msk [vmem:[%s3 + $0x1a8] sm:$0xff] %vm1241, %v868
  %1296 = vst.msk [vmem:[%s3 + $0x1b0] sm:$0xff] %vm1241, %v873
  %1297 = vst.msk [vmem:[%s3 + $0x1b8] sm:$0xff] %vm1241, %v878
  %1298 = vst.msk [vmem:[%s3 + $0x1c0] sm:$0xff] %vm1241, %v883
  %1299 = vst.msk [vmem:[%s3 + $0x1c8] sm:$0xff] %vm1241, %v888
  %1300 = vst.msk [vmem:[%s3 + $0x1d0] sm:$0xff] %vm1241, %v893
  %1301 = vst.msk [vmem:[%s3 + $0x1d8] sm:$0xff] %vm1241, %v898
  %1302 = vst.msk [vmem:[%s3 + $0x1e0] sm:$0xff] %vm1241, %v903
  %1303 = vst.msk [vmem:[%s3 + $0x1e8] sm:$0xff] %vm1241, %v908
  %1304 = vst.msk [vmem:[%s3 + $0x1f0] sm:$0xff] %vm1241, %v913
  %1305 = vst.msk [vmem:[%s3 + $0x1f8] sm:$0xff] %vm1241, %v918
  %1306 = vst.msk [vmem:[%s3 + $0x200] sm:$0xff] %vm1241, %v923
  %1307 = vst.msk [vmem:[%s3 + $0x208] sm:$0xff] %vm1241, %v928
  %1308 = vst.msk [vmem:[%s3 + $0x210] sm:$0xff] %vm1241, %v933
  %1309 = vst.msk [vmem:[%s3 + $0x218] sm:$0xff] %vm1241, %v938
  %1310 = vst.msk [vmem:[%s3 + $0x220] sm:$0xff] %vm1241, %v943
  %1311 = vst.msk [vmem:[%s3 + $0x228] sm:$0xff] %vm1241, %v948
  %1312 = vst.msk [vmem:[%s3 + $0x230] sm:$0xff] %vm1241, %v953
  %1313 = vst.msk [vmem:[%s3 + $0x238] sm:$0xff] %vm1241, %v958
  %1314 = vst.msk [vmem:[%s3 + $0x240] sm:$0xff] %vm1241, %v963
  %1315 = vst.msk [vmem:[%s3 + $0x248] sm:$0xff] %vm1241, %v968
  %1316 = vst.msk [vmem:[%s3 + $0x250] sm:$0xff] %vm1241, %v973
  %1317 = vst.msk [vmem:[%s3 + $0x258] sm:$0xff] %vm1241, %v978
  %1318 = vst.msk [vmem:[%s3 + $0x260] sm:$0xff] %vm1241, %v983
  %1319 = vst.msk [vmem:[%s3 + $0x268] sm:$0xff] %vm1241, %v988
  %1320 = vst.msk [vmem:[%s3 + $0x270] sm:$0xff] %vm1241, %v993
  %1321 = vst.msk [vmem:[%s3 + $0x278] sm:$0xff] %vm1241, %v998
  %1322 = vst.msk [vmem:[%s3 + $0x280] sm:$0xff] %vm1241, %v1003
  %1323 = vst.msk [vmem:[%s3 + $0x288] sm:$0xff] %vm1241, %v1008
  %1324 = vst.msk [vmem:[%s3 + $0x290] sm:$0xff] %vm1241, %v1013
  %1325 = vst.msk [vmem:[%s3 + $0x298] sm:$0xff] %vm1241, %v1018
  %1326 = vst.msk [vmem:[%s3 + $0x2a0] sm:$0xff] %vm1241, %v1023
  %1327 = vst.msk [vmem:[%s3 + $0x2a8] sm:$0xff] %vm1241, %v1028
  %1328 = vst.msk [vmem:[%s3 + $0x2b0] sm:$0xff] %vm1241, %v1033
  %1329 = vst.msk [vmem:[%s3 + $0x2b8] sm:$0xff] %vm1241, %v1038
  %1330 = vst.msk [vmem:[%s3 + $0x2c0] sm:$0xff] %vm1241, %v1043
  %1331 = vst.msk [vmem:[%s3 + $0x2c8] sm:$0xff] %vm1241, %v1048
  %1332 = vst.msk [vmem:[%s3 + $0x2d0] sm:$0xff] %vm1241, %v1053
  %1333 = vst.msk [vmem:[%s3 + $0x2d8] sm:$0xff] %vm1241, %v1058
  %1334 = vst.msk [vmem:[%s3 + $0x2e0] sm:$0xff] %vm1241, %v1063
  %1335 = vst.msk [vmem:[%s3 + $0x2e8] sm:$0xff] %vm1241, %v1068
  %1336 = vst.msk [vmem:[%s3 + $0x2f0] sm:$0xff] %vm1241, %v1073
  %1337 = vst.msk [vmem:[%s3 + $0x2f8] sm:$0xff] %vm1241, %v1078
  %1338 = vst.msk [vmem:[%s3 + $0x300] sm:$0xff] %vm1241, %v1083
  %1339 = vst.msk [vmem:[%s3 + $0x308] sm:$0xff] %vm1241, %v1088
  %1340 = vst.msk [vmem:[%s3 + $0x310] sm:$0xff] %vm1241, %v1093
  %1341 = vst.msk [vmem:[%s3 + $0x318] sm:$0xff] %vm1241, %v1098
  %1342 = vst.msk [vmem:[%s3 + $0x320] sm:$0xff] %vm1241, %v1103
  %1343 = vst.msk [vmem:[%s3 + $0x328] sm:$0xff] %vm1241, %v1108
  %1344 = vst.msk [vmem:[%s3 + $0x330] sm:$0xff] %vm1241, %v1113
  %1345 = vst.msk [vmem:[%s3 + $0x338] sm:$0xff] %vm1241, %v1118
  %1346 = vst.msk [vmem:[%s3 + $0x340] sm:$0xff] %vm1241, %v1123
  %1347 = vst.msk [vmem:[%s3 + $0x348] sm:$0xff] %vm1241, %v1128
  %1348 = vst.msk [vmem:[%s3 + $0x350] sm:$0xff] %vm1241, %v1133
  %1349 = vst.msk [vmem:[%s3 + $0x358] sm:$0xff] %vm1241, %v1138
  %1350 = vst.msk [vmem:[%s3 + $0x360] sm:$0xff] %vm1241, %v1143
  %1351 = vst.msk [vmem:[%s3 + $0x368] sm:$0xff] %vm1241, %v1148
  %1352 = vst.msk [vmem:[%s3 + $0x370] sm:$0xff] %vm1241, %v1153
  %1353 = vst.msk [vmem:[%s3 + $0x378] sm:$0xff] %vm1241, %v1158
  %1354 = vst.msk [vmem:[%s3 + $0x380] sm:$0xff] %vm1241, %v1163
  %1355 = vst.msk [vmem:[%s3 + $0x388] sm:$0xff] %vm1241, %v1168
  %1356 = vst.msk [vmem:[%s3 + $0x390] sm:$0xff] %vm1241, %v1173
  %1357 = vst.msk [vmem:[%s3 + $0x398] sm:$0xff] %vm1241, %v1178
  %1358 = vst.msk [vmem:[%s3 + $0x3a0] sm:$0xff] %vm1241, %v1183
  %1359 = vst.msk [vmem:[%s3 + $0x3a8] sm:$0xff] %vm1241, %v1188
  %1360 = vst.msk [vmem:[%s3 + $0x3b0] sm:$0xff] %vm1241, %v1193
  %1361 = vst.msk [vmem:[%s3 + $0x3b8] sm:$0xff] %vm1241, %v1198
  %1362 = vst.msk [vmem:[%s3 + $0x3c0] sm:$0xff] %vm1241, %v1203
  %1363 = vst.msk [vmem:[%s3 + $0x3c8] sm:$0xff] %vm1241, %v1208
  %1364 = vst.msk [vmem:[%s3 + $0x3d0] sm:$0xff] %vm1241, %v1213
  %1365 = vst.msk [vmem:[%s3 + $0x3d8] sm:$0xff] %vm1241, %v1218
  %1366 = vst.msk [vmem:[%s3 + $0x3e0] sm:$0xff] %vm1241, %v1223
  %1367 = vst.msk [vmem:[%s3 + $0x3e8] sm:$0xff] %vm1241, %v1228
  %1368 = vst.msk [vmem:[%s3 + $0x3f0] sm:$0xff] %vm1241, %v1233
  %1369 = vst.msk [vmem:[%s3 + $0x3f8] sm:$0xff] %vm1241, %v1238
  // Predicated region
  $region14: #{lepe_attention_forward.2} parent=0 // pred_check
    _
  $region15: #{lepe_attention_forward.2} parent=0 // pred_check_branch
    %1371 = sbr.rel (0) target = $region17
  $region16: #{lepe_attention_forward.2} parent=0 // pred_region
    _
  $region17: #{lepe_attention_forward.2} parent=0 // pred_fallthru
    _
  // Predicated region
  $region18: #{lepe_attention_forward.2} parent=0 // pred_check
    _
  $region19: #{lepe_attention_forward.2} parent=0 // pred_check_branch
    %1373 = sbr.rel (0) target = $region21
  $region20: #{lepe_attention_forward.2} parent=0 // pred_region
    _
  $region21: #{lepe_attention_forward.2} parent=0 // pred_fallthru
    _

// kernel: lepe_attention_forward.3
$region0: #{lepe_attention_forward.3}
  #allocation0 [shape = 'u32[]', space=smem, size = 0x4, offset = 0x4, fixed_abs, tag = 'smem constant byte address 0x4 - core index']
  #allocation1 [shape = 'u32[144,128]{1,0:T(1,128)}', space=vmem, size = 0x12000, scoped, tag = 'internal scratch']
  %s0 = inlined_call_operand.vmem [shape: f32[2,32,16,48], index: 0, kind: input, shape index: {}]
  %s1 = inlined_call_operand.vmem [shape: f32[2,32,16,16], index: 1, kind: input, shape index: {}]
  %s2 = inlined_call_operand.vmem [shape: f32[2,32,16,16], index: 2, kind: output, shape index: {}]
  %s3 = sld [smem:[#allocation0]]
  $region151: #{lepe_attention_forward.3} parent=0
    _
  %s5 = ssub.s32 1, %s3
  %s6 = scalar_select 0, %s5, %s3
  $region1: #{lepe_attention_forward.3} parent=0
    #allocation2 [shape = 'u8[262144]{0}', space=vmem, size = 0x40000, scoped, tag = 'input window, operand 0']
    #allocation3 [shape = 'u8[262144]{0}', space=vmem, size = 0x40000, scoped, tag = 'input window, operand 1']
    #allocation4 [shape = 'u8[262144]{0}', space=vmem, size = 0x40000, scoped, tag = 'output window, operand 0']
    loop: start=0, step=1, limit=6
    $region2: #{lepe_attention_forward.3} parent=1 // loop_pre_header
      _
    $region3: #{lepe_attention_forward.3} parent=1 // loop_header
      %s8 = sphi 0, %s12
      %p9 = scmp.ge.s32.totalorder %s8, 6
      %s15 = sphi 0, %s34
      %s16 = sphi 0, %s30
      %s17 = sphi 0, %s26
      %s18 = sphi 0, %s15
      %s19 = sphi 0, %s16
      %s20 = sphi 0, %s17
      %s21 = sphi 0, %s18
      %s22 = sphi 0, %s19
      %s23 = sphi 0, %s20
      %s41 = sphi 0, %s43
      %s44 = sphi 0, %s41
      %s45 = sphi 0, %s44
      %s61 = sphi 0, %s45
      %s71 = sphi 0, %s73
      %s74 = sphi 0, %s71
      %s75 = sphi 0, %s74
      %s91 = sphi 0, %s75
      %s101 = sphi 0, %s103
      %s104 = sphi 0, %s101
      %s105 = sphi 0, %s104
      %s121 = sphi 0, %s105
    $region4: #{lepe_attention_forward.3} parent=1 // loop_header_branch
      %11 = sbr.rel (%p9) target = $region8
    $region5: #{lepe_attention_forward.3} parent=1 // loop_body
      %s13 = ssub.s32 %s8, 1
      %s14 = ssub.s32 %s8, 2
      %s24 = sadd.s32 1, %s17
      %p25 = scmp.ge.s32.totalorder %s24, 2
      %s26 = scalar_select %p25, 0, %s24
      %s27 = sadd.s32 1, %s16
      %s28 = scalar_select %p25, %s27, %s16
      %p29 = scmp.ge.s32.totalorder %s28, 1
      %s30 = scalar_select %p29, 0, %s28
      %s31 = sadd.s32 1, %s15
      %s32 = scalar_select %p29, %s31, %s15
      %p33 = scmp.ge.s32.totalorder %s32, 2
      %s34 = scalar_select %p33, 0, %s32
      %s35 = ssub.s32 %s15, %s34
      %s36 = ssub.s32 %s16, %s30
      %s37 = sor.u32 %s35, %s36
      %s38 = ssub.s32 %s17, %s26
      %s39 = sor.u32 %s37, %s38
      %p40 = scmp.eq.s32.totalorder %s39, 0
      %s42 = sadd.s32 %s41, 1
      %s43 = scalar_select %p40, %s41, %s42
      %p46 = pneg %p40
      %p47 = scmp.eq.s32.totalorder %s8, 3
      %p48 = por %p46, %p47
      %p49 = scmp.ne.s32.totalorder %s41, %s44
      %p50 = scmp.eq.s32.totalorder %s8, 0
      %p51 = por %p49, %p50
      %p52 = scmp.ne.s32.totalorder %s41, %s44
      %p53 = scmp.eq.s32.totalorder %s13, 3
      %p54 = por %p52, %p53
      %p55 = scmp.ne.s32.totalorder %s44, %s45
      %p56 = scmp.eq.s32.totalorder %s13, 0
      %p57 = por %p55, %p56
      %p58 = scmp.ne.s32.totalorder %s44, %s45
      %p59 = scmp.eq.s32.totalorder %s14, 3
      %p60 = por %p58, %p59
      %p62 = scmp.ne.s32.totalorder %s45, %s61
      %p63 = scmp.eq.s32.totalorder %s14, 0
      %p64 = por %p62, %p63
      %s65 = ssub.s32 %s15, %s34
      %s66 = ssub.s32 %s16, %s30
      %s67 = sor.u32 %s65, %s66
      %s68 = ssub.s32 %s17, %s26
      %s69 = sor.u32 %s67, %s68
      %p70 = scmp.eq.s32.totalorder %s69, 0
      %s72 = sadd.s32 %s71, 1
      %s73 = scalar_select %p70, %s71, %s72
      %p76 = pneg %p70
      %p77 = scmp.eq.s32.totalorder %s8, 3
      %p78 = por %p76, %p77
      %p79 = scmp.ne.s32.totalorder %s71, %s74
      %p80 = scmp.eq.s32.totalorder %s8, 0
      %p81 = por %p79, %p80
      %p82 = scmp.ne.s32.totalorder %s71, %s74
      %p83 = scmp.eq.s32.totalorder %s13, 3
      %p84 = por %p82, %p83
      %p85 = scmp.ne.s32.totalorder %s74, %s75
      %p86 = scmp.eq.s32.totalorder %s13, 0
      %p87 = por %p85, %p86
      %p88 = scmp.ne.s32.totalorder %s74, %s75
      %p89 = scmp.eq.s32.totalorder %s14, 3
      %p90 = por %p88, %p89
      %p92 = scmp.ne.s32.totalorder %s75, %s91
      %p93 = scmp.eq.s32.totalorder %s14, 0
      %p94 = por %p92, %p93
      %s95 = ssub.s32 %s15, %s34
      %s96 = ssub.s32 %s16, %s30
      %s97 = sor.u32 %s95, %s96
      %s98 = ssub.s32 %s17, %s26
      %s99 = sor.u32 %s97, %s98
      %p100 = scmp.eq.s32.totalorder %s99, 0
      %s102 = sadd.s32 %s101, 1
      %s103 = scalar_select %p100, %s101, %s102
      %p106 = pneg %p100
      %p107 = scmp.eq.s32.totalorder %s8, 3
      %p108 = por %p106, %p107
      %p109 = scmp.ne.s32.totalorder %s101, %s104
      %p110 = scmp.eq.s32.totalorder %s8, 0
      %p111 = por %p109, %p110
      %p112 = scmp.ne.s32.totalorder %s101, %s104
      %p113 = scmp.eq.s32.totalorder %s13, 3
      %p114 = por %p112, %p113
      %p115 = scmp.ne.s32.totalorder %s104, %s105
      %p116 = scmp.eq.s32.totalorder %s13, 0
      %p117 = por %p115, %p116
      %p118 = scmp.ne.s32.totalorder %s104, %s105
      %p119 = scmp.eq.s32.totalorder %s14, 3
      %p120 = por %p118, %p119
      %p122 = scmp.ne.s32.totalorder %s105, %s121
      %p123 = scmp.eq.s32.totalorder %s14, 0
      %p124 = por %p122, %p123
      %p125 = scmp.le.s32.totalorder 1, %s8
      %p126 = scmp.lt.s32.totalorder %s8, 5
      %p127 = pnand %p125, %p126
      %p128 = pneg %p127
      // Predicated region
      $region9: #{lepe_attention_forward.3} parent=5 // pred_check
        _
      $region10: #{lepe_attention_forward.3} parent=5 // pred_check_branch
        %130 = sbr.rel (%p127) target = $region12
      $region11: #{lepe_attention_forward.3} parent=5 // pred_region
        %s131 = ssub.s32 %s8, 1
      $region12: #{lepe_attention_forward.3} parent=5 // pred_fallthru
        _
      %p132 = scmp.lt.s32.totalorder %s8, 4
      // Predicated region
      $region13: #{lepe_attention_forward.3} parent=5 // pred_check
        %p133 = pneg %p132
      $region14: #{lepe_attention_forward.3} parent=5 // pred_check_branch
        %135 = sbr.rel (%p133) target = $region16
      $region15: #{lepe_attention_forward.3} parent=5 // pred_region
        // Predicated region
        $region17: #{lepe_attention_forward.3} parent=15 // pred_check
          %p136 = pneg %p51
        $region18: #{lepe_attention_forward.3} parent=15 // pred_check_branch
          %138 = sbr.rel (%p136) target = $region20
        $region19: #{lepe_attention_forward.3} parent=15 // pred_region
          %s139 = sand.u32 %s41, 1
          %s140 = sand.u32 %s41, 1
          %s141 = smul.addr %s140, 256
          %s142 = scalar_lea.vmem [#allocation2], %s141
          %s143 = smul.u32 32, %s16
          %s144 = smul.addr %s143, 2
          %s145 = sadd.s32 %s17, %s144
          %s146 = smul.addr %s15, 64
          %s147 = sadd.s32 %s145, %s146
          %s148 = smul.addr %s147, 8
          %s149 = scalar_lea.vmem %s0, %s148
          // Predicated region
          $region21: #{lepe_attention_forward.3} parent=19 // pred_check
            _
          $region22: #{lepe_attention_forward.3} parent=19 // pred_check_branch
            %151 = sbr.rel (0) target = $region24
          $region23: #{lepe_attention_forward.3} parent=19 // pred_region
            // Predicated region
            $region25: #{lepe_attention_forward.3} parent=23 // pred_check
              _
            $region26: #{lepe_attention_forward.3} parent=23 // pred_check_branch
              %153 = sbr.rel (0) target = $region28
            $region27: #{lepe_attention_forward.3} parent=23 // pred_region
              // Predicated region
              $region40: #{lepe_attention_forward.3} parent=27 // pred_check
                _
              $region41: #{lepe_attention_forward.3} parent=27 // pred_check_branch
                %230 = sbr.rel (0) target = $region43
              $region42: #{lepe_attention_forward.3} parent=27 // pred_region
                loop: start=0, step=1, limit=1
                $region44: #{lepe_attention_forward.3} parent=42 // loop_pre_header
                  _
                $region45: #{lepe_attention_forward.3} parent=42 // loop_header
                  %s232 = sphi 0, %s236
                  %p233 = scmp.ge.s32.totalorder %s232, 1
                  %s237 = sphi %s149, %s149
                  %s238 = sphi %s142, %s142
                $region46: #{lepe_attention_forward.3} parent=42 // loop_header_branch
                  %235 = sbr.rel (%p233) target = $region50
                $region47: #{lepe_attention_forward.3} parent=42 // loop_body
                  %v239 = vld [vmem:[%s237] sm:$0xff]
                  %240 = vst [vmem:[%s238] sm:$0xff] %v239
                  %v241 = vld [vmem:[%s237 + $0x10] sm:$0xff]
                  %242 = vst [vmem:[%s238 + $0x8] sm:$0xff] %v241
                  %v243 = vld [vmem:[%s237 + $0x20] sm:$0xff]
                  %244 = vst [vmem:[%s238 + $0x10] sm:$0xff] %v243
                  %v245 = vld [vmem:[%s237 + $0x30] sm:$0xff]
                  %246 = vst [vmem:[%s238 + $0x18] sm:$0xff] %v245
                  %v247 = vld [vmem:[%s237 + $0x40] sm:$0xff]
                  %248 = vst [vmem:[%s238 + $0x20] sm:$0xff] %v247
                  %v249 = vld [vmem:[%s237 + $0x50] sm:$0xff]
                  %250 = vst [vmem:[%s238 + $0x28] sm:$0xff] %v249
                  %v251 = vld [vmem:[%s237 + $0x60] sm:$0xff]
                  %252 = vst [vmem:[%s238 + $0x30] sm:$0xff] %v251
                  %v253 = vld [vmem:[%s237 + $0x70] sm:$0xff]
                  %254 = vst [vmem:[%s238 + $0x38] sm:$0xff] %v253
                  %v255 = vld [vmem:[%s237 + $0x80] sm:$0xff]
                  %256 = vst [vmem:[%s238 + $0x40] sm:$0xff] %v255
                  %v257 = vld [vmem:[%s237 + $0x90] sm:$0xff]
                  %258 = vst [vmem:[%s238 + $0x48] sm:$0xff] %v257
                  %v259 = vld [vmem:[%s237 + $0xa0] sm:$0xff]
                  %260 = vst [vmem:[%s238 + $0x50] sm:$0xff] %v259
                  %v261 = vld [vmem:[%s237 + $0xb0] sm:$0xff]
                  %262 = vst [vmem:[%s238 + $0x58] sm:$0xff] %v261
                  %v263 = vld [vmem:[%s237 + $0xc0] sm:$0xff]
                  %264 = vst [vmem:[%s238 + $0x60] sm:$0xff] %v263
                  %v265 = vld [vmem:[%s237 + $0xd0] sm:$0xff]
                  %266 = vst [vmem:[%s238 + $0x68] sm:$0xff] %v265
                  %v267 = vld [vmem:[%s237 + $0xe0] sm:$0xff]
                  %268 = vst [vmem:[%s238 + $0x70] sm:$0xff] %v267
                  %v269 = vld [vmem:[%s237 + $0xf0] sm:$0xff]
                  %270 = vst [vmem:[%s238 + $0x78] sm:$0xff] %v269
                  %v271 = vld [vmem:[%s237 + $0x100] sm:$0xff]
                  %272 = vst [vmem:[%s238 + $0x80] sm:$0xff] %v271
                  %v273 = vld [vmem:[%s237 + $0x110] sm:$0xff]
                  %274 = vst [vmem:[%s238 + $0x88] sm:$0xff] %v273
                  %v275 = vld [vmem:[%s237 + $0x120] sm:$0xff]
                  %276 = vst [vmem:[%s238 + $0x90] sm:$0xff] %v275
                  %v277 = vld [vmem:[%s237 + $0x130] sm:$0xff]
                  %278 = vst [vmem:[%s238 + $0x98] sm:$0xff] %v277
                  %v279 = vld [vmem:[%s237 + $0x140] sm:$0xff]
                  %280 = vst [vmem:[%s238 + $0xa0] sm:$0xff] %v279
                  %v281 = vld [vmem:[%s237 + $0x150] sm:$0xff]
                  %282 = vst [vmem:[%s238 + $0xa8] sm:$0xff] %v281
                  %v283 = vld [vmem:[%s237 + $0x160] sm:$0xff]
                  %284 = vst [vmem:[%s238 + $0xb0] sm:$0xff] %v283
                  %v285 = vld [vmem:[%s237 + $0x170] sm:$0xff]
                  %286 = vst [vmem:[%s238 + $0xb8] sm:$0xff] %v285
                  %v287 = vld [vmem:[%s237 + $0x180] sm:$0xff]
                  %288 = vst [vmem:[%s238 + $0xc0] sm:$0xff] %v287
                  %v289 = vld [vmem:[%s237 + $0x190] sm:$0xff]
                  %290 = vst [vmem:[%s238 + $0xc8] sm:$0xff] %v289
                  %v291 = vld [vmem:[%s237 + $0x1a0] sm:$0xff]
                  %292 = vst [vmem:[%s238 + $0xd0] sm:$0xff] %v291
                  %v293 = vld [vmem:[%s237 + $0x1b0] sm:$0xff]
                  %294 = vst [vmem:[%s238 + $0xd8] sm:$0xff] %v293
                  %v295 = vld [vmem:[%s237 + $0x1c0] sm:$0xff]
                  %296 = vst [vmem:[%s238 + $0xe0] sm:$0xff] %v295
                  %v297 = vld [vmem:[%s237 + $0x1d0] sm:$0xff]
                  %298 = vst [vmem:[%s238 + $0xe8] sm:$0xff] %v297
                  %v299 = vld [vmem:[%s237 + $0x1e0] sm:$0xff]
                  %300 = vst [vmem:[%s238 + $0xf0] sm:$0xff] %v299
                  %v301 = vld [vmem:[%s237 + $0x1f0] sm:$0xff]
                  %302 = vst [vmem:[%s238 + $0xf8] sm:$0xff] %v301
                $region48: #{lepe_attention_forward.3} parent=42 // loop_footer
                  %s236 = sadd.s32 1, %s232
                $region49: #{lepe_attention_forward.3} parent=42 // loop_footer_branch
                  %231 = sbr.rel target = $region45
                $region50: #{lepe_attention_forward.3} parent=42 // loop_exit
                  _
              $region43: #{lepe_attention_forward.3} parent=27 // pred_fallthru
                _
              // Predicated region
              $region51: #{lepe_attention_forward.3} parent=27 // pred_check
                _
              $region52: #{lepe_attention_forward.3} parent=27 // pred_check_branch
                %304 = sbr.rel target = $region54
              $region53: #{lepe_attention_forward.3} parent=27 // pred_region
                _
              $region54: #{lepe_attention_forward.3} parent=27 // pred_fallthru
                _
            $region28: #{lepe_attention_forward.3} parent=23 // pred_fallthru
              _
            // Predicated region
            $region29: #{lepe_attention_forward.3} parent=23 // pred_check
              _
            $region30: #{lepe_attention_forward.3} parent=23 // pred_check_branch
              %155 = sbr.rel target = $region32
            $region31: #{lepe_attention_forward.3} parent=23 // pred_region
              loop: start=0, step=1, limit=1
              $region33: #{lepe_attention_forward.3} parent=31 // loop_pre_header
                _
              $region34: #{lepe_attention_forward.3} parent=31 // loop_header
                %s158 = sphi 0, %s162
                %p159 = scmp.ge.s32.totalorder %s158, 1
                %s163 = sphi %s149, %s149
                %s164 = sphi %s142, %s142
              $region35: #{lepe_attention_forward.3} parent=31 // loop_header_branch
                %161 = sbr.rel (%p159) target = $region39
              $region36: #{lepe_attention_forward.3} parent=31 // loop_body
                %v165 = vld [vmem:[%s163] sm:$0xff]
                %166 = vst [vmem:[%s164] sm:$0xff] %v165
                %v167 = vld [vmem:[%s163 + $0x10] sm:$0xff]
                %168 = vst [vmem:[%s164 + $0x8] sm:$0xff] %v167
                %v169 = vld [vmem:[%s163 + $0x20] sm:$0xff]
                %170 = vst [vmem:[%s164 + $0x10] sm:$0xff] %v169
                %v171 = vld [vmem:[%s163 + $0x30] sm:$0xff]
                %172 = vst [vmem:[%s164 + $0x18] sm:$0xff] %v171
                %v173 = vld [vmem:[%s163 + $0x40] sm:$0xff]
                %174 = vst [vmem:[%s164 + $0x20] sm:$0xff] %v173
                %v175 = vld [vmem:[%s163 + $0x50] sm:$0xff]
                %176 = vst [vmem:[%s164 + $0x28] sm:$0xff] %v175
                %v177 = vld [vmem:[%s163 + $0x60] sm:$0xff]
                %178 = vst [vmem:[%s164 + $0x30] sm:$0xff] %v177
                %v179 = vld [vmem:[%s163 + $0x70] sm:$0xff]
                %180 = vst [vmem:[%s164 + $0x38] sm:$0xff] %v179
                %v181 = vld [vmem:[%s163 + $0x80] sm:$0xff]
                %182 = vst [vmem:[%s164 + $0x40] sm:$0xff] %v181
                %v183 = vld [vmem:[%s163 + $0x90] sm:$0xff]
                %184 = vst [vmem:[%s164 + $0x48] sm:$0xff] %v183
                %v185 = vld [vmem:[%s163 + $0xa0] sm:$0xff]
                %186 = vst [vmem:[%s164 + $0x50] sm:$0xff] %v185
                %v187 = vld [vmem:[%s163 + $0xb0] sm:$0xff]
                %188 = vst [vmem:[%s164 + $0x58] sm:$0xff] %v187
                %v189 = vld [vmem:[%s163 + $0xc0] sm:$0xff]
                %190 = vst [vmem:[%s164 + $0x60] sm:$0xff] %v189
                %v191 = vld [vmem:[%s163 + $0xd0] sm:$0xff]
                %192 = vst [vmem:[%s164 + $0x68] sm:$0xff] %v191
                %v193 = vld [vmem:[%s163 + $0xe0] sm:$0xff]
                %194 = vst [vmem:[%s164 + $0x70] sm:$0xff] %v193
                %v195 = vld [vmem:[%s163 + $0xf0] sm:$0xff]
                %196 = vst [vmem:[%s164 + $0x78] sm:$0xff] %v195
                %v197 = vld [vmem:[%s163 + $0x100] sm:$0xff]
                %198 = vst [vmem:[%s164 + $0x80] sm:$0xff] %v197
                %v199 = vld [vmem:[%s163 + $0x110] sm:$0xff]
                %200 = vst [vmem:[%s164 + $0x88] sm:$0xff] %v199
                %v201 = vld [vmem:[%s163 + $0x120] sm:$0xff]
                %202 = vst [vmem:[%s164 + $0x90] sm:$0xff] %v201
                %v203 = vld [vmem:[%s163 + $0x130] sm:$0xff]
                %204 = vst [vmem:[%s164 + $0x98] sm:$0xff] %v203
                %v205 = vld [vmem:[%s163 + $0x140] sm:$0xff]
                %206 = vst [vmem:[%s164 + $0xa0] sm:$0xff] %v205
                %v207 = vld [vmem:[%s163 + $0x150] sm:$0xff]
                %208 = vst [vmem:[%s164 + $0xa8] sm:$0xff] %v207
                %v209 = vld [vmem:[%s163 + $0x160] sm:$0xff]
                %210 = vst [vmem:[%s164 + $0xb0] sm:$0xff] %v209
                %v211 = vld [vmem:[%s163 + $0x170] sm:$0xff]
                %212 = vst [vmem:[%s164 + $0xb8] sm:$0xff] %v211
                %v213 = vld [vmem:[%s163 + $0x180] sm:$0xff]
                %214 = vst [vmem:[%s164 + $0xc0] sm:$0xff] %v213
                %v215 = vld [vmem:[%s163 + $0x190] sm:$0xff]
                %216 = vst [vmem:[%s164 + $0xc8] sm:$0xff] %v215
                %v217 = vld [vmem:[%s163 + $0x1a0] sm:$0xff]
                %218 = vst [vmem:[%s164 + $0xd0] sm:$0xff] %v217
                %v219 = vld [vmem:[%s163 + $0x1b0] sm:$0xff]
                %220 = vst [vmem:[%s164 + $0xd8] sm:$0xff] %v219
                %v221 = vld [vmem:[%s163 + $0x1c0] sm:$0xff]
                %222 = vst [vmem:[%s164 + $0xe0] sm:$0xff] %v221
                %v223 = vld [vmem:[%s163 + $0x1d0] sm:$0xff]
                %224 = vst [vmem:[%s164 + $0xe8] sm:$0xff] %v223
                %v225 = vld [vmem:[%s163 + $0x1e0] sm:$0xff]
                %226 = vst [vmem:[%s164 + $0xf0] sm:$0xff] %v225
                %v227 = vld [vmem:[%s163 + $0x1f0] sm:$0xff]
                %228 = vst [vmem:[%s164 + $0xf8] sm:$0xff] %v227
              $region37: #{lepe_attention_forward.3} parent=31 // loop_footer
                %s162 = sadd.s32 1, %s158
              $region38: #{lepe_attention_forward.3} parent=31 // loop_footer_branch
                %157 = sbr.rel target = $region34
              $region39: #{lepe_attention_forward.3} parent=31 // loop_exit
                _
            $region32: #{lepe_attention_forward.3} parent=23 // pred_fallthru
              _
          $region24: #{lepe_attention_forward.3} parent=19 // pred_fallthru
            _
          %305 = vnop
        $region20: #{lepe_attention_forward.3} parent=15 // pred_fallthru
          _
        // Predicated region
        $region55: #{lepe_attention_forward.3} parent=15 // pred_check
          %p306 = pneg %p81
        $region56: #{lepe_attention_forward.3} parent=15 // pred_check_branch
          %308 = sbr.rel (%p306) target = $region58
        $region57: #{lepe_attention_forward.3} parent=15 // pred_region
          %s309 = sand.u32 %s71, 1
          %s310 = sand.u32 %s71, 1
          %s311 = smul.addr %s310, 256
          %s312 = scalar_lea.vmem [#allocation3], %s311
          %s313 = smul.u32 32, %s16
          %s314 = smul.addr %s313, 2
          %s315 = sadd.s32 %s17, %s314
          %s316 = smul.addr %s15, 64
          %s317 = sadd.s32 %s315, %s316
          %s318 = smul.addr %s317, 8
          %s319 = scalar_lea.vmem %s1, %s318
          // Predicated region
          $region59: #{lepe_attention_forward.3} parent=57 // pred_check
            _
          $region60: #{lepe_attention_forward.3} parent=57 // pred_check_branch
            %321 = sbr.rel (0) target = $region62
          $region61: #{lepe_attention_forward.3} parent=57 // pred_region
            // Predicated region
            $region63: #{lepe_attention_forward.3} parent=61 // pred_check
              _
            $region64: #{lepe_attention_forward.3} parent=61 // pred_check_branch
              %323 = sbr.rel (0) target = $region66
            $region65: #{lepe_attention_forward.3} parent=61 // pred_region
              // Predicated region
              $region78: #{lepe_attention_forward.3} parent=65 // pred_check
                _
              $region79: #{lepe_attention_forward.3} parent=65 // pred_check_branch
                %400 = sbr.rel (0) target = $region81
              $region80: #{lepe_attention_forward.3} parent=65 // pred_region
                loop: start=0, step=1, limit=1
                $region82: #{lepe_attention_forward.3} parent=80 // loop_pre_header
                  _
                $region83: #{lepe_attention_forward.3} parent=80 // loop_header
                  %s402 = sphi 0, %s406
                  %p403 = scmp.ge.s32.totalorder %s402, 1
                  %s407 = sphi %s319, %s319
                  %s408 = sphi %s312, %s312
                $region84: #{lepe_attention_forward.3} parent=80 // loop_header_branch
                  %405 = sbr.rel (%p403) target = $region88
                $region85: #{lepe_attention_forward.3} parent=80 // loop_body
                  %v409 = vld [vmem:[%s407] sm:$0xff]
                  %410 = vst [vmem:[%s408] sm:$0xff] %v409
                  %v411 = vld [vmem:[%s407 + $0x10] sm:$0xff]
                  %412 = vst [vmem:[%s408 + $0x8] sm:$0xff] %v411
                  %v413 = vld [vmem:[%s407 + $0x20] sm:$0xff]
                  %414 = vst [vmem:[%s408 + $0x10] sm:$0xff] %v413
                  %v415 = vld [vmem:[%s407 + $0x30] sm:$0xff]
                  %416 = vst [vmem:[%s408 + $0x18] sm:$0xff] %v415
                  %v417 = vld [vmem:[%s407 + $0x40] sm:$0xff]
                  %418 = vst [vmem:[%s408 + $0x20] sm:$0xff] %v417
                  %v419 = vld [vmem:[%s407 + $0x50] sm:$0xff]
                  %420 = vst [vmem:[%s408 + $0x28] sm:$0xff] %v419
                  %v421 = vld [vmem:[%s407 + $0x60] sm:$0xff]
                  %422 = vst [vmem:[%s408 + $0x30] sm:$0xff] %v421
                  %v423 = vld [vmem:[%s407 + $0x70] sm:$0xff]
                  %424 = vst [vmem:[%s408 + $0x38] sm:$0xff] %v423
                  %v425 = vld [vmem:[%s407 + $0x80] sm:$0xff]
                  %426 = vst [vmem:[%s408 + $0x40] sm:$0xff] %v425
                  %v427 = vld [vmem:[%s407 + $0x90] sm:$0xff]
                  %428 = vst [vmem:[%s408 + $0x48] sm:$0xff] %v427
                  %v429 = vld [vmem:[%s407 + $0xa0] sm:$0xff]
                  %430 = vst [vmem:[%s408 + $0x50] sm:$0xff] %v429
                  %v431 = vld [vmem:[%s407 + $0xb0] sm:$0xff]
                  %432 = vst [vmem:[%s408 + $0x58] sm:$0xff] %v431
                  %v433 = vld [vmem:[%s407 + $0xc0] sm:$0xff]
                  %434 = vst [vmem:[%s408 + $0x60] sm:$0xff] %v433
                  %v435 = vld [vmem:[%s407 + $0xd0] sm:$0xff]
                  %436 = vst [vmem:[%s408 + $0x68] sm:$0xff] %v435
                  %v437 = vld [vmem:[%s407 + $0xe0] sm:$0xff]
                  %438 = vst [vmem:[%s408 + $0x70] sm:$0xff] %v437
                  %v439 = vld [vmem:[%s407 + $0xf0] sm:$0xff]
                  %440 = vst [vmem:[%s408 + $0x78] sm:$0xff] %v439
                  %v441 = vld [vmem:[%s407 + $0x100] sm:$0xff]
                  %442 = vst [vmem:[%s408 + $0x80] sm:$0xff] %v441
                  %v443 = vld [vmem:[%s407 + $0x110] sm:$0xff]
                  %444 = vst [vmem:[%s408 + $0x88] sm:$0xff] %v443
                  %v445 = vld [vmem:[%s407 + $0x120] sm:$0xff]
                  %446 = vst [vmem:[%s408 + $0x90] sm:$0xff] %v445
                  %v447 = vld [vmem:[%s407 + $0x130] sm:$0xff]
                  %448 = vst [vmem:[%s408 + $0x98] sm:$0xff] %v447
                  %v449 = vld [vmem:[%s407 + $0x140] sm:$0xff]
                  %450 = vst [vmem:[%s408 + $0xa0] sm:$0xff] %v449
                  %v451 = vld [vmem:[%s407 + $0x150] sm:$0xff]
                  %452 = vst [vmem:[%s408 + $0xa8] sm:$0xff] %v451
                  %v453 = vld [vmem:[%s407 + $0x160] sm:$0xff]
                  %454 = vst [vmem:[%s408 + $0xb0] sm:$0xff] %v453
                  %v455 = vld [vmem:[%s407 + $0x170] sm:$0xff]
                  %456 = vst [vmem:[%s408 + $0xb8] sm:$0xff] %v455
                  %v457 = vld [vmem:[%s407 + $0x180] sm:$0xff]
                  %458 = vst [vmem:[%s408 + $0xc0] sm:$0xff] %v457
                  %v459 = vld [vmem:[%s407 + $0x190] sm:$0xff]
                  %460 = vst [vmem:[%s408 + $0xc8] sm:$0xff] %v459
                  %v461 = vld [vmem:[%s407 + $0x1a0] sm:$0xff]
                  %462 = vst [vmem:[%s408 + $0xd0] sm:$0xff] %v461
                  %v463 = vld [vmem:[%s407 + $0x1b0] sm:$0xff]
                  %464 = vst [vmem:[%s408 + $0xd8] sm:$0xff] %v463
                  %v465 = vld [vmem:[%s407 + $0x1c0] sm:$0xff]
                  %466 = vst [vmem:[%s408 + $0xe0] sm:$0xff] %v465
                  %v467 = vld [vmem:[%s407 + $0x1d0] sm:$0xff]
                  %468 = vst [vmem:[%s408 + $0xe8] sm:$0xff] %v467
                  %v469 = vld [vmem:[%s407 + $0x1e0] sm:$0xff]
                  %470 = vst [vmem:[%s408 + $0xf0] sm:$0xff] %v469
                  %v471 = vld [vmem:[%s407 + $0x1f0] sm:$0xff]
                  %472 = vst [vmem:[%s408 + $0xf8] sm:$0xff] %v471
                $region86: #{lepe_attention_forward.3} parent=80 // loop_footer
                  %s406 = sadd.s32 1, %s402
                $region87: #{lepe_attention_forward.3} parent=80 // loop_footer_branch
                  %401 = sbr.rel target = $region83
                $region88: #{lepe_attention_forward.3} parent=80 // loop_exit
                  _
              $region81: #{lepe_attention_forward.3} parent=65 // pred_fallthru
                _
              // Predicated region
              $region89: #{lepe_attention_forward.3} parent=65 // pred_check
                _
              $region90: #{lepe_attention_forward.3} parent=65 // pred_check_branch
                %474 = sbr.rel target = $region92
              $region91: #{lepe_attention_forward.3} parent=65 // pred_region
                _
              $region92: #{lepe_attention_forward.3} parent=65 // pred_fallthru
                _
            $region66: #{lepe_attention_forward.3} parent=61 // pred_fallthru
              _
            // Predicated region
            $region67: #{lepe_attention_forward.3} parent=61 // pred_check
              _
            $region68: #{lepe_attention_forward.3} parent=61 // pred_check_branch
              %325 = sbr.rel target = $region70
            $region69: #{lepe_attention_forward.3} parent=61 // pred_region
              loop: start=0, step=1, limit=1
              $region71: #{lepe_attention_forward.3} parent=69 // loop_pre_header
                _
              $region72: #{lepe_attention_forward.3} parent=69 // loop_header
                %s328 = sphi 0, %s332
                %p329 = scmp.ge.s32.totalorder %s328, 1
                %s333 = sphi %s319, %s319
                %s334 = sphi %s312, %s312
              $region73: #{lepe_attention_forward.3} parent=69 // loop_header_branch
                %331 = sbr.rel (%p329) target = $region77
              $region74: #{lepe_attention_forward.3} parent=69 // loop_body
                %v335 = vld [vmem:[%s333] sm:$0xff]
                %336 = vst [vmem:[%s334] sm:$0xff] %v335
                %v337 = vld [vmem:[%s333 + $0x10] sm:$0xff]
                %338 = vst [vmem:[%s334 + $0x8] sm:$0xff] %v337
                %v339 = vld [vmem:[%s333 + $0x20] sm:$0xff]
                %340 = vst [vmem:[%s334 + $0x10] sm:$0xff] %v339
                %v341 = vld [vmem:[%s333 + $0x30] sm:$0xff]
                %342 = vst [vmem:[%s334 + $0x18] sm:$0xff] %v341
                %v343 = vld [vmem:[%s333 + $0x40] sm:$0xff]
                %344 = vst [vmem:[%s334 + $0x20] sm:$0xff] %v343
                %v345 = vld [vmem:[%s333 + $0x50] sm:$0xff]
                %346 = vst [vmem:[%s334 + $0x28] sm:$0xff] %v345
                %v347 = vld [vmem:[%s333 + $0x60] sm:$0xff]
                %348 = vst [vmem:[%s334 + $0x30] sm:$0xff] %v347
                %v349 = vld [vmem:[%s333 + $0x70] sm:$0xff]
                %350 = vst [vmem:[%s334 + $0x38] sm:$0xff] %v349
                %v351 = vld [vmem:[%s333 + $0x80] sm:$0xff]
                %352 = vst [vmem:[%s334 + $0x40] sm:$0xff] %v351
                %v353 = vld [vmem:[%s333 + $0x90] sm:$0xff]
                %354 = vst [vmem:[%s334 + $0x48] sm:$0xff] %v353
                %v355 = vld [vmem:[%s333 + $0xa0] sm:$0xff]
                %356 = vst [vmem:[%s334 + $0x50] sm:$0xff] %v355
                %v357 = vld [vmem:[%s333 + $0xb0] sm:$0xff]
                %358 = vst [vmem:[%s334 + $0x58] sm:$0xff] %v357
                %v359 = vld [vmem:[%s333 + $0xc0] sm:$0xff]
                %360 = vst [vmem:[%s334 + $0x60] sm:$0xff] %v359
                %v361 = vld [vmem:[%s333 + $0xd0] sm:$0xff]
                %362 = vst [vmem:[%s334 + $0x68] sm:$0xff] %v361
                %v363 = vld [vmem:[%s333 + $0xe0] sm:$0xff]
                %364 = vst [vmem:[%s334 + $0x70] sm:$0xff] %v363
                %v365 = vld [vmem:[%s333 + $0xf0] sm:$0xff]
                %366 = vst [vmem:[%s334 + $0x78] sm:$0xff] %v365
                %v367 = vld [vmem:[%s333 + $0x100] sm:$0xff]
                %368 = vst [vmem:[%s334 + $0x80] sm:$0xff] %v367
                %v369 = vld [vmem:[%s333 + $0x110] sm:$0xff]
                %370 = vst [vmem:[%s334 + $0x88] sm:$0xff] %v369
                %v371 = vld [vmem:[%s333 + $0x120] sm:$0xff]
                %372 = vst [vmem:[%s334 + $0x90] sm:$0xff] %v371
                %v373 = vld [vmem:[%s333 + $0x130] sm:$0xff]
                %374 = vst [vmem:[%s334 + $0x98] sm:$0xff] %v373
                %v375 = vld [vmem:[%s333 + $0x140] sm:$0xff]
                %376 = vst [vmem:[%s334 + $0xa0] sm:$0xff] %v375
                %v377 = vld [vmem:[%s333 + $0x150] sm:$0xff]
                %378 = vst [vmem:[%s334 + $0xa8] sm:$0xff] %v377
                %v379 = vld [vmem:[%s333 + $0x160] sm:$0xff]
                %380 = vst [vmem:[%s334 + $0xb0] sm:$0xff] %v379
                %v381 = vld [vmem:[%s333 + $0x170] sm:$0xff]
                %382 = vst [vmem:[%s334 + $0xb8] sm:$0xff] %v381
                %v383 = vld [vmem:[%s333 + $0x180] sm:$0xff]
                %384 = vst [vmem:[%s334 + $0xc0] sm:$0xff] %v383
                %v385 = vld [vmem:[%s333 + $0x190] sm:$0xff]
                %386 = vst [vmem:[%s334 + $0xc8] sm:$0xff] %v385
                %v387 = vld [vmem:[%s333 + $0x1a0] sm:$0xff]
                %388 = vst [vmem:[%s334 + $0xd0] sm:$0xff] %v387
                %v389 = vld [vmem:[%s333 + $0x1b0] sm:$0xff]
                %390 = vst [vmem:[%s334 + $0xd8] sm:$0xff] %v389
                %v391 = vld [vmem:[%s333 + $0x1c0] sm:$0xff]
                %392 = vst [vmem:[%s334 + $0xe0] sm:$0xff] %v391
                %v393 = vld [vmem:[%s333 + $0x1d0] sm:$0xff]
                %394 = vst [vmem:[%s334 + $0xe8] sm:$0xff] %v393
                %v395 = vld [vmem:[%s333 + $0x1e0] sm:$0xff]
                %396 = vst [vmem:[%s334 + $0xf0] sm:$0xff] %v395
                %v397 = vld [vmem:[%s333 + $0x1f0] sm:$0xff]
                %398 = vst [vmem:[%s334 + $0xf8] sm:$0xff] %v397
              $region75: #{lepe_attention_forward.3} parent=69 // loop_footer
                %s332 = sadd.s32 1, %s328
              $region76: #{lepe_attention_forward.3} parent=69 // loop_footer_branch
                %327 = sbr.rel target = $region72
              $region77: #{lepe_attention_forward.3} parent=69 // loop_exit
                _
            $region70: #{lepe_attention_forward.3} parent=61 // pred_fallthru
              _
          $region62: #{lepe_attention_forward.3} parent=57 // pred_fallthru
            _
          %475 = vnop
        $region58: #{lepe_attention_forward.3} parent=15 // pred_fallthru
          _
      $region16: #{lepe_attention_forward.3} parent=5 // pred_fallthru
        _
      %p476 = scmp.le.s32.totalorder 1, %s8
      %p477 = scmp.lt.s32.totalorder %s8, 5
      %p478 = pnand %p476, %p477
      %p479 = pneg %p478
      // Predicated region
      $region93: #{lepe_attention_forward.3} parent=5 // pred_check
        _
      $region94: #{lepe_attention_forward.3} parent=5 // pred_check_branch
        %481 = sbr.rel (%p478) target = $region96
      $region95: #{lepe_attention_forward.3} parent=5 // pred_region
        %s482 = ssub.s32 %s8, 1
        %s483 = sand.u32 %s44, 1
        %s484 = sand.u32 %s44, 1
        %s485 = smul.addr %s484, 256
        %s486 = scalar_lea.vmem [#allocation2], %s485
        // Predicated region
        $region97: #{lepe_attention_forward.3} parent=95 // pred_check
          %p487 = pneg %p57
        $region98: #{lepe_attention_forward.3} parent=95 // pred_check_branch
          %489 = sbr.rel (%p487) target = $region100
        $region99: #{lepe_attention_forward.3} parent=95 // pred_region
          _
        $region100: #{lepe_attention_forward.3} parent=95 // pred_fallthru
          _
        %s490 = sand.u32 %s74, 1
        %s491 = sand.u32 %s74, 1
        %s492 = smul.addr %s491, 256
        %s493 = scalar_lea.vmem [#allocation3], %s492
        // Predicated region
        $region101: #{lepe_attention_forward.3} parent=95 // pred_check
          %p494 = pneg %p87
        $region102: #{lepe_attention_forward.3} parent=95 // pred_check_branch
          %496 = sbr.rel (%p494) target = $region104
        $region103: #{lepe_attention_forward.3} parent=95 // pred_region
          _
        $region104: #{lepe_attention_forward.3} parent=95 // pred_fallthru
          _
        %s497 = sand.u32 %s44, 1
        %s498 = sand.u32 %s44, 1
        %s499 = smul.addr %s498, 256
        %s500 = scalar_lea.vmem [#allocation2], %s499
        %p501 = pneg %p57
        %p502 = pneg %p54
        %s503 = sand.u32 %s74, 1
        %s504 = sand.u32 %s74, 1
        %s505 = smul.addr %s504, 256
        %s506 = scalar_lea.vmem [#allocation3], %s505
        %p507 = pneg %p87
        %p508 = pneg %p84
        %p509 = pneg %p117
        %p510 = pneg %p114
        %s511 = sand.u32 %s104, 1
        %s512 = sand.u32 %s104, 1
        %s513 = smul.addr %s512, 256
        %s514 = scalar_lea.vmem [#allocation4], %s513
        %s515 = smul.u32 32, %s19
        %s516 = smul.u32 32, %s19
        %s517 = smul.u32 32, %s19
        %v518 = vld [vmem:[%s486] sm:$0xff]
        %v519 = vld [vmem:[%s486 + $0x8] sm:$0xff]
        %v520 = vld [vmem:[%s486 + $0x10] sm:$0xff]
        %v521 = vld [vmem:[%s486 + $0x18] sm:$0xff]
        %v522 = vld [vmem:[%s486 + $0x20] sm:$0xff]
        %v523 = vld [vmem:[%s486 + $0x28] sm:$0xff]
        %v524 = vld [vmem:[%s486 + $0x30] sm:$0xff]
        %v525 = vld [vmem:[%s486 + $0x38] sm:$0xff]
        %v526 = vld [vmem:[%s486 + $0x40] sm:$0xff]
        %v527 = vld [vmem:[%s486 + $0x48] sm:$0xff]
        %v528 = vld [vmem:[%s486 + $0x50] sm:$0xff]
        %v529 = vld [vmem:[%s486 + $0x58] sm:$0xff]
        %v530 = vld [vmem:[%s486 + $0x60] sm:$0xff]
        %v531 = vld [vmem:[%s486 + $0x68] sm:$0xff]
        %v532 = vld [vmem:[%s486 + $0x70] sm:$0xff]
        %v533 = vld [vmem:[%s486 + $0x78] sm:$0xff]
        %v534 = vld [vmem:[%s486 + $0x80] sm:$0xff]
        %v535 = vld [vmem:[%s486 + $0x88] sm:$0xff]
        %v536 = vld [vmem:[%s486 + $0x90] sm:$0xff]
        %v537 = vld [vmem:[%s486 + $0x98] sm:$0xff]
        %v538 = vld [vmem:[%s486 + $0xa0] sm:$0xff]
        %v539 = vld [vmem:[%s486 + $0xa8] sm:$0xff]
        %v540 = vld [vmem:[%s486 + $0xb0] sm:$0xff]
        %v541 = vld [vmem:[%s486 + $0xb8] sm:$0xff]
        %v542 = vld [vmem:[%s486 + $0xc0] sm:$0xff]
        %v543 = vld [vmem:[%s486 + $0xc8] sm:$0xff]
        %v544 = vld [vmem:[%s486 + $0xd0] sm:$0xff]
        %v545 = vld [vmem:[%s486 + $0xd8] sm:$0xff]
        %v546 = vld [vmem:[%s486 + $0xe0] sm:$0xff]
        %v547 = vld [vmem:[%s486 + $0xe8] sm:$0xff]
        %v548 = vld [vmem:[%s486 + $0xf0] sm:$0xff]
        %v549 = vld [vmem:[%s486 + $0xf8] sm:$0xff]
        %v550 = vld [vmem:[%s493] sm:$0xff]
        %v551 = vld [vmem:[%s493 + $0x8] sm:$0xff]
        %v552 = vld [vmem:[%s493 + $0x10] sm:$0xff]
        %v553 = vld [vmem:[%s493 + $0x18] sm:$0xff]
        %v554 = vld [vmem:[%s493 + $0x20] sm:$0xff]
        %v555 = vld [vmem:[%s493 + $0x28] sm:$0xff]
        %v556 = vld [vmem:[%s493 + $0x30] sm:$0xff]
        %v557 = vld [vmem:[%s493 + $0x38] sm:$0xff]
        %v558 = vld [vmem:[%s493 + $0x40] sm:$0xff]
        %v559 = vld [vmem:[%s493 + $0x48] sm:$0xff]
        %v560 = vld [vmem:[%s493 + $0x50] sm:$0xff]
        %v561 = vld [vmem:[%s493 + $0x58] sm:$0xff]
        %v562 = vld [vmem:[%s493 + $0x60] sm:$0xff]
        %v563 = vld [vmem:[%s493 + $0x68] sm:$0xff]
        %v564 = vld [vmem:[%s493 + $0x70] sm:$0xff]
        %v565 = vld [vmem:[%s493 + $0x78] sm:$0xff]
        %v566 = vld [vmem:[%s493 + $0x80] sm:$0xff]
        %v567 = vld [vmem:[%s493 + $0x88] sm:$0xff]
        %v568 = vld [vmem:[%s493 + $0x90] sm:$0xff]
        %v569 = vld [vmem:[%s493 + $0x98] sm:$0xff]
        %v570 = vld [vmem:[%s493 + $0xa0] sm:$0xff]
        %v571 = vld [vmem:[%s493 + $0xa8] sm:$0xff]
        %v572 = vld [vmem:[%s493 + $0xb0] sm:$0xff]
        %v573 = vld [vmem:[%s493 + $0xb8] sm:$0xff]
        %v574 = vld [vmem:[%s493 + $0xc0] sm:$0xff]
        %v575 = vld [vmem:[%s493 + $0xc8] sm:$0xff]
        %v576 = vld [vmem:[%s493 + $0xd0] sm:$0xff]
        %v577 = vld [vmem:[%s493 + $0xd8] sm:$0xff]
        %v578 = vld [vmem:[%s493 + $0xe0] sm:$0xff]
        %v579 = vld [vmem:[%s493 + $0xe8] sm:$0xff]
        %v580 = vld [vmem:[%s493 + $0xf0] sm:$0xff]
        %v581 = vld [vmem:[%s493 + $0xf8] sm:$0xff]
        %614 = vrot.lane.b32.xlu0 %v518, 96
        %v615 = vpop.permute.xlu0 %614
        %616 = vrot.lane.b32.xlu0 %v519, 96
        %v617 = vpop.permute.xlu0 %616
        %618 = vrot.lane.b32.xlu0 %v520, 96
        %v619 = vpop.permute.xlu0 %618
        %620 = vrot.lane.b32.xlu0 %v521, 96
        %v621 = vpop.permute.xlu0 %620
        %622 = vrot.lane.b32.xlu0 %v522, 96
        %v623 = vpop.permute.xlu0 %622
        %624 = vrot.lane.b32.xlu0 %v523, 96
        %v625 = vpop.permute.xlu0 %624
        %626 = vrot.lane.b32.xlu0 %v524, 96
        %v627 = vpop.permute.xlu0 %626
        %628 = vrot.lane.b32.xlu0 %v525, 96
        %v629 = vpop.permute.xlu0 %628
        %630 = vrot.lane.b32.xlu0 %v526, 96
        %v631 = vpop.permute.xlu0 %630
        %632 = vrot.lane.b32.xlu0 %v527, 96
        %v633 = vpop.permute.xlu0 %632
        %634 = vrot.lane.b32.xlu0 %v528, 96
        %v635 = vpop.permute.xlu0 %634
        %636 = vrot.lane.b32.xlu0 %v529, 96
        %v637 = vpop.permute.xlu0 %636
        %638 = vrot.lane.b32.xlu0 %v530, 96
        %v639 = vpop.permute.xlu0 %638
        %640 = vrot.lane.b32.xlu0 %v531, 96
        %v641 = vpop.permute.xlu0 %640
        %642 = vrot.lane.b32.xlu0 %v532, 96
        %v643 = vpop.permute.xlu0 %642
        %644 = vrot.lane.b32.xlu0 %v533, 96
        %v645 = vpop.permute.xlu0 %644
        %646 = vrot.lane.b32.xlu0 %v534, 96
        %v647 = vpop.permute.xlu0 %646
        %648 = vrot.lane.b32.xlu0 %v535, 96
        %v649 = vpop.permute.xlu0 %648
        %650 = vrot.lane.b32.xlu0 %v536, 96
        %v651 = vpop.permute.xlu0 %650
        %652 = vrot.lane.b32.xlu0 %v537, 96
        %v653 = vpop.permute.xlu0 %652
        %654 = vrot.lane.b32.xlu0 %v538, 96
        %v655 = vpop.permute.xlu0 %654
        %656 = vrot.lane.b32.xlu0 %v539, 96
        %v657 = vpop.permute.xlu0 %656
        %658 = vrot.lane.b32.xlu0 %v540, 96
        %v659 = vpop.permute.xlu0 %658
        %660 = vrot.lane.b32.xlu0 %v541, 96
        %v661 = vpop.permute.xlu0 %660
        %662 = vrot.lane.b32.xlu0 %v542, 96
        %v663 = vpop.permute.xlu0 %662
        %664 = vrot.lane.b32.xlu0 %v543, 96
        %v665 = vpop.permute.xlu0 %664
        %666 = vrot.lane.b32.xlu0 %v544, 96
        %v667 = vpop.permute.xlu0 %666
        %668 = vrot.lane.b32.xlu0 %v545, 96
        %v669 = vpop.permute.xlu0 %668
        %670 = vrot.lane.b32.xlu0 %v546, 96
        %v671 = vpop.permute.xlu0 %670
        %672 = vrot.lane.b32.xlu0 %v547, 96
        %v673 = vpop.permute.xlu0 %672
        %674 = vrot.lane.b32.xlu0 %v548, 96
        %v675 = vpop.permute.xlu0 %674
        %676 = vrot.lane.b32.xlu0 %v549, 96
        %v677 = vpop.permute.xlu0 %676
        %v710 = vadd.f32 %v518, %v615
        %v711 = vadd.f32 %v519, %v617
        %v712 = vadd.f32 %v520, %v619
        %v713 = vadd.f32 %v521, %v621
        %v714 = vadd.f32 %v522, %v623
        %v715 = vadd.f32 %v523, %v625
        %v716 = vadd.f32 %v524, %v627
        %v717 = vadd.f32 %v525, %v629
        %v718 = vadd.f32 %v526, %v631
        %v719 = vadd.f32 %v527, %v633
        %v720 = vadd.f32 %v528, %v635
        %v721 = vadd.f32 %v529, %v637
        %v722 = vadd.f32 %v530, %v639
        %v723 = vadd.f32 %v531, %v641
        %v724 = vadd.f32 %v532, %v643
        %v725 = vadd.f32 %v533, %v645
        %v726 = vadd.f32 %v534, %v647
        %v727 = vadd.f32 %v535, %v649
        %v728 = vadd.f32 %v536, %v651
        %v729 = vadd.f32 %v537, %v653
        %v730 = vadd.f32 %v538, %v655
        %v731 = vadd.f32 %v539, %v657
        %v732 = vadd.f32 %v540, %v659
        %v733 = vadd.f32 %v541, %v661
        %v734 = vadd.f32 %v542, %v663
        %v735 = vadd.f32 %v543, %v665
        %v736 = vadd.f32 %v544, %v667
        %v737 = vadd.f32 %v545, %v669
        %v738 = vadd.f32 %v546, %v671
        %v739 = vadd.f32 %v547, %v673
        %v740 = vadd.f32 %v548, %v675
        %v741 = vadd.f32 %v549, %v677
        %v742 = vmul.f32 %v710, 0.35355338
        %v743 = vmul.f32 %v711, 0.35355338
        %v744 = vmul.f32 %v712, 0.35355338
        %v745 = vmul.f32 %v713, 0.35355338
        %v746 = vmul.f32 %v714, 0.35355338
        %v747 = vmul.f32 %v715, 0.35355338
        %v748 = vmul.f32 %v716, 0.35355338
        %v749 = vmul.f32 %v717, 0.35355338
        %v750 = vmul.f32 %v718, 0.35355338
        %v751 = vmul.f32 %v719, 0.35355338
        %v752 = vmul.f32 %v720, 0.35355338
        %v753 = vmul.f32 %v721, 0.35355338
        %v754 = vmul.f32 %v722, 0.35355338
        %v755 = vmul.f32 %v723, 0.35355338
        %v756 = vmul.f32 %v724, 0.35355338
        %v757 = vmul.f32 %v725, 0.35355338
        %v758 = vmul.f32 %v726, 0.35355338
        %v759 = vmul.f32 %v727, 0.35355338
        %v760 = vmul.f32 %v728, 0.35355338
        %v761 = vmul.f32 %v729, 0.35355338
        %v762 = vmul.f32 %v730, 0.35355338
        %v763 = vmul.f32 %v731, 0.35355338
        %v764 = vmul.f32 %v732, 0.35355338
        %v765 = vmul.f32 %v733, 0.35355338
        %v766 = vmul.f32 %v734, 0.35355338
        %v767 = vmul.f32 %v735, 0.35355338
        %v768 = vmul.f32 %v736, 0.35355338
        %v769 = vmul.f32 %v737, 0.35355338
        %v770 = vmul.f32 %v738, 0.35355338
        %v771 = vmul.f32 %v739, 0.35355338
        %v772 = vmul.f32 %v740, 0.35355338
        %v773 = vmul.f32 %v741, 0.35355338
        %774 = vrot.lane.b32.xlu0 %v518, 112
        %v775 = vpop.permute.xlu0 %774
        %776 = vrot.lane.b32.xlu0 %v519, 112
        %v777 = vpop.permute.xlu0 %776
        %778 = vrot.lane.b32.xlu0 %v520, 112
        %v779 = vpop.permute.xlu0 %778
        %780 = vrot.lane.b32.xlu0 %v521, 112
        %v781 = vpop.permute.xlu0 %780
        %782 = vrot.lane.b32.xlu0 %v522, 112
        %v783 = vpop.permute.xlu0 %782
        %784 = vrot.lane.b32.xlu0 %v523, 112
        %v785 = vpop.permute.xlu0 %784
        %786 = vrot.lane.b32.xlu0 %v524, 112
        %v787 = vpop.permute.xlu0 %786
        %788 = vrot.lane.b32.xlu0 %v525, 112
        %v789 = vpop.permute.xlu0 %788
        %790 = vrot.lane.b32.xlu0 %v526, 112
        %v791 = vpop.permute.xlu0 %790
        %792 = vrot.lane.b32.xlu0 %v527, 112
        %v793 = vpop.permute.xlu0 %792
        %794 = vrot.lane.b32.xlu0 %v528, 112
        %v795 = vpop.permute.xlu0 %794
        %796 = vrot.lane.b32.xlu0 %v529, 112
        %v797 = vpop.permute.xlu0 %796
        %798 = vrot.lane.b32.xlu0 %v530, 112
        %v799 = vpop.permute.xlu0 %798
        %800 = vrot.lane.b32.xlu0 %v531, 112
        %v801 = vpop.permute.xlu0 %800
        %802 = vrot.lane.b32.xlu0 %v532, 112
        %v803 = vpop.permute.xlu0 %802
        %804 = vrot.lane.b32.xlu0 %v533, 112
        %v805 = vpop.permute.xlu0 %804
        %806 = vrot.lane.b32.xlu0 %v534, 112
        %v807 = vpop.permute.xlu0 %806
        %808 = vrot.lane.b32.xlu0 %v535, 112
        %v809 = vpop.permute.xlu0 %808
        %810 = vrot.lane.b32.xlu0 %v536, 112
        %v811 = vpop.permute.xlu0 %810
        %812 = vrot.lane.b32.xlu0 %v537, 112
        %v813 = vpop.permute.xlu0 %812
        %814 = vrot.lane.b32.xlu0 %v538, 112
        %v815 = vpop.permute.xlu0 %814
        %816 = vrot.lane.b32.xlu0 %v539, 112
        %v817 = vpop.permute.xlu0 %816
        %818 = vrot.lane.b32.xlu0 %v540, 112
        %v819 = vpop.permute.xlu0 %818
        %820 = vrot.lane.b32.xlu0 %v541, 112
        %v821 = vpop.permute.xlu0 %820
        %822 = vrot.lane.b32.xlu0 %v542, 112
        %v823 = vpop.permute.xlu0 %822
        %824 = vrot.lane.b32.xlu0 %v543, 112
        %v825 = vpop.permute.xlu0 %824
        %826 = vrot.lane.b32.xlu0 %v544, 112
        %v827 = vpop.permute.xlu0 %826
        %828 = vrot.lane.b32.xlu0 %v545, 112
        %v829 = vpop.permute.xlu0 %828
        %830 = vrot.lane.b32.xlu0 %v546, 112
        %v831 = vpop.permute.xlu0 %830
        %832 = vrot.lane.b32.xlu0 %v547, 112
        %v833 = vpop.permute.xlu0 %832
        %834 = vrot.lane.b32.xlu0 %v548, 112
        %v835 = vpop.permute.xlu0 %834
        %836 = vrot.lane.b32.xlu0 %v549, 112
        %v837 = vpop.permute.xlu0 %836
        %v870 = vadd.f32 %v518, %v775
        %v871 = vadd.f32 %v519, %v777
        %v872 = vadd.f32 %v520, %v779
        %v873 = vadd.f32 %v521, %v781
        %v874 = vadd.f32 %v522, %v783
        %v875 = vadd.f32 %v523, %v785
        %v876 = vadd.f32 %v524, %v787
        %v877 = vadd.f32 %v525, %v789
        %v878 = vadd.f32 %v526, %v791
        %v879 = vadd.f32 %v527, %v793
        %v880 = vadd.f32 %v528, %v795
        %v881 = vadd.f32 %v529, %v797
        %v882 = vadd.f32 %v530, %v799
        %v883 = vadd.f32 %v531, %v801
        %v884 = vadd.f32 %v532, %v803
        %v885 = vadd.f32 %v533, %v805
        %v886 = vadd.f32 %v534, %v807
        %v887 = vadd.f32 %v535, %v809
        %v888 = vadd.f32 %v536, %v811
        %v889 = vadd.f32 %v537, %v813
        %v890 = vadd.f32 %v538, %v815
        %v891 = vadd.f32 %v539, %v817
        %v892 = vadd.f32 %v540, %v819
        %v893 = vadd.f32 %v541, %v821
        %v894 = vadd.f32 %v542, %v823
        %v895 = vadd.f32 %v543, %v825
        %v896 = vadd.f32 %v544, %v827
        %v897 = vadd.f32 %v545, %v829
        %v898 = vadd.f32 %v546, %v831
        %v899 = vadd.f32 %v547, %v833
        %v900 = vadd.f32 %v548, %v835
        %v901 = vadd.f32 %v549, %v837
        %934 = vrot.lane.b32.xlu0 %v870, 112
        %v935 = vpop.permute.xlu0 %934
        %936 = vrot.lane.b32.xlu0 %v871, 112
        %v937 = vpop.permute.xlu0 %936
        %938 = vrot.lane.b32.xlu0 %v872, 112
        %v939 = vpop.permute.xlu0 %938
        %940 = vrot.lane.b32.xlu0 %v873, 112
        %v941 = vpop.permute.xlu0 %940
        %942 = vrot.lane.b32.xlu0 %v874, 112
        %v943 = vpop.permute.xlu0 %942
        %944 = vrot.lane.b32.xlu0 %v875, 112
        %v945 = vpop.permute.xlu0 %944
        %946 = vrot.lane.b32.xlu0 %v876, 112
        %v947 = vpop.permute.xlu0 %946
        %948 = vrot.lane.b32.xlu0 %v877, 112
        %v949 = vpop.permute.xlu0 %948
        %950 = vrot.lane.b32.xlu0 %v878, 112
        %v951 = vpop.permute.xlu0 %950
        %952 = vrot.lane.b32.xlu0 %v879, 112
        %v953 = vpop.permute.xlu0 %952
        %954 = vrot.lane.b32.xlu0 %v880, 112
        %v955 = vpop.permute.xlu0 %954
        %956 = vrot.lane.b32.xlu0 %v881, 112
        %v957 = vpop.permute.xlu0 %956
        %958 = vrot.lane.b32.xlu0 %v882, 112
        %v959 = vpop.permute.xlu0 %958
        %960 = vrot.lane.b32.xlu0 %v883, 112
        %v961 = vpop.permute.xlu0 %960
        %962 = vrot.lane.b32.xlu0 %v884, 112
        %v963 = vpop.permute.xlu0 %962
        %964 = vrot.lane.b32.xlu0 %v885, 112
        %v965 = vpop.permute.xlu0 %964
        %966 = vrot.lane.b32.xlu0 %v886, 112
        %v967 = vpop.permute.xlu0 %966
        %968 = vrot.lane.b32.xlu0 %v887, 112
        %v969 = vpop.permute.xlu0 %968
        %970 = vrot.lane.b32.xlu0 %v888, 112
        %v971 = vpop.permute.xlu0 %970
        %972 = vrot.lane.b32.xlu0 %v889, 112
        %v973 = vpop.permute.xlu0 %972
        %974 = vrot.lane.b32.xlu0 %v890, 112
        %v975 = vpop.permute.xlu0 %974
        %976 = vrot.lane.b32.xlu0 %v891, 112
        %v977 = vpop.permute.xlu0 %976
        %978 = vrot.lane.b32.xlu0 %v892, 112
        %v979 = vpop.permute.xlu0 %978
        %980 = vrot.lane.b32.xlu0 %v893, 112
        %v981 = vpop.permute.xlu0 %980
        %982 = vrot.lane.b32.xlu0 %v894, 112
        %v983 = vpop.permute.xlu0 %982
        %984 = vrot.lane.b32.xlu0 %v895, 112
        %v985 = vpop.permute.xlu0 %984
        %986 = vrot.lane.b32.xlu0 %v896, 112
        %v987 = vpop.permute.xlu0 %986
        %988 = vrot.lane.b32.xlu0 %v897, 112
        %v989 = vpop.permute.xlu0 %988
        %990 = vrot.lane.b32.xlu0 %v898, 112
        %v991 = vpop.permute.xlu0 %990
        %992 = vrot.lane.b32.xlu0 %v899, 112
        %v993 = vpop.permute.xlu0 %992
        %994 = vrot.lane.b32.xlu0 %v900, 112
        %v995 = vpop.permute.xlu0 %994
        %996 = vrot.lane.b32.xlu0 %v901, 112
        %v997 = vpop.permute.xlu0 %996
        %vm998 = vcmask 64512
        %v1000 = vsel %vm998, %v742, 0
        %v1003 = vsel %vm998, %v743, 0
        %v1006 = vsel %vm998, %v744, 0
        %v1009 = vsel %vm998, %v745, 0
        %v1012 = vsel %vm998, %v746, 0
        %v1015 = vsel %vm998, %v747, 0
        %v1018 = vsel %vm998, %v748, 0
        %v1021 = vsel %vm998, %v749, 0
        %v1024 = vsel %vm998, %v750, 0
        %v1027 = vsel %vm998, %v751, 0
        %v1030 = vsel %vm998, %v752, 0
        %v1033 = vsel %vm998, %v753, 0
        %v1036 = vsel %vm998, %v754, 0
        %v1039 = vsel %vm998, %v755, 0
        %v1042 = vsel %vm998, %v756, 0
        %v1045 = vsel %vm998, %v757, 0
        %v1048 = vsel %vm998, %v758, 0
        %v1051 = vsel %vm998, %v759, 0
        %v1054 = vsel %vm998, %v760, 0
        %v1057 = vsel %vm998, %v761, 0
        %v1060 = vsel %vm998, %v762, 0
        %v1063 = vsel %vm998, %v763, 0
        %v1066 = vsel %vm998, %v764, 0
        %v1069 = vsel %vm998, %v765, 0
        %v1072 = vsel %vm998, %v766, 0
        %v1075 = vsel %vm998, %v767, 0
        %v1078 = vsel %vm998, %v768, 0
        %v1081 = vsel %vm998, %v769, 0
        %v1084 = vsel %vm998, %v770, 0
        %v1087 = vsel %vm998, %v771, 0
        %v1090 = vsel %vm998, %v772, 0
        %v1093 = vsel %vm998, %v773, 0
        %v1095 = vsel %vm998, %v935, 0
        %v1097 = vsel %vm998, %v937, 0
        %v1099 = vsel %vm998, %v939, 0
        %v1101 = vsel %vm998, %v941, 0
        %v1103 = vsel %vm998, %v943, 0
        %v1105 = vsel %vm998, %v945, 0
        %v1107 = vsel %vm998, %v947, 0
        %v1109 = vsel %vm998, %v949, 0
        %v1111 = vsel %vm998, %v951, 0
        %v1113 = vsel %vm998, %v953, 0
        %v1115 = vsel %vm998, %v955, 0
        %v1117 = vsel %vm998, %v957, 0
        %v1119 = vsel %vm998, %v959, 0
        %v1121 = vsel %vm998, %v961, 0
        %v1123 = vsel %vm998, %v963, 0
        %v1125 = vsel %vm998, %v965, 0
        %v1127 = vsel %vm998, %v967, 0
        %v1129 = vsel %vm998, %v969, 0
        %v1131 = vsel %vm998, %v971, 0
        %v1133 = vsel %vm998, %v973, 0
        %v1135 = vsel %vm998, %v975, 0
        %v1137 = vsel %vm998, %v977, 0
        %v1139 = vsel %vm998, %v979, 0
        %v1141 = vsel %vm998, %v981, 0
        %v1143 = vsel %vm998, %v983, 0
        %v1145 = vsel %vm998, %v985, 0
        %v1147 = vsel %vm998, %v987, 0
        %v1149 = vsel %vm998, %v989, 0
        %v1151 = vsel %vm998, %v991, 0
        %v1153 = vsel %vm998, %v993, 0
        %v1155 = vsel %vm998, %v995, 0
        %v1157 = vsel %vm998, %v997, 0
        %1159 = vmatprep.subr.mxu0 0.0
        %1160 = vmatpush1.xpose.msra.mxu0 %v1095
        %1161 = vmatprep.subr.mxu0 0.0
        %1162 = vmatpush1.xpose.msra.mxu0 %v1097
        %1163 = vmatprep.subr.mxu0 0.0
        %1164 = vmatpush1.xpose.msra.mxu0 %v1099
        %1165 = vmatprep.subr.mxu0 0.0
        %1166 = vmatpush1.xpose.msra.mxu0 %v1101
        %1167 = vmatprep.subr.mxu0 0.0
        %1168 = vmatpush1.xpose.msra.mxu0 %v1103
        %1169 = vmatprep.subr.mxu0 0.0
        %1170 = vmatpush1.xpose.msra.mxu0 %v1105
        %1171 = vmatprep.subr.mxu0 0.0
        %1172 = vmatpush1.xpose.msra.mxu0 %v1107
        %1173 = vmatprep.subr.mxu0 0.0
        %1174 = vmatpush1.xpose.msra.mxu0 %v1109
        %1175 = vmatprep.subr.mxu0 0.0
        %1176 = vmatpush1.xpose.msra.mxu0 %v1111
        %1177 = vmatprep.subr.mxu0 0.0
        %1178 = vmatpush1.xpose.msra.mxu0 %v1113
        %1179 = vmatprep.subr.mxu0 0.0
        %1180 = vmatpush1.xpose.msra.mxu0 %v1115
        %1181 = vmatprep.subr.mxu0 0.0
        %1182 = vmatpush1.xpose.msra.mxu0 %v1117
        %1183 = vmatprep.subr.mxu0 0.0
        %1184 = vmatpush1.xpose.msra.mxu0 %v1119
        %1185 = vmatprep.subr.mxu0 0.0
        %1186 = vmatpush1.xpose.msra.mxu0 %v1121
        %1187 = vmatprep.subr.mxu0 0.0
        %1188 = vmatpush1.xpose.msra.mxu0 %v1123
        %1189 = vmatprep.subr.mxu0 0.0
        %1190 = vmatpush1.xpose.msra.mxu0 %v1125
        %1191 = vmatprep.subr.mxu0 0.0
        %1192 = vmatpush1.xpose.msra.mxu0 %v1127
        %1193 = vmatprep.subr.mxu0 0.0
        %1194 = vmatpush1.xpose.msra.mxu0 %v1129
        %1195 = vmatprep.subr.mxu0 0.0
        %1196 = vmatpush1.xpose.msra.mxu0 %v1131
        %1197 = vmatprep.subr.mxu0 0.0
        %1198 = vmatpush1.xpose.msra.mxu0 %v1133
        %1199 = vmatprep.subr.mxu0 0.0
        %1200 = vmatpush1.xpose.msra.mxu0 %v1135
        %1201 = vmatprep.subr.mxu0 0.0
        %1202 = vmatpush1.xpose.msra.mxu0 %v1137
        %1203 = vmatprep.subr.mxu0 0.0
        %1204 = vmatpush1.xpose.msra.mxu0 %v1139
        %1205 = vmatprep.subr.mxu0 0.0
        %1206 = vmatpush1.xpose.msra.mxu0 %v1141
        %1207 = vmatprep.subr.mxu0 0.0
        %1208 = vmatpush1.xpose.msra.mxu0 %v1143
        %1209 = vmatprep.subr.mxu0 0.0
        %1210 = vmatpush1.xpose.msra.mxu0 %v1145
        %1211 = vmatprep.subr.mxu0 0.0
        %1212 = vmatpush1.xpose.msra.mxu0 %v1147
        %1213 = vmatprep.subr.mxu0 0.0
        %1214 = vmatpush1.xpose.msra.mxu0 %v1149
        %1215 = vmatprep.subr.mxu0 0.0
        %1216 = vmatpush1.xpose.msra.mxu0 %v1151
        %1217 = vmatprep.subr.mxu0 0.0
        %1218 = vmatpush1.xpose.msra.mxu0 %v1153
        %1219 = vmatprep.subr.mxu0 0.0
        %1220 = vmatpush1.xpose.msra.mxu0 %v1155
        %1221 = vmatprep.subr.mxu0 0.0
        %1222 = vmatpush1.xpose.msra.mxu0 %v1157
        %1223 = vmatprep.mubr.f32.mxu0 0.0
        %1224 = vmatmul.mubr.f32.gmra.mrb[0].mxu0 %v1000
        %v1225 = vpop.f32.mrb[0].mxu0
        %v1226 = vadd.f32 0.0, %v1225
        %v1227 = vpop.f32.mrb[0].mxu0
        %v1228 = vadd.f32 0.0, %v1227
        %1229 = vmatprep.mubr.f32.mxu0 0.0
        %1230 = vmatmul.mubr.f32.gmra.mrb[0].mxu0 %v1003
        %v1231 = vpop.f32.mrb[0].mxu0
        %v1232 = vadd.f32 0.0, %v1231
        %v1233 = vpop.f32.mrb[0].mxu0
        %v1234 = vadd.f32 0.0, %v1233
        %1235 = vmatprep.mubr.f32.mxu0 0.0
        %1236 = vmatmul.mubr.f32.gmra.mrb[0].mxu0 %v1006
        %v1237 = vpop.f32.mrb[0].mxu0
        %v1238 = vadd.f32 0.0, %v1237
        %v1239 = vpop.f32.mrb[0].mxu0
        %v1240 = vadd.f32 0.0, %v1239
        %1241 = vmatprep.mubr.f32.mxu0 0.0
        %1242 = vmatmul.mubr.f32.gmra.mrb[0].mxu0 %v1009
        %v1243 = vpop.f32.mrb[0].mxu0
        %v1244 = vadd.f32 0.0, %v1243
        %v1245 = vpop.f32.mrb[0].mxu0
        %v1246 = vadd.f32 0.0, %v1245
        %1247 = vmatprep.mubr.f32.mxu0 0.0
        %1248 = vmatmul.mubr.f32.gmra.mrb[0].mxu0 %v1012
        %v1249 = vpop.f32.mrb[0].mxu0
        %v1250 = vadd.f32 0.0, %v1249
        %v1251 = vpop.f32.mrb[0].mxu0
        %v1252 = vadd.f32 0.0, %v1251
        %1253 = vmatprep.mubr.f32.mxu0 0.0
        %1254 = vmatmul.mubr.f32.gmra.mrb[0].mxu0 %v1015
        %v1255 = vpop.f32.mrb[0].mxu0
        %v1256 = vadd.f32 0.0, %v1255
        %v1257 = vpop.f32.mrb[0].mxu0
        %v1258 = vadd.f32 0.0, %v1257
        %1259 = vmatprep.mubr.f32.mxu0 0.0
        %1260 = vmatmul.mubr.f32.gmra.mrb[0].mxu0 %v1018
        %v1261 = vpop.f32.mrb[0].mxu0
        %v1262 = vadd.f32 0.0, %v1261
        %v1263 = vpop.f32.mrb[0].mxu0
        %v1264 = vadd.f32 0.0, %v1263
        %1265 = vmatprep.mubr.f32.mxu0 0.0
        %1266 = vmatmul.mubr.f32.gmra.mrb[0].mxu0 %v1021
        %v1267 = vpop.f32.mrb[0].mxu0
        %v1268 = vadd.f32 0.0, %v1267
        %v1269 = vpop.f32.mrb[0].mxu0
        %v1270 = vadd.f32 0.0, %v1269
        %1271 = vmatprep.mubr.f32.mxu0 0.0
        %1272 = vmatmul.mubr.f32.gmra.mrb[0].mxu0 %v1024
        %v1273 = vpop.f32.mrb[0].mxu0
        %v1274 = vadd.f32 0.0, %v1273
        %v1275 = vpop.f32.mrb[0].mxu0
        %v1276 = vadd.f32 0.0, %v1275
        %1277 = vmatprep.mubr.f32.mxu0 0.0
        %1278 = vmatmul.mubr.f32.gmra.mrb[0].mxu0 %v1027
        %v1279 = vpop.f32.mrb[0].mxu0
        %v1280 = vadd.f32 0.0, %v1279
        %v1281 = vpop.f32.mrb[0].mxu0
        %v1282 = vadd.f32 0.0, %v1281
        %1283 = vmatprep.mubr.f32.mxu0 0.0
        %1284 = vmatmul.mubr.f32.gmra.mrb[0].mxu0 %v1030
        %v1285 = vpop.f32.mrb[0].mxu0
        %v1286 = vadd.f32 0.0, %v1285
        %v1287 = vpop.f32.mrb[0].mxu0
        %v1288 = vadd.f32 0.0, %v1287
        %1289 = vmatprep.mubr.f32.mxu0 0.0
        %1290 = vmatmul.mubr.f32.gmra.mrb[0].mxu0 %v1033
        %v1291 = vpop.f32.mrb[0].mxu0
        %v1292 = vadd.f32 0.0, %v1291
        %v1293 = vpop.f32.mrb[0].mxu0
        %v1294 = vadd.f32 0.0, %v1293
        %1295 = vmatprep.mubr.f32.mxu0 0.0
        %1296 = vmatmul.mubr.f32.gmra.mrb[0].mxu0 %v1036
        %v1297 = vpop.f32.mrb[0].mxu0
        %v1298 = vadd.f32 0.0, %v1297
        %v1299 = vpop.f32.mrb[0].mxu0
        %v1300 = vadd.f32 0.0, %v1299
        %1301 = vmatprep.mubr.f32.mxu0 0.0
        %1302 = vmatmul.mubr.f32.gmra.mrb[0].mxu0 %v1039
        %v1303 = vpop.f32.mrb[0].mxu0
        %v1304 = vadd.f32 0.0, %v1303
        %v1305 = vpop.f32.mrb[0].mxu0
        %v1306 = vadd.f32 0.0, %v1305
        %1307 = vmatprep.mubr.f32.mxu0 0.0
        %1308 = vmatmul.mubr.f32.gmra.mrb[0].mxu0 %v1042
        %v1309 = vpop.f32.mrb[0].mxu0
        %v1310 = vadd.f32 0.0, %v1309
        %v1311 = vpop.f32.mrb[0].mxu0
        %v1312 = vadd.f32 0.0, %v1311
        %1313 = vmatprep.mubr.f32.mxu0 0.0
        %1314 = vmatmul.mubr.f32.gmra.mrb[0].mxu0 %v1045
        %v1315 = vpop.f32.mrb[0].mxu0
        %v1316 = vadd.f32 0.0, %v1315
        %v1317 = vpop.f32.mrb[0].mxu0
        %v1318 = vadd.f32 0.0, %v1317
        %1319 = vmatprep.mubr.f32.mxu0 0.0
        %1320 = vmatmul.mubr.f32.gmra.mrb[0].mxu0 %v1048
        %v1321 = vpop.f32.mrb[0].mxu0
        %v1322 = vadd.f32 0.0, %v1321
        %v1323 = vpop.f32.mrb[0].mxu0
        %v1324 = vadd.f32 0.0, %v1323
        %1325 = vmatprep.mubr.f32.mxu0 0.0
        %1326 = vmatmul.mubr.f32.gmra.mrb[0].mxu0 %v1051
        %v1327 = vpop.f32.mrb[0].mxu0
        %v1328 = vadd.f32 0.0, %v1327
        %v1329 = vpop.f32.mrb[0].mxu0
        %v1330 = vadd.f32 0.0, %v1329
        %1331 = vmatprep.mubr.f32.mxu0 0.0
        %1332 = vmatmul.mubr.f32.gmra.mrb[0].mxu0 %v1054
        %v1333 = vpop.f32.mrb[0].mxu0
        %v1334 = vadd.f32 0.0, %v1333
        %v1335 = vpop.f32.mrb[0].mxu0
        %v1336 = vadd.f32 0.0, %v1335
        %1337 = vmatprep.mubr.f32.mxu0 0.0
        %1338 = vmatmul.mubr.f32.gmra.mrb[0].mxu0 %v1057
        %v1339 = vpop.f32.mrb[0].mxu0
        %v1340 = vadd.f32 0.0, %v1339
        %v1341 = vpop.f32.mrb[0].mxu0
        %v1342 = vadd.f32 0.0, %v1341
        %1343 = vmatprep.mubr.f32.mxu0 0.0
        %1344 = vmatmul.mubr.f32.gmra.mrb[0].mxu0 %v1060
        %v1345 = vpop.f32.mrb[0].mxu0
        %v1346 = vadd.f32 0.0, %v1345
        %v1347 = vpop.f32.mrb[0].mxu0
        %v1348 = vadd.f32 0.0, %v1347
        %1349 = vmatprep.mubr.f32.mxu0 0.0
        %1350 = vmatmul.mubr.f32.gmra.mrb[0].mxu0 %v1063
        %v1351 = vpop.f32.mrb[0].mxu0
        %v1352 = vadd.f32 0.0, %v1351
        %v1353 = vpop.f32.mrb[0].mxu0
        %v1354 = vadd.f32 0.0, %v1353
        %1355 = vmatprep.mubr.f32.mxu0 0.0
        %1356 = vmatmul.mubr.f32.gmra.mrb[0].mxu0 %v1066
        %v1357 = vpop.f32.mrb[0].mxu0
        %v1358 = vadd.f32 0.0, %v1357
        %v1359 = vpop.f32.mrb[0].mxu0
        %v1360 = vadd.f32 0.0, %v1359
        %1361 = vmatprep.mubr.f32.mxu0 0.0
        %1362 = vmatmul.mubr.f32.gmra.mrb[0].mxu0 %v1069
        %v1363 = vpop.f32.mrb[0].mxu0
        %v1364 = vadd.f32 0.0, %v1363
        %v1365 = vpop.f32.mrb[0].mxu0
        %v1366 = vadd.f32 0.0, %v1365
        %1367 = vmatprep.mubr.f32.mxu0 0.0
        %1368 = vmatmul.mubr.f32.gmra.mrb[0].mxu0 %v1072
        %v1369 = vpop.f32.mrb[0].mxu0
        %v1370 = vadd.f32 0.0, %v1369
        %v1371 = vpop.f32.mrb[0].mxu0
        %v1372 = vadd.f32 0.0, %v1371
        %1373 = vmatprep.mubr.f32.mxu0 0.0
        %1374 = vmatmul.mubr.f32.gmra.mrb[0].mxu0 %v1075
        %v1375 = vpop.f32.mrb[0].mxu0
        %v1376 = vadd.f32 0.0, %v1375
        %v1377 = vpop.f32.mrb[0].mxu0
        %v1378 = vadd.f32 0.0, %v1377
        %1379 = vmatprep.mubr.f32.mxu0 0.0
        %1380 = vmatmul.mubr.f32.gmra.mrb[0].mxu0 %v1078
        %v1381 = vpop.f32.mrb[0].mxu0
        %v1382 = vadd.f32 0.0, %v1381
        %v1383 = vpop.f32.mrb[0].mxu0
        %v1384 = vadd.f32 0.0, %v1383
        %1385 = vmatprep.mubr.f32.mxu0 0.0
        %1386 = vmatmul.mubr.f32.gmra.mrb[0].mxu0 %v1081
        %v1387 = vpop.f32.mrb[0].mxu0
        %v1388 = vadd.f32 0.0, %v1387
        %v1389 = vpop.f32.mrb[0].mxu0
        %v1390 = vadd.f32 0.0, %v1389
        %1391 = vmatprep.mubr.f32.mxu0 0.0
        %1392 = vmatmul.mubr.f32.gmra.mrb[0].mxu0 %v1084
        %v1393 = vpop.f32.mrb[0].mxu0
        %v1394 = vadd.f32 0.0, %v1393
        %v1395 = vpop.f32.mrb[0].mxu0
        %v1396 = vadd.f32 0.0, %v1395
        %1397 = vmatprep.mubr.f32.mxu0 0.0
        %1398 = vmatmul.mubr.f32.gmra.mrb[0].mxu0 %v1087
        %v1399 = vpop.f32.mrb[0].mxu0
        %v1400 = vadd.f32 0.0, %v1399
        %v1401 = vpop.f32.mrb[0].mxu0
        %v1402 = vadd.f32 0.0, %v1401
        %1403 = vmatprep.mubr.f32.mxu0 0.0
        %1404 = vmatmul.mubr.f32.gmra.mrb[0].mxu0 %v1090
        %v1405 = vpop.f32.mrb[0].mxu0
        %v1406 = vadd.f32 0.0, %v1405
        %v1407 = vpop.f32.mrb[0].mxu0
        %v1408 = vadd.f32 0.0, %v1407
        %1409 = vmatprep.mubr.f32.mxu0 0.0
        %1410 = vmatmul.mubr.f32.gmra.mrb[0].mxu0 %v1093
        %v1411 = vpop.f32.mrb[0].mxu0
        %v1412 = vadd.f32 0.0, %v1411
        %v1413 = vpop.f32.mrb[0].mxu0
        %v1414 = vadd.f32 0.0, %v1413
        %1415 = vdwg.mxu0
        %v1416 = vmax.f32 %v1226, %v1228
        %1417 = vmax.xlane.f32.xlu0 %v1416
        %v1418 = vpop.xlane.xlu0 %1417
        %v1419 = vmax.f32 %v1232, %v1234
        %1420 = vmax.xlane.f32.xlu0 %v1419
        %v1421 = vpop.xlane.xlu0 %1420
        %v1422 = vmax.f32 %v1238, %v1240
        %1423 = vmax.xlane.f32.xlu0 %v1422
        %v1424 = vpop.xlane.xlu0 %1423
        %v1425 = vmax.f32 %v1244, %v1246
        %1426 = vmax.xlane.f32.xlu0 %v1425
        %v1427 = vpop.xlane.xlu0 %1426
        %v1428 = vmax.f32 %v1250, %v1252
        %1429 = vmax.xlane.f32.xlu0 %v1428
        %v1430 = vpop.xlane.xlu0 %1429
        %v1431 = vmax.f32 %v1256, %v1258
        %1432 = vmax.xlane.f32.xlu0 %v1431
        %v1433 = vpop.xlane.xlu0 %1432
        %v1434 = vmax.f32 %v1262, %v1264
        %1435 = vmax.xlane.f32.xlu0 %v1434
        %v1436 = vpop.xlane.xlu0 %1435
        %v1437 = vmax.f32 %v1268, %v1270
        %1438 = vmax.xlane.f32.xlu0 %v1437
        %v1439 = vpop.xlane.xlu0 %1438
        %v1440 = vmax.f32 %v1274, %v1276
        %1441 = vmax.xlane.f32.xlu0 %v1440
        %v1442 = vpop.xlane.xlu0 %1441
        %v1443 = vmax.f32 %v1280, %v1282
        %1444 = vmax.xlane.f32.xlu0 %v1443
        %v1445 = vpop.xlane.xlu0 %1444
        %v1446 = vmax.f32 %v1286, %v1288
        %1447 = vmax.xlane.f32.xlu0 %v1446
        %v1448 = vpop.xlane.xlu0 %1447
        %v1449 = vmax.f32 %v1292, %v1294
        %1450 = vmax.xlane.f32.xlu0 %v1449
        %v1451 = vpop.xlane.xlu0 %1450
        %v1452 = vmax.f32 %v1298, %v1300
        %1453 = vmax.xlane.f32.xlu0 %v1452
        %v1454 = vpop.xlane.xlu0 %1453
        %v1455 = vmax.f32 %v1304, %v1306
        %1456 = vmax.xlane.f32.xlu0 %v1455
        %v1457 = vpop.xlane.xlu0 %1456
        %v1458 = vmax.f32 %v1310, %v1312
        %1459 = vmax.xlane.f32.xlu0 %v1458
        %v1460 = vpop.xlane.xlu0 %1459
        %v1461 = vmax.f32 %v1316, %v1318
        %1462 = vmax.xlane.f32.xlu0 %v1461
        %v1463 = vpop.xlane.xlu0 %1462
        %v1464 = vmax.f32 %v1322, %v1324
        %1465 = vmax.xlane.f32.xlu0 %v1464
        %v1466 = vpop.xlane.xlu0 %1465
        %v1467 = vmax.f32 %v1328, %v1330
        %1468 = vmax.xlane.f32.xlu0 %v1467
        %v1469 = vpop.xlane.xlu0 %1468
        %v1470 = vmax.f32 %v1334, %v1336
        %1471 = vmax.xlane.f32.xlu0 %v1470
        %v1472 = vpop.xlane.xlu0 %1471
        %v1473 = vmax.f32 %v1340, %v1342
        %1474 = vmax.xlane.f32.xlu0 %v1473
        %v1475 = vpop.xlane.xlu0 %1474
        %v1476 = vmax.f32 %v1346, %v1348
        %1477 = vmax.xlane.f32.xlu0 %v1476
        %v1478 = vpop.xlane.xlu0 %1477
        %v1479 = vmax.f32 %v1352, %v1354
        %1480 = vmax.xlane.f32.xlu0 %v1479
        %v1481 = vpop.xlane.xlu0 %1480
        %v1482 = vmax.f32 %v1358, %v1360
        %1483 = vmax.xlane.f32.xlu0 %v1482
        %v1484 = vpop.xlane.xlu0 %1483
        %v1485 = vmax.f32 %v1364, %v1366
        %1486 = vmax.xlane.f32.xlu0 %v1485
        %v1487 = vpop.xlane.xlu0 %1486
        %v1488 = vmax.f32 %v1370, %v1372
        %1489 = vmax.xlane.f32.xlu0 %v1488
        %v1490 = vpop.xlane.xlu0 %1489
        %v1491 = vmax.f32 %v1376, %v1378
        %1492 = vmax.xlane.f32.xlu0 %v1491
        %v1493 = vpop.xlane.xlu0 %1492
        %v1494 = vmax.f32 %v1382, %v1384
        %1495 = vmax.xlane.f32.xlu0 %v1494
        %v1496 = vpop.xlane.xlu0 %1495
        %v1497 = vmax.f32 %v1388, %v1390
        %1498 = vmax.xlane.f32.xlu0 %v1497
        %v1499 = vpop.xlane.xlu0 %1498
        %v1500 = vmax.f32 %v1394, %v1396
        %1501 = vmax.xlane.f32.xlu0 %v1500
        %v1502 = vpop.xlane.xlu0 %1501
        %v1503 = vmax.f32 %v1400, %v1402
        %1504 = vmax.xlane.f32.xlu0 %v1503
        %v1505 = vpop.xlane.xlu0 %1504
        %v1506 = vmax.f32 %v1406, %v1408
        %1507 = vmax.xlane.f32.xlu0 %v1506
        %v1508 = vpop.xlane.xlu0 %1507
        %v1509 = vmax.f32 %v1412, %v1414
        %1510 = vmax.xlane.f32.xlu0 %v1509
        %v1511 = vpop.xlane.xlu0 %1510
        %v1512 = vsub.f32 %v1226, %v1418
        %v1513 = vsub.f32 %v1228, %v1418
        %v1514 = vsub.f32 %v1232, %v1421
        %v1515 = vsub.f32 %v1234, %v1421
        %v1516 = vsub.f32 %v1238, %v1424
        %v1517 = vsub.f32 %v1240, %v1424
        %v1518 = vsub.f32 %v1244, %v1427
        %v1519 = vsub.f32 %v1246, %v1427
        %v1520 = vsub.f32 %v1250, %v1430
        %v1521 = vsub.f32 %v1252, %v1430
        %v1522 = vsub.f32 %v1256, %v1433
        %v1523 = vsub.f32 %v1258, %v1433
        %v1524 = vsub.f32 %v1262, %v1436
        %v1525 = vsub.f32 %v1264, %v1436
        %v1526 = vsub.f32 %v1268, %v1439
        %v1527 = vsub.f32 %v1270, %v1439
        %v1528 = vsub.f32 %v1274, %v1442
        %v1529 = vsub.f32 %v1276, %v1442
        %v1530 = vsub.f32 %v1280, %v1445
        %v1531 = vsub.f32 %v1282, %v1445
        %v1532 = vsub.f32 %v1286, %v1448
        %v1533 = vsub.f32 %v1288, %v1448
        %v1534 = vsub.f32 %v1292, %v1451
        %v1535 = vsub.f32 %v1294, %v1451
        %v1536 = vsub.f32 %v1298, %v1454
        %v1537 = vsub.f32 %v1300, %v1454
        %v1538 = vsub.f32 %v1304, %v1457
        %v1539 = vsub.f32 %v1306, %v1457
        %v1540 = vsub.f32 %v1310, %v1460
        %v1541 = vsub.f32 %v1312, %v1460
        %v1542 = vsub.f32 %v1316, %v1463
        %v1543 = vsub.f32 %v1318, %v1463
        %v1544 = vsub.f32 %v1322, %v1466
        %v1545 = vsub.f32 %v1324, %v1466
        %v1546 = vsub.f32 %v1328, %v1469
        %v1547 = vsub.f32 %v1330, %v1469
        %v1548 = vsub.f32 %v1334, %v1472
        %v1549 = vsub.f32 %v1336, %v1472
        %v1550 = vsub.f32 %v1340, %v1475
        %v1551 = vsub.f32 %v1342, %v1475
        %v1552 = vsub.f32 %v1346, %v1478
        %v1553 = vsub.f32 %v1348, %v1478
        %v1554 = vsub.f32 %v1352, %v1481
        %v1555 = vsub.f32 %v1354, %v1481
        %v1556 = vsub.f32 %v1358, %v1484
        %v1557 = vsub.f32 %v1360, %v1484
        %v1558 = vsub.f32 %v1364, %v1487
        %v1559 = vsub.f32 %v1366, %v1487
        %v1560 = vsub.f32 %v1370, %v1490
        %v1561 = vsub.f32 %v1372, %v1490
        %v1562 = vsub.f32 %v1376, %v1493
        %v1563 = vsub.f32 %v1378, %v1493
        %v1564 = vsub.f32 %v1382, %v1496
        %v1565 = vsub.f32 %v1384, %v1496
        %v1566 = vsub.f32 %v1388, %v1499
        %v1567 = vsub.f32 %v1390, %v1499
        %v1568 = vsub.f32 %v1394, %v1502
        %v1569 = vsub.f32 %v1396, %v1502
        %v1570 = vsub.f32 %v1400, %v1505
        %v1571 = vsub.f32 %v1402, %v1505
        %v1572 = vsub.f32 %v1406, %v1508
        %v1573 = vsub.f32 %v1408, %v1508
        %v1574 = vsub.f32 %v1412, %v1511
        %v1575 = vsub.f32 %v1414, %v1511
        %v1576 = vmul.f32 %v1512, 1.442695
        %v1577 = vpow.pop %v1576
        %v1578 = vmul.f32 %v1513, 1.442695
        %v1579 = vpow.pop %v1578
        %v1580 = vmul.f32 %v1514, 1.442695
        %v1581 = vpow.pop %v1580
        %v1582 = vmul.f32 %v1515, 1.442695
        %v1583 = vpow.pop %v1582
        %v1584 = vmul.f32 %v1516, 1.442695
        %v1585 = vpow.pop %v1584
        %v1586 = vmul.f32 %v1517, 1.442695
        %v1587 = vpow.pop %v1586
        %v1588 = vmul.f32 %v1518, 1.442695
        %v1589 = vpow.pop %v1588
        %v1590 = vmul.f32 %v1519, 1.442695
        %v1591 = vpow.pop %v1590
        %v1592 = vmul.f32 %v1520, 1.442695
        %v1593 = vpow.pop %v1592
        %v1594 = vmul.f32 %v1521, 1.442695
        %v1595 = vpow.pop %v1594
        %v1596 = vmul.f32 %v1522, 1.442695
        %v1597 = vpow.pop %v1596
        %v1598 = vmul.f32 %v1523, 1.442695
        %v1599 = vpow.pop %v1598
        %v1600 = vmul.f32 %v1524, 1.442695
        %v1601 = vpow.pop %v1600
        %v1602 = vmul.f32 %v1525, 1.442695
        %v1603 = vpow.pop %v1602
        %v1604 = vmul.f32 %v1526, 1.442695
        %v1605 = vpow.pop %v1604
        %v1606 = vmul.f32 %v1527, 1.442695
        %v1607 = vpow.pop %v1606
        %v1608 = vmul.f32 %v1528, 1.442695
        %v1609 = vpow.pop %v1608
        %v1610 = vmul.f32 %v1529, 1.442695
        %v1611 = vpow.pop %v1610
        %v1612 = vmul.f32 %v1530, 1.442695
        %v1613 = vpow.pop %v1612
        %v1614 = vmul.f32 %v1531, 1.442695
        %v1615 = vpow.pop %v1614
        %v1616 = vmul.f32 %v1532, 1.442695
        %v1617 = vpow.pop %v1616
        %v1618 = vmul.f32 %v1533, 1.442695
        %v1619 = vpow.pop %v1618
        %v1620 = vmul.f32 %v1534, 1.442695
        %v1621 = vpow.pop %v1620
        %v1622 = vmul.f32 %v1535, 1.442695
        %v1623 = vpow.pop %v1622
        %v1624 = vmul.f32 %v1536, 1.442695
        %v1625 = vpow.pop %v1624
        %v1626 = vmul.f32 %v1537, 1.442695
        %v1627 = vpow.pop %v1626
        %v1628 = vmul.f32 %v1538, 1.442695
        %v1629 = vpow.pop %v1628
        %v1630 = vmul.f32 %v1539, 1.442695
        %v1631 = vpow.pop %v1630
        %v1632 = vmul.f32 %v1540, 1.442695
        %v1633 = vpow.pop %v1632
        %v1634 = vmul.f32 %v1541, 1.442695
        %v1635 = vpow.pop %v1634
        %v1636 = vmul.f32 %v1542, 1.442695
        %v1637 = vpow.pop %v1636
        %v1638 = vmul.f32 %v1543, 1.442695
        %v1639 = vpow.pop %v1638
        %v1640 = vmul.f32 %v1544, 1.442695
        %v1641 = vpow.pop %v1640
        %v1642 = vmul.f32 %v1545, 1.442695
        %v1643 = vpow.pop %v1642
        %v1644 = vmul.f32 %v1546, 1.442695
        %v1645 = vpow.pop %v1644
        %v1646 = vmul.f32 %v1547, 1.442695
        %v1647 = vpow.pop %v1646
        %v1648 = vmul.f32 %v1548, 1.442695
        %v1649 = vpow.pop %v1648
        %v1650 = vmul.f32 %v1549, 1.442695
        %v1651 = vpow.pop %v1650
        %v1652 = vmul.f32 %v1550, 1.442695
        %v1653 = vpow.pop %v1652
        %v1654 = vmul.f32 %v1551, 1.442695
        %v1655 = vpow.pop %v1654
        %v1656 = vmul.f32 %v1552, 1.442695
        %v1657 = vpow.pop %v1656
        %v1658 = vmul.f32 %v1553, 1.442695
        %v1659 = vpow.pop %v1658
        %v1660 = vmul.f32 %v1554, 1.442695
        %v1661 = vpow.pop %v1660
        %v1662 = vmul.f32 %v1555, 1.442695
        %v1663 = vpow.pop %v1662
        %v1664 = vmul.f32 %v1556, 1.442695
        %v1665 = vpow.pop %v1664
        %v1666 = vmul.f32 %v1557, 1.442695
        %v1667 = vpow.pop %v1666
        %v1668 = vmul.f32 %v1558, 1.442695
        %v1669 = vpow.pop %v1668
        %v1670 = vmul.f32 %v1559, 1.442695
        %v1671 = vpow.pop %v1670
        %v1672 = vmul.f32 %v1560, 1.442695
        %v1673 = vpow.pop %v1672
        %v1674 = vmul.f32 %v1561, 1.442695
        %v1675 = vpow.pop %v1674
        %v1676 = vmul.f32 %v1562, 1.442695
        %v1677 = vpow.pop %v1676
        %v1678 = vmul.f32 %v1563, 1.442695
        %v1679 = vpow.pop %v1678
        %v1680 = vmul.f32 %v1564, 1.442695
        %v1681 = vpow.pop %v1680
        %v1682 = vmul.f32 %v1565, 1.442695
        %v1683 = vpow.pop %v1682
        %v1684 = vmul.f32 %v1566, 1.442695
        %v1685 = vpow.pop %v1684
        %v1686 = vmul.f32 %v1567, 1.442695
        %v1687 = vpow.pop %v1686
        %v1688 = vmul.f32 %v1568, 1.442695
        %v1689 = vpow.pop %v1688
        %v1690 = vmul.f32 %v1569, 1.442695
        %v1691 = vpow.pop %v1690
        %v1692 = vmul.f32 %v1570, 1.442695
        %v1693 = vpow.pop %v1692
        %v1694 = vmul.f32 %v1571, 1.442695
        %v1695 = vpow.pop %v1694
        %v1696 = vmul.f32 %v1572, 1.442695
        %v1697 = vpow.pop %v1696
        %v1698 = vmul.f32 %v1573, 1.442695
        %v1699 = vpow.pop %v1698
        %v1700 = vmul.f32 %v1574, 1.442695
        %v1701 = vpow.pop %v1700
        %v1702 = vmul.f32 %v1575, 1.442695
        %v1703 = vpow.pop %v1702
        %v1704 = vadd.f32 %v1577, %v1579
        %1705 = vadd.xlane.f32.xlu0 %v1704
        %v1706 = vpop.xlane.xlu0 %1705
        %v1707 = vadd.f32 %v1581, %v1583
        %1708 = vadd.xlane.f32.xlu0 %v1707
        %v1709 = vpop.xlane.xlu0 %1708
        %v1710 = vadd.f32 %v1585, %v1587
        %1711 = vadd.xlane.f32.xlu0 %v1710
        %v1712 = vpop.xlane.xlu0 %1711
        %v1713 = vadd.f32 %v1589, %v1591
        %1714 = vadd.xlane.f32.xlu0 %v1713
        %v1715 = vpop.xlane.xlu0 %1714
        %v1716 = vadd.f32 %v1593, %v1595
        %1717 = vadd.xlane.f32.xlu0 %v1716
        %v1718 = vpop.xlane.xlu0 %1717
        %v1719 = vadd.f32 %v1597, %v1599
        %1720 = vadd.xlane.f32.xlu0 %v1719
        %v1721 = vpop.xlane.xlu0 %1720
        %v1722 = vadd.f32 %v1601, %v1603
        %1723 = vadd.xlane.f32.xlu0 %v1722
        %v1724 = vpop.xlane.xlu0 %1723
        %v1725 = vadd.f32 %v1605, %v1607
        %1726 = vadd.xlane.f32.xlu0 %v1725
        %v1727 = vpop.xlane.xlu0 %1726
        %v1728 = vadd.f32 %v1609, %v1611
        %1729 = vadd.xlane.f32.xlu0 %v1728
        %v1730 = vpop.xlane.xlu0 %1729
        %v1731 = vadd.f32 %v1613, %v1615
        %1732 = vadd.xlane.f32.xlu0 %v1731
        %v1733 = vpop.xlane.xlu0 %1732
        %v1734 = vadd.f32 %v1617, %v1619
        %1735 = vadd.xlane.f32.xlu0 %v1734
        %v1736 = vpop.xlane.xlu0 %1735
        %v1737 = vadd.f32 %v1621, %v1623
        %1738 = vadd.xlane.f32.xlu0 %v1737
        %v1739 = vpop.xlane.xlu0 %1738
        %v1740 = vadd.f32 %v1625, %v1627
        %1741 = vadd.xlane.f32.xlu0 %v1740
        %v1742 = vpop.xlane.xlu0 %1741
        %v1743 = vadd.f32 %v1629, %v1631
        %1744 = vadd.xlane.f32.xlu0 %v1743
        %v1745 = vpop.xlane.xlu0 %1744
        %v1746 = vadd.f32 %v1633, %v1635
        %1747 = vadd.xlane.f32.xlu0 %v1746
        %v1748 = vpop.xlane.xlu0 %1747
        %v1749 = vadd.f32 %v1637, %v1639
        %1750 = vadd.xlane.f32.xlu0 %v1749
        %v1751 = vpop.xlane.xlu0 %1750
        %v1752 = vadd.f32 %v1641, %v1643
        %1753 = vadd.xlane.f32.xlu0 %v1752
        %v1754 = vpop.xlane.xlu0 %1753
        %v1755 = vadd.f32 %v1645, %v1647
        %1756 = vadd.xlane.f32.xlu0 %v1755
        %v1757 = vpop.xlane.xlu0 %1756
        %v1758 = vadd.f32 %v1649, %v1651
        %1759 = vadd.xlane.f32.xlu0 %v1758
        %v1760 = vpop.xlane.xlu0 %1759
        %v1761 = vadd.f32 %v1653, %v1655
        %1762 = vadd.xlane.f32.xlu0 %v1761
        %v1763 = vpop.xlane.xlu0 %1762
        %v1764 = vadd.f32 %v1657, %v1659
        %1765 = vadd.xlane.f32.xlu0 %v1764
        %v1766 = vpop.xlane.xlu0 %1765
        %v1767 = vadd.f32 %v1661, %v1663
        %1768 = vadd.xlane.f32.xlu0 %v1767
        %v1769 = vpop.xlane.xlu0 %1768
        %v1770 = vadd.f32 %v1665, %v1667
        %1771 = vadd.xlane.f32.xlu0 %v1770
        %v1772 = vpop.xlane.xlu0 %1771
        %v1773 = vadd.f32 %v1669, %v1671
        %1774 = vadd.xlane.f32.xlu0 %v1773
        %v1775 = vpop.xlane.xlu0 %1774
        %v1776 = vadd.f32 %v1673, %v1675
        %1777 = vadd.xlane.f32.xlu0 %v1776
        %v1778 = vpop.xlane.xlu0 %1777
        %v1779 = vadd.f32 %v1677, %v1679
        %1780 = vadd.xlane.f32.xlu0 %v1779
        %v1781 = vpop.xlane.xlu0 %1780
        %v1782 = vadd.f32 %v1681, %v1683
        %1783 = vadd.xlane.f32.xlu0 %v1782
        %v1784 = vpop.xlane.xlu0 %1783
        %v1785 = vadd.f32 %v1685, %v1687
        %1786 = vadd.xlane.f32.xlu0 %v1785
        %v1787 = vpop.xlane.xlu0 %1786
        %v1788 = vadd.f32 %v1689, %v1691
        %1789 = vadd.xlane.f32.xlu0 %v1788
        %v1790 = vpop.xlane.xlu0 %1789
        %v1791 = vadd.f32 %v1693, %v1695
        %1792 = vadd.xlane.f32.xlu0 %v1791
        %v1793 = vpop.xlane.xlu0 %1792
        %v1794 = vadd.f32 %v1697, %v1699
        %1795 = vadd.xlane.f32.xlu0 %v1794
        %v1796 = vpop.xlane.xlu0 %1795
        %v1797 = vadd.f32 %v1701, %v1703
        %1798 = vadd.xlane.f32.xlu0 %v1797
        %v1799 = vpop.xlane.xlu0 %1798
        %1800 = vmatprep.subr.mxu0 0.0
        %1801 = vmatpush1.msra.mxu0 %v550
        %1802 = vmatprep.subr.mxu0 0.0
        %1803 = vmatpush1.msra.mxu0 %v551
        %1804 = vmatprep.subr.mxu0 0.0
        %1805 = vmatpush1.msra.mxu0 %v552
        %1806 = vmatprep.subr.mxu0 0.0
        %1807 = vmatpush1.msra.mxu0 %v553
        %1808 = vmatprep.subr.mxu0 0.0
        %1809 = vmatpush1.msra.mxu0 %v554
        %1810 = vmatprep.subr.mxu0 0.0
        %1811 = vmatpush1.msra.mxu0 %v555
        %1812 = vmatprep.subr.mxu0 0.0
        %1813 = vmatpush1.msra.mxu0 %v556
        %1814 = vmatprep.subr.mxu0 0.0
        %1815 = vmatpush1.msra.mxu0 %v557
        %1816 = vmatprep.subr.mxu0 0.0
        %1817 = vmatpush1.msra.mxu0 %v558
        %1818 = vmatprep.subr.mxu0 0.0
        %1819 = vmatpush1.msra.mxu0 %v559
        %1820 = vmatprep.subr.mxu0 0.0
        %1821 = vmatpush1.msra.mxu0 %v560
        %1822 = vmatprep.subr.mxu0 0.0
        %1823 = vmatpush1.msra.mxu0 %v561
        %1824 = vmatprep.subr.mxu0 0.0
        %1825 = vmatpush1.msra.mxu0 %v562
        %1826 = vmatprep.subr.mxu0 0.0
        %1827 = vmatpush1.msra.mxu0 %v563
        %1828 = vmatprep.subr.mxu0 0.0
        %1829 = vmatpush1.msra.mxu0 %v564
        %1830 = vmatprep.subr.mxu0 0.0
        %1831 = vmatpush1.msra.mxu0 %v565
        %1832 = vmatprep.subr.mxu0 0.0
        %1833 = vmatpush1.msra.mxu0 %v566
        %1834 = vmatprep.subr.mxu0 0.0
        %1835 = vmatpush1.msra.mxu0 %v567
        %1836 = vmatprep.subr.mxu0 0.0
        %1837 = vmatpush1.msra.mxu0 %v568
        %1838 = vmatprep.subr.mxu0 0.0
        %1839 = vmatpush1.msra.mxu0 %v569
        %1840 = vmatprep.subr.mxu0 0.0
        %1841 = vmatpush1.msra.mxu0 %v570
        %1842 = vmatprep.subr.mxu0 0.0
        %1843 = vmatpush1.msra.mxu0 %v571
        %1844 = vmatprep.subr.mxu0 0.0
        %1845 = vmatpush1.msra.mxu0 %v572
        %1846 = vmatprep.subr.mxu0 0.0
        %1847 = vmatpush1.msra.mxu0 %v573
        %1848 = vmatprep.subr.mxu0 0.0
        %1849 = vmatpush1.msra.mxu0 %v574
        %1850 = vmatprep.subr.mxu0 0.0
        %1851 = vmatpush1.msra.mxu0 %v575
        %1852 = vmatprep.subr.mxu0 0.0
        %1853 = vmatpush1.msra.mxu0 %v576
        %1854 = vmatprep.subr.mxu0 0.0
        %1855 = vmatpush1.msra.mxu0 %v577
        %1856 = vmatprep.subr.mxu0 0.0
        %1857 = vmatpush1.msra.mxu0 %v578
        %1858 = vmatprep.subr.mxu0 0.0
        %1859 = vmatpush1.msra.mxu0 %v579
        %1860 = vmatprep.subr.mxu0 0.0
        %1861 = vmatpush1.msra.mxu0 %v580
        %1862 = vmatprep.subr.mxu0 0.0
        %1863 = vmatpush1.msra.mxu0 %v581
        %1864 = vmatprep.mubr.f32.mxu0 %v1579
        %1865 = vmatmul.mubr.f32.gmra.mrb[0].mxu0 %v1577
        %v1866 = vpop.f32.mrb[0].mxu0
        %v1867 = vadd.f32 0.0, %v1866
        %v1868 = vpop.f32.mrb[0].mxu0
        %1869 = vmatprep.mubr.f32.mxu0 %v1583
        %1870 = vmatmul.mubr.f32.gmra.mrb[0].mxu0 %v1581
        %v1871 = vpop.f32.mrb[0].mxu0
        %v1872 = vadd.f32 0.0, %v1871
        %v1873 = vpop.f32.mrb[0].mxu0
        %1874 = vmatprep.mubr.f32.mxu0 %v1587
        %1875 = vmatmul.mubr.f32.gmra.mrb[0].mxu0 %v1585
        %v1876 = vpop.f32.mrb[0].mxu0
        %v1877 = vadd.f32 0.0, %v1876
        %v1878 = vpop.f32.mrb[0].mxu0
        %1879 = vmatprep.mubr.f32.mxu0 %v1591
        %1880 = vmatmul.mubr.f32.gmra.mrb[0].mxu0 %v1589
        %v1881 = vpop.f32.mrb[0].mxu0
        %v1882 = vadd.f32 0.0, %v1881
        %v1883 = vpop.f32.mrb[0].mxu0
        %1884 = vmatprep.mubr.f32.mxu0 %v1595
        %1885 = vmatmul.mubr.f32.gmra.mrb[0].mxu0 %v1593
        %v1886 = vpop.f32.mrb[0].mxu0
        %v1887 = vadd.f32 0.0, %v1886
        %v1888 = vpop.f32.mrb[0].mxu0
        %1889 = vmatprep.mubr.f32.mxu0 %v1599
        %1890 = vmatmul.mubr.f32.gmra.mrb[0].mxu0 %v1597
        %v1891 = vpop.f32.mrb[0].mxu0
        %v1892 = vadd.f32 0.0, %v1891
        %v1893 = vpop.f32.mrb[0].mxu0
        %1894 = vmatprep.mubr.f32.mxu0 %v1603
        %1895 = vmatmul.mubr.f32.gmra.mrb[0].mxu0 %v1601
        %v1896 = vpop.f32.mrb[0].mxu0
        %v1897 = vadd.f32 0.0, %v1896
        %v1898 = vpop.f32.mrb[0].mxu0
        %1899 = vmatprep.mubr.f32.mxu0 %v1607
        %1900 = vmatmul.mubr.f32.gmra.mrb[0].mxu0 %v1605
        %v1901 = vpop.f32.mrb[0].mxu0
        %v1902 = vadd.f32 0.0, %v1901
        %v1903 = vpop.f32.mrb[0].mxu0
        %1904 = vmatprep.mubr.f32.mxu0 %v1611
        %1905 = vmatmul.mubr.f32.gmra.mrb[0].mxu0 %v1609
        %v1906 = vpop.f32.mrb[0].mxu0
        %v1907 = vadd.f32 0.0, %v1906
        %v1908 = vpop.f32.mrb[0].mxu0
        %1909 = vmatprep.mubr.f32.mxu0 %v1615
        %1910 = vmatmul.mubr.f32.gmra.mrb[0].mxu0 %v1613
        %v1911 = vpop.f32.mrb[0].mxu0
        %v1912 = vadd.f32 0.0, %v1911
        %v1913 = vpop.f32.mrb[0].mxu0
        %1914 = vmatprep.mubr.f32.mxu0 %v1619
        %1915 = vmatmul.mubr.f32.gmra.mrb[0].mxu0 %v1617
        %v1916 = vpop.f32.mrb[0].mxu0
        %v1917 = vadd.f32 0.0, %v1916
        %v1918 = vpop.f32.mrb[0].mxu0
        %1919 = vmatprep.mubr.f32.mxu0 %v1623
        %1920 = vmatmul.mubr.f32.gmra.mrb[0].mxu0 %v1621
        %v1921 = vpop.f32.mrb[0].mxu0
        %v1922 = vadd.f32 0.0, %v1921
        %v1923 = vpop.f32.mrb[0].mxu0
        %1924 = vmatprep.mubr.f32.mxu0 %v1627
        %1925 = vmatmul.mubr.f32.gmra.mrb[0].mxu0 %v1625
        %v1926 = vpop.f32.mrb[0].mxu0
        %v1927 = vadd.f32 0.0, %v1926
        %v1928 = vpop.f32.mrb[0].mxu0
        %1929 = vmatprep.mubr.f32.mxu0 %v1631
        %1930 = vmatmul.mubr.f32.gmra.mrb[0].mxu0 %v1629
        %v1931 = vpop.f32.mrb[0].mxu0
        %v1932 = vadd.f32 0.0, %v1931
        %v1933 = vpop.f32.mrb[0].mxu0
        %1934 = vmatprep.mubr.f32.mxu0 %v1635
        %1935 = vmatmul.mubr.f32.gmra.mrb[0].mxu0 %v1633
        %v1936 = vpop.f32.mrb[0].mxu0
        %v1937 = vadd.f32 0.0, %v1936
        %v1938 = vpop.f32.mrb[0].mxu0
        %1939 = vmatprep.mubr.f32.mxu0 %v1639
        %1940 = vmatmul.mubr.f32.gmra.mrb[0].mxu0 %v1637
        %v1941 = vpop.f32.mrb[0].mxu0
        %v1942 = vadd.f32 0.0, %v1941
        %v1943 = vpop.f32.mrb[0].mxu0
        %1944 = vmatprep.mubr.f32.mxu0 %v1643
        %1945 = vmatmul.mubr.f32.gmra.mrb[0].mxu0 %v1641
        %v1946 = vpop.f32.mrb[0].mxu0
        %v1947 = vadd.f32 0.0, %v1946
        %v1948 = vpop.f32.mrb[0].mxu0
        %1949 = vmatprep.mubr.f32.mxu0 %v1647
        %1950 = vmatmul.mubr.f32.gmra.mrb[0].mxu0 %v1645
        %v1951 = vpop.f32.mrb[0].mxu0
        %v1952 = vadd.f32 0.0, %v1951
        %v1953 = vpop.f32.mrb[0].mxu0
        %1954 = vmatprep.mubr.f32.mxu0 %v1651
        %1955 = vmatmul.mubr.f32.gmra.mrb[0].mxu0 %v1649
        %v1956 = vpop.f32.mrb[0].mxu0
        %v1957 = vadd.f32 0.0, %v1956
        %v1958 = vpop.f32.mrb[0].mxu0
        %1959 = vmatprep.mubr.f32.mxu0 %v1655
        %1960 = vmatmul.mubr.f32.gmra.mrb[0].mxu0 %v1653
        %v1961 = vpop.f32.mrb[0].mxu0
        %v1962 = vadd.f32 0.0, %v1961
        %v1963 = vpop.f32.mrb[0].mxu0
        %1964 = vmatprep.mubr.f32.mxu0 %v1659
        %1965 = vmatmul.mubr.f32.gmra.mrb[0].mxu0 %v1657
        %v1966 = vpop.f32.mrb[0].mxu0
        %v1967 = vadd.f32 0.0, %v1966
        %v1968 = vpop.f32.mrb[0].mxu0
        %1969 = vmatprep.mubr.f32.mxu0 %v1663
        %1970 = vmatmul.mubr.f32.gmra.mrb[0].mxu0 %v1661
        %v1971 = vpop.f32.mrb[0].mxu0
        %v1972 = vadd.f32 0.0, %v1971
        %v1973 = vpop.f32.mrb[0].mxu0
        %1974 = vmatprep.mubr.f32.mxu0 %v1667
        %1975 = vmatmul.mubr.f32.gmra.mrb[0].mxu0 %v1665
        %v1976 = vpop.f32.mrb[0].mxu0
        %v1977 = vadd.f32 0.0, %v1976
        %v1978 = vpop.f32.mrb[0].mxu0
        %1979 = vmatprep.mubr.f32.mxu0 %v1671
        %1980 = vmatmul.mubr.f32.gmra.mrb[0].mxu0 %v1669
        %v1981 = vpop.f32.mrb[0].mxu0
        %v1982 = vadd.f32 0.0, %v1981
        %v1983 = vpop.f32.mrb[0].mxu0
        %1984 = vmatprep.mubr.f32.mxu0 %v1675
        %1985 = vmatmul.mubr.f32.gmra.mrb[0].mxu0 %v1673
        %v1986 = vpop.f32.mrb[0].mxu0
        %v1987 = vadd.f32 0.0, %v1986
        %v1988 = vpop.f32.mrb[0].mxu0
        %1989 = vmatprep.mubr.f32.mxu0 %v1679
        %1990 = vmatmul.mubr.f32.gmra.mrb[0].mxu0 %v1677
        %v1991 = vpop.f32.mrb[0].mxu0
        %v1992 = vadd.f32 0.0, %v1991
        %v1993 = vpop.f32.mrb[0].mxu0
        %1994 = vmatprep.mubr.f32.mxu0 %v1683
        %1995 = vmatmul.mubr.f32.gmra.mrb[0].mxu0 %v1681
        %v1996 = vpop.f32.mrb[0].mxu0
        %v1997 = vadd.f32 0.0, %v1996
        %v1998 = vpop.f32.mrb[0].mxu0
        %1999 = vmatprep.mubr.f32.mxu0 %v1687
        %2000 = vmatmul.mubr.f32.gmra.mrb[0].mxu0 %v1685
        %v2001 = vpop.f32.mrb[0].mxu0
        %v2002 = vadd.f32 0.0, %v2001
        %v2003 = vpop.f32.mrb[0].mxu0
        %2004 = vmatprep.mubr.f32.mxu0 %v1691
        %2005 = vmatmul.mubr.f32.gmra.mrb[0].mxu0 %v1689
        %v2006 = vpop.f32.mrb[0].mxu0
        %v2007 = vadd.f32 0.0, %v2006
        %v2008 = vpop.f32.mrb[0].mxu0
        %2009 = vmatprep.mubr.f32.mxu0 %v1695
        %2010 = vmatmul.mubr.f32.gmra.mrb[0].mxu0 %v1693
        %v2011 = vpop.f32.mrb[0].mxu0
        %v2012 = vadd.f32 0.0, %v2011
        %v2013 = vpop.f32.mrb[0].mxu0
        %2014 = vmatprep.mubr.f32.mxu0 %v1699
        %2015 = vmatmul.mubr.f32.gmra.mrb[0].mxu0 %v1697
        %v2016 = vpop.f32.mrb[0].mxu0
        %v2017 = vadd.f32 0.0, %v2016
        %v2018 = vpop.f32.mrb[0].mxu0
        %2019 = vmatprep.mubr.f32.mxu0 %v1703
        %2020 = vmatmul.mubr.f32.gmra.mrb[0].mxu0 %v1701
        %v2021 = vpop.f32.mrb[0].mxu0
        %v2022 = vadd.f32 0.0, %v2021
        %v2023 = vpop.f32.mrb[0].mxu0
        %2024 = vdwg.mxu0
        %v2025 = vrcp.pop %v1706
        %v2026 = vmul.f32 %v1867, %v2025
        %v2027 = vrcp.pop %v1709
        %v2028 = vmul.f32 %v1872, %v2027
        %v2029 = vrcp.pop %v1712
        %v2030 = vmul.f32 %v1877, %v2029
        %v2031 = vrcp.pop %v1715
        %v2032 = vmul.f32 %v1882, %v2031
        %v2033 = vrcp.pop %v1718
        %v2034 = vmul.f32 %v1887, %v2033
        %v2035 = vrcp.pop %v1721
        %v2036 = vmul.f32 %v1892, %v2035
        %v2037 = vrcp.pop %v1724
        %v2038 = vmul.f32 %v1897, %v2037
        %v2039 = vrcp.pop %v1727
        %v2040 = vmul.f32 %v1902, %v2039
        %v2041 = vrcp.pop %v1730
        %v2042 = vmul.f32 %v1907, %v2041
        %v2043 = vrcp.pop %v1733
        %v2044 = vmul.f32 %v1912, %v2043
        %v2045 = vrcp.pop %v1736
        %v2046 = vmul.f32 %v1917, %v2045
        %v2047 = vrcp.pop %v1739
        %v2048 = vmul.f32 %v1922, %v2047
        %v2049 = vrcp.pop %v1742
        %v2050 = vmul.f32 %v1927, %v2049
        %v2051 = vrcp.pop %v1745
        %v2052 = vmul.f32 %v1932, %v2051
        %v2053 = vrcp.pop %v1748
        %v2054 = vmul.f32 %v1937, %v2053
        %v2055 = vrcp.pop %v1751
        %v2056 = vmul.f32 %v1942, %v2055
        %v2057 = vrcp.pop %v1754
        %v2058 = vmul.f32 %v1947, %v2057
        %v2059 = vrcp.pop %v1757
        %v2060 = vmul.f32 %v1952, %v2059
        %v2061 = vrcp.pop %v1760
        %v2062 = vmul.f32 %v1957, %v2061
        %v2063 = vrcp.pop %v1763
        %v2064 = vmul.f32 %v1962, %v2063
        %v2065 = vrcp.pop %v1766
        %v2066 = vmul.f32 %v1967, %v2065
        %v2067 = vrcp.pop %v1769
        %v2068 = vmul.f32 %v1972, %v2067
        %v2069 = vrcp.pop %v1772
        %v2070 = vmul.f32 %v1977, %v2069
        %v2071 = vrcp.pop %v1775
        %v2072 = vmul.f32 %v1982, %v2071
        %v2073 = vrcp.pop %v1778
        %v2074 = vmul.f32 %v1987, %v2073
        %v2075 = vrcp.pop %v1781
        %v2076 = vmul.f32 %v1992, %v2075
        %v2077 = vrcp.pop %v1784
        %v2078 = vmul.f32 %v1997, %v2077
        %v2079 = vrcp.pop %v1787
        %v2080 = vmul.f32 %v2002, %v2079
        %v2081 = vrcp.pop %v1790
        %v2082 = vmul.f32 %v2007, %v2081
        %v2083 = vrcp.pop %v1793
        %v2084 = vmul.f32 %v2012, %v2083
        %v2085 = vrcp.pop %v1796
        %v2086 = vmul.f32 %v2017, %v2085
        %v2087 = vrcp.pop %v1799
        %v2088 = vmul.f32 %v2022, %v2087
        %2089 = vrot.lane.b32.xlu0 %v742, 120
        %v2090 = vpop.permute.xlu0 %2089
        %2091 = vrot.lane.b32.xlu0 %v743, 120
        %v2092 = vpop.permute.xlu0 %2091
        %2093 = vrot.lane.b32.xlu0 %v744, 120
        %v2094 = vpop.permute.xlu0 %2093
        %2095 = vrot.lane.b32.xlu0 %v745, 120
        %v2096 = vpop.permute.xlu0 %2095
        %2097 = vrot.lane.b32.xlu0 %v746, 120
        %v2098 = vpop.permute.xlu0 %2097
        %2099 = vrot.lane.b32.xlu0 %v747, 120
        %v2100 = vpop.permute.xlu0 %2099
        %2101 = vrot.lane.b32.xlu0 %v748, 120
        %v2102 = vpop.permute.xlu0 %2101
        %2103 = vrot.lane.b32.xlu0 %v749, 120
        %v2104 = vpop.permute.xlu0 %2103
        %2105 = vrot.lane.b32.xlu0 %v750, 120
        %v2106 = vpop.permute.xlu0 %2105
        %2107 = vrot.lane.b32.xlu0 %v751, 120
        %v2108 = vpop.permute.xlu0 %2107
        %2109 = vrot.lane.b32.xlu0 %v752, 120
        %v2110 = vpop.permute.xlu0 %2109
        %2111 = vrot.lane.b32.xlu0 %v753, 120
        %v2112 = vpop.permute.xlu0 %2111
        %2113 = vrot.lane.b32.xlu0 %v754, 120
        %v2114 = vpop.permute.xlu0 %2113
        %2115 = vrot.lane.b32.xlu0 %v755, 120
        %v2116 = vpop.permute.xlu0 %2115
        %2117 = vrot.lane.b32.xlu0 %v756, 120
        %v2118 = vpop.permute.xlu0 %2117
        %2119 = vrot.lane.b32.xlu0 %v757, 120
        %v2120 = vpop.permute.xlu0 %2119
        %2121 = vrot.lane.b32.xlu0 %v758, 120
        %v2122 = vpop.permute.xlu0 %2121
        %2123 = vrot.lane.b32.xlu0 %v759, 120
        %v2124 = vpop.permute.xlu0 %2123
        %2125 = vrot.lane.b32.xlu0 %v760, 120
        %v2126 = vpop.permute.xlu0 %2125
        %2127 = vrot.lane.b32.xlu0 %v761, 120
        %v2128 = vpop.permute.xlu0 %2127
        %2129 = vrot.lane.b32.xlu0 %v762, 120
        %v2130 = vpop.permute.xlu0 %2129
        %2131 = vrot.lane.b32.xlu0 %v763, 120
        %v2132 = vpop.permute.xlu0 %2131
        %2133 = vrot.lane.b32.xlu0 %v764, 120
        %v2134 = vpop.permute.xlu0 %2133
        %2135 = vrot.lane.b32.xlu0 %v765, 120
        %v2136 = vpop.permute.xlu0 %2135
        %2137 = vrot.lane.b32.xlu0 %v766, 120
        %v2138 = vpop.permute.xlu0 %2137
        %2139 = vrot.lane.b32.xlu0 %v767, 120
        %v2140 = vpop.permute.xlu0 %2139
        %2141 = vrot.lane.b32.xlu0 %v768, 120
        %v2142 = vpop.permute.xlu0 %2141
        %2143 = vrot.lane.b32.xlu0 %v769, 120
        %v2144 = vpop.permute.xlu0 %2143
        %2145 = vrot.lane.b32.xlu0 %v770, 120
        %v2146 = vpop.permute.xlu0 %2145
        %2147 = vrot.lane.b32.xlu0 %v771, 120
        %v2148 = vpop.permute.xlu0 %2147
        %2149 = vrot.lane.b32.xlu0 %v772, 120
        %v2150 = vpop.permute.xlu0 %2149
        %2151 = vrot.lane.b32.xlu0 %v773, 120
        %v2152 = vpop.permute.xlu0 %2151
        %2153 = vrot.lane.b32.xlu0 %v870, 104
        %v2154 = vpop.permute.xlu0 %2153
        %2155 = vrot.lane.b32.xlu0 %v871, 104
        %v2156 = vpop.permute.xlu0 %2155
        %2157 = vrot.lane.b32.xlu0 %v872, 104
        %v2158 = vpop.permute.xlu0 %2157
        %2159 = vrot.lane.b32.xlu0 %v873, 104
        %v2160 = vpop.permute.xlu0 %2159
        %2161 = vrot.lane.b32.xlu0 %v874, 104
        %v2162 = vpop.permute.xlu0 %2161
        %2163 = vrot.lane.b32.xlu0 %v875, 104
        %v2164 = vpop.permute.xlu0 %2163
        %2165 = vrot.lane.b32.xlu0 %v876, 104
        %v2166 = vpop.permute.xlu0 %2165
        %2167 = vrot.lane.b32.xlu0 %v877, 104
        %v2168 = vpop.permute.xlu0 %2167
        %2169 = vrot.lane.b32.xlu0 %v878, 104
        %v2170 = vpop.permute.xlu0 %2169
        %2171 = vrot.lane.b32.xlu0 %v879, 104
        %v2172 = vpop.permute.xlu0 %2171
        %2173 = vrot.lane.b32.xlu0 %v880, 104
        %v2174 = vpop.permute.xlu0 %2173
        %2175 = vrot.lane.b32.xlu0 %v881, 104
        %v2176 = vpop.permute.xlu0 %2175
        %2177 = vrot.lane.b32.xlu0 %v882, 104
        %v2178 = vpop.permute.xlu0 %2177
        %2179 = vrot.lane.b32.xlu0 %v883, 104
        %v2180 = vpop.permute.xlu0 %2179
        %2181 = vrot.lane.b32.xlu0 %v884, 104
        %v2182 = vpop.permute.xlu0 %2181
        %2183 = vrot.lane.b32.xlu0 %v885, 104
        %v2184 = vpop.permute.xlu0 %2183
        %2185 = vrot.lane.b32.xlu0 %v886, 104
        %v2186 = vpop.permute.xlu0 %2185
        %2187 = vrot.lane.b32.xlu0 %v887, 104
        %v2188 = vpop.permute.xlu0 %2187
        %2189 = vrot.lane.b32.xlu0 %v888, 104
        %v2190 = vpop.permute.xlu0 %2189
        %2191 = vrot.lane.b32.xlu0 %v889, 104
        %v2192 = vpop.permute.xlu0 %2191
        %2193 = vrot.lane.b32.xlu0 %v890, 104
        %v2194 = vpop.permute.xlu0 %2193
        %2195 = vrot.lane.b32.xlu0 %v891, 104
        %v2196 = vpop.permute.xlu0 %2195
        %2197 = vrot.lane.b32.xlu0 %v892, 104
        %v2198 = vpop.permute.xlu0 %2197
        %2199 = vrot.lane.b32.xlu0 %v893, 104
        %v2200 = vpop.permute.xlu0 %2199
        %2201 = vrot.lane.b32.xlu0 %v894, 104
        %v2202 = vpop.permute.xlu0 %2201
        %2203 = vrot.lane.b32.xlu0 %v895, 104
        %v2204 = vpop.permute.xlu0 %2203
        %2205 = vrot.lane.b32.xlu0 %v896, 104
        %v2206 = vpop.permute.xlu0 %2205
        %2207 = vrot.lane.b32.xlu0 %v897, 104
        %v2208 = vpop.permute.xlu0 %2207
        %2209 = vrot.lane.b32.xlu0 %v898, 104
        %v2210 = vpop.permute.xlu0 %2209
        %2211 = vrot.lane.b32.xlu0 %v899, 104
        %v2212 = vpop.permute.xlu0 %2211
        %2213 = vrot.lane.b32.xlu0 %v900, 104
        %v2214 = vpop.permute.xlu0 %2213
        %2215 = vrot.lane.b32.xlu0 %v901, 104
        %v2216 = vpop.permute.xlu0 %2215
        %v2217 = vsel %vm998, %v2090, 0
        %v2219 = vsel %vm998, %v2092, 0
        %v2221 = vsel %vm998, %v2094, 0
        %v2223 = vsel %vm998, %v2096, 0
        %v2225 = vsel %vm998, %v2098, 0
        %v2227 = vsel %vm998, %v2100, 0
        %v2229 = vsel %vm998, %v2102, 0
        %v2231 = vsel %vm998, %v2104, 0
        %v2233 = vsel %vm998, %v2106, 0
        %v2235 = vsel %vm998, %v2108, 0
        %v2237 = vsel %vm998, %v2110, 0
        %v2239 = vsel %vm998, %v2112, 0
        %v2241 = vsel %vm998, %v2114, 0
        %v2243 = vsel %vm998, %v2116, 0
        %v2245 = vsel %vm998, %v2118, 0
        %v2247 = vsel %vm998, %v2120, 0
        %v2249 = vsel %vm998, %v2122, 0
        %v2251 = vsel %vm998, %v2124, 0
        %v2253 = vsel %vm998, %v2126, 0
        %v2255 = vsel %vm998, %v2128, 0
        %v2257 = vsel %vm998, %v2130, 0
        %v2259 = vsel %vm998, %v2132, 0
        %v2261 = vsel %vm998, %v2134, 0
        %v2263 = vsel %vm998, %v2136, 0
        %v2265 = vsel %vm998, %v2138, 0
        %v2267 = vsel %vm998, %v2140, 0
        %v2269 = vsel %vm998, %v2142, 0
        %v2271 = vsel %vm998, %v2144, 0
        %v2273 = vsel %vm998, %v2146, 0
        %v2275 = vsel %vm998, %v2148, 0
        %v2277 = vsel %vm998, %v2150, 0
        %v2279 = vsel %vm998, %v2152, 0
        %v2281 = vsel %vm998, %v2154, 0
        %v2283 = vsel %vm998, %v2156, 0
        %v2285 = vsel %vm998, %v2158, 0
        %v2287 = vsel %vm998, %v2160, 0
        %v2289 = vsel %vm998, %v2162, 0
        %v2291 = vsel %vm998, %v2164, 0
        %v2293 = vsel %vm998, %v2166, 0
        %v2295 = vsel %vm998, %v2168, 0
        %v2297 = vsel %vm998, %v2170, 0
        %v2299 = vsel %vm998, %v2172, 0
        %v2301 = vsel %vm998, %v2174, 0
        %v2303 = vsel %vm998, %v2176, 0
        %v2305 = vsel %vm998, %v2178, 0
        %v2307 = vsel %vm998, %v2180, 0
        %v2309 = vsel %vm998, %v2182, 0
        %v2311 = vsel %vm998, %v2184, 0
        %v2313 = vsel %vm998, %v2186, 0
        %v2315 = vsel %vm998, %v2188, 0
        %v2317 = vsel %vm998, %v2190, 0
        %v2319 = vsel %vm998, %v2192, 0
        %v2321 = vsel %vm998, %v2194, 0
        %v2323 = vsel %vm998, %v2196, 0
        %v2325 = vsel %vm998, %v2198, 0
        %v2327 = vsel %vm998, %v2200, 0
        %v2329 = vsel %vm998, %v2202, 0
        %v2331 = vsel %vm998, %v2204, 0
        %v2333 = vsel %vm998, %v2206, 0
        %v2335 = vsel %vm998, %v2208, 0
        %v2337 = vsel %vm998, %v2210, 0
        %v2339 = vsel %vm998, %v2212, 0
        %v2341 = vsel %vm998, %v2214, 0
        %v2343 = vsel %vm998, %v2216, 0
        %2345 = vmatprep.subr.mxu0 0.0
        %2346 = vmatpush1.xpose.msra.mxu0 %v2281
        %2347 = vmatprep.subr.mxu0 0.0
        %2348 = vmatpush1.xpose.msra.mxu0 %v2283
        %2349 = vmatprep.subr.mxu0 0.0
        %2350 = vmatpush1.xpose.msra.mxu0 %v2285
        %2351 = vmatprep.subr.mxu0 0.0
        %2352 = vmatpush1.xpose.msra.mxu0 %v2287
        %2353 = vmatprep.subr.mxu0 0.0
        %2354 = vmatpush1.xpose.msra.mxu0 %v2289
        %2355 = vmatprep.subr.mxu0 0.0
        %2356 = vmatpush1.xpose.msra.mxu0 %v2291
        %2357 = vmatprep.subr.mxu0 0.0
        %2358 = vmatpush1.xpose.msra.mxu0 %v2293
        %2359 = vmatprep.subr.mxu0 0.0
        %2360 = vmatpush1.xpose.msra.mxu0 %v2295
        %2361 = vmatprep.subr.mxu0 0.0
        %2362 = vmatpush1.xpose.msra.mxu0 %v2297
        %2363 = vmatprep.subr.mxu0 0.0
        %2364 = vmatpush1.xpose.msra.mxu0 %v2299
        %2365 = vmatprep.subr.mxu0 0.0
        %2366 = vmatpush1.xpose.msra.mxu0 %v2301
        %2367 = vmatprep.subr.mxu0 0.0
        %2368 = vmatpush1.xpose.msra.mxu0 %v2303
        %2369 = vmatprep.subr.mxu0 0.0
        %2370 = vmatpush1.xpose.msra.mxu0 %v2305
        %2371 = vmatprep.subr.mxu0 0.0
        %2372 = vmatpush1.xpose.msra.mxu0 %v2307
        %2373 = vmatprep.subr.mxu0 0.0
        %2374 = vmatpush1.xpose.msra.mxu0 %v2309
        %2375 = vmatprep.subr.mxu0 0.0
        %2376 = vmatpush1.xpose.msra.mxu0 %v2311
        %2377 = vmatprep.subr.mxu0 0.0
        %2378 = vmatpush1.xpose.msra.mxu0 %v2313
        %2379 = vmatprep.subr.mxu0 0.0
        %2380 = vmatpush1.xpose.msra.mxu0 %v2315
        %2381 = vmatprep.subr.mxu0 0.0
        %2382 = vmatpush1.xpose.msra.mxu0 %v2317
        %2383 = vmatprep.subr.mxu0 0.0
        %2384 = vmatpush1.xpose.msra.mxu0 %v2319
        %2385 = vmatprep.subr.mxu0 0.0
        %2386 = vmatpush1.xpose.msra.mxu0 %v2321
        %2387 = vmatprep.subr.mxu0 0.0
        %2388 = vmatpush1.xpose.msra.mxu0 %v2323
        %2389 = vmatprep.subr.mxu0 0.0
        %2390 = vmatpush1.xpose.msra.mxu0 %v2325
        %2391 = vmatprep.subr.mxu0 0.0
        %2392 = vmatpush1.xpose.msra.mxu0 %v2327
        %2393 = vmatprep.subr.mxu0 0.0
        %2394 = vmatpush1.xpose.msra.mxu0 %v2329
        %2395 = vmatprep.subr.mxu0 0.0
        %2396 = vmatpush1.xpose.msra.mxu0 %v2331
        %2397 = vmatprep.subr.mxu0 0.0
        %2398 = vmatpush1.xpose.msra.mxu0 %v2333
        %2399 = vmatprep.subr.mxu0 0.0
        %2400 = vmatpush1.xpose.msra.mxu0 %v2335
        %2401 = vmatprep.subr.mxu0 0.0
        %2402 = vmatpush1.xpose.msra.mxu0 %v2337
        %2403 = vmatprep.subr.mxu0 0.0
        %2404 = vmatpush1.xpose.msra.mxu0 %v2339
        %2405 = vmatprep.subr.mxu0 0.0
        %2406 = vmatpush1.xpose.msra.mxu0 %v2341
        %2407 = vmatprep.subr.mxu0 0.0
        %2408 = vmatpush1.xpose.msra.mxu0 %v2343
        %2409 = vmatprep.mubr.f32.mxu0 0.0
        %2410 = vmatmul.mubr.f32.gmra.mrb[0].mxu0 %v2217
        %v2411 = vpop.f32.mrb[0].mxu0
        %v2412 = vadd.f32 0.0, %v2411
        %v2413 = vpop.f32.mrb[0].mxu0
        %v2414 = vadd.f32 0.0, %v2413
        %2415 = vmatprep.mubr.f32.mxu0 0.0
        %2416 = vmatmul.mubr.f32.gmra.mrb[0].mxu0 %v2219
        %v2417 = vpop.f32.mrb[0].mxu0
        %v2418 = vadd.f32 0.0, %v2417
        %v2419 = vpop.f32.mrb[0].mxu0
        %v2420 = vadd.f32 0.0, %v2419
        %2421 = vmatprep.mubr.f32.mxu0 0.0
        %2422 = vmatmul.mubr.f32.gmra.mrb[0].mxu0 %v2221
        %v2423 = vpop.f32.mrb[0].mxu0
        %v2424 = vadd.f32 0.0, %v2423
        %v2425 = vpop.f32.mrb[0].mxu0
        %v2426 = vadd.f32 0.0, %v2425
        %2427 = vmatprep.mubr.f32.mxu0 0.0
        %2428 = vmatmul.mubr.f32.gmra.mrb[0].mxu0 %v2223
        %v2429 = vpop.f32.mrb[0].mxu0
        %v2430 = vadd.f32 0.0, %v2429
        %v2431 = vpop.f32.mrb[0].mxu0
        %v2432 = vadd.f32 0.0, %v2431
        %2433 = vmatprep.mubr.f32.mxu0 0.0
        %2434 = vmatmul.mubr.f32.gmra.mrb[0].mxu0 %v2225
        %v2435 = vpop.f32.mrb[0].mxu0
        %v2436 = vadd.f32 0.0, %v2435
        %v2437 = vpop.f32.mrb[0].mxu0
        %v2438 = vadd.f32 0.0, %v2437
        %2439 = vmatprep.mubr.f32.mxu0 0.0
        %2440 = vmatmul.mubr.f32.gmra.mrb[0].mxu0 %v2227
        %v2441 = vpop.f32.mrb[0].mxu0
        %v2442 = vadd.f32 0.0, %v2441
        %v2443 = vpop.f32.mrb[0].mxu0
        %v2444 = vadd.f32 0.0, %v2443
        %2445 = vmatprep.mubr.f32.mxu0 0.0
        %2446 = vmatmul.mubr.f32.gmra.mrb[0].mxu0 %v2229
        %v2447 = vpop.f32.mrb[0].mxu0
        %v2448 = vadd.f32 0.0, %v2447
        %v2449 = vpop.f32.mrb[0].mxu0
        %v2450 = vadd.f32 0.0, %v2449
        %2451 = vmatprep.mubr.f32.mxu0 0.0
        %2452 = vmatmul.mubr.f32.gmra.mrb[0].mxu0 %v2231
        %v2453 = vpop.f32.mrb[0].mxu0
        %v2454 = vadd.f32 0.0, %v2453
        %v2455 = vpop.f32.mrb[0].mxu0
        %v2456 = vadd.f32 0.0, %v2455
        %2457 = vmatprep.mubr.f32.mxu0 0.0
        %2458 = vmatmul.mubr.f32.gmra.mrb[0].mxu0 %v2233
        %v2459 = vpop.f32.mrb[0].mxu0
        %v2460 = vadd.f32 0.0, %v2459
        %v2461 = vpop.f32.mrb[0].mxu0
        %v2462 = vadd.f32 0.0, %v2461
        %2463 = vmatprep.mubr.f32.mxu0 0.0
        %2464 = vmatmul.mubr.f32.gmra.mrb[0].mxu0 %v2235
        %v2465 = vpop.f32.mrb[0].mxu0
        %v2466 = vadd.f32 0.0, %v2465
        %v2467 = vpop.f32.mrb[0].mxu0
        %v2468 = vadd.f32 0.0, %v2467
        %2469 = vmatprep.mubr.f32.mxu0 0.0
        %2470 = vmatmul.mubr.f32.gmra.mrb[0].mxu0 %v2237
        %v2471 = vpop.f32.mrb[0].mxu0
        %v2472 = vadd.f32 0.0, %v2471
        %v2473 = vpop.f32.mrb[0].mxu0
        %v2474 = vadd.f32 0.0, %v2473
        %2475 = vmatprep.mubr.f32.mxu0 0.0
        %2476 = vmatmul.mubr.f32.gmra.mrb[0].mxu0 %v2239
        %v2477 = vpop.f32.mrb[0].mxu0
        %v2478 = vadd.f32 0.0, %v2477
        %v2479 = vpop.f32.mrb[0].mxu0
        %v2480 = vadd.f32 0.0, %v2479
        %2481 = vmatprep.mubr.f32.mxu0 0.0
        %2482 = vmatmul.mubr.f32.gmra.mrb[0].mxu0 %v2241
        %v2483 = vpop.f32.mrb[0].mxu0
        %v2484 = vadd.f32 0.0, %v2483
        %v2485 = vpop.f32.mrb[0].mxu0
        %v2486 = vadd.f32 0.0, %v2485
        %2487 = vmatprep.mubr.f32.mxu0 0.0
        %2488 = vmatmul.mubr.f32.gmra.mrb[0].mxu0 %v2243
        %v2489 = vpop.f32.mrb[0].mxu0
        %v2490 = vadd.f32 0.0, %v2489
        %v2491 = vpop.f32.mrb[0].mxu0
        %v2492 = vadd.f32 0.0, %v2491
        %2493 = vmatprep.mubr.f32.mxu0 0.0
        %2494 = vmatmul.mubr.f32.gmra.mrb[0].mxu0 %v2245
        %v2495 = vpop.f32.mrb[0].mxu0
        %v2496 = vadd.f32 0.0, %v2495
        %v2497 = vpop.f32.mrb[0].mxu0
        %v2498 = vadd.f32 0.0, %v2497
        %2499 = vmatprep.mubr.f32.mxu0 0.0
        %2500 = vmatmul.mubr.f32.gmra.mrb[0].mxu0 %v2247
        %v2501 = vpop.f32.mrb[0].mxu0
        %v2502 = vadd.f32 0.0, %v2501
        %v2503 = vpop.f32.mrb[0].mxu0
        %v2504 = vadd.f32 0.0, %v2503
        %2505 = vmatprep.mubr.f32.mxu0 0.0
        %2506 = vmatmul.mubr.f32.gmra.mrb[0].mxu0 %v2249
        %v2507 = vpop.f32.mrb[0].mxu0
        %v2508 = vadd.f32 0.0, %v2507
        %v2509 = vpop.f32.mrb[0].mxu0
        %v2510 = vadd.f32 0.0, %v2509
        %2511 = vmatprep.mubr.f32.mxu0 0.0
        %2512 = vmatmul.mubr.f32.gmra.mrb[0].mxu0 %v2251
        %v2513 = vpop.f32.mrb[0].mxu0
        %v2514 = vadd.f32 0.0, %v2513
        %v2515 = vpop.f32.mrb[0].mxu0
        %v2516 = vadd.f32 0.0, %v2515
        %2517 = vmatprep.mubr.f32.mxu0 0.0
        %2518 = vmatmul.mubr.f32.gmra.mrb[0].mxu0 %v2253
        %v2519 = vpop.f32.mrb[0].mxu0
        %v2520 = vadd.f32 0.0, %v2519
        %v2521 = vpop.f32.mrb[0].mxu0
        %v2522 = vadd.f32 0.0, %v2521
        %2523 = vmatprep.mubr.f32.mxu0 0.0
        %2524 = vmatmul.mubr.f32.gmra.mrb[0].mxu0 %v2255
        %v2525 = vpop.f32.mrb[0].mxu0
        %v2526 = vadd.f32 0.0, %v2525
        %v2527 = vpop.f32.mrb[0].mxu0
        %v2528 = vadd.f32 0.0, %v2527
        %2529 = vmatprep.mubr.f32.mxu0 0.0
        %2530 = vmatmul.mubr.f32.gmra.mrb[0].mxu0 %v2257
        %v2531 = vpop.f32.mrb[0].mxu0
        %v2532 = vadd.f32 0.0, %v2531
        %v2533 = vpop.f32.mrb[0].mxu0
        %v2534 = vadd.f32 0.0, %v2533
        %2535 = vmatprep.mubr.f32.mxu0 0.0
        %2536 = vmatmul.mubr.f32.gmra.mrb[0].mxu0 %v2259
        %v2537 = vpop.f32.mrb[0].mxu0
        %v2538 = vadd.f32 0.0, %v2537
        %v2539 = vpop.f32.mrb[0].mxu0
        %v2540 = vadd.f32 0.0, %v2539
        %2541 = vmatprep.mubr.f32.mxu0 0.0
        %2542 = vmatmul.mubr.f32.gmra.mrb[0].mxu0 %v2261
        %v2543 = vpop.f32.mrb[0].mxu0
        %v2544 = vadd.f32 0.0, %v2543
        %v2545 = vpop.f32.mrb[0].mxu0
        %v2546 = vadd.f32 0.0, %v2545
        %2547 = vmatprep.mubr.f32.mxu0 0.0
        %2548 = vmatmul.mubr.f32.gmra.mrb[0].mxu0 %v2263
        %v2549 = vpop.f32.mrb[0].mxu0
        %v2550 = vadd.f32 0.0, %v2549
        %v2551 = vpop.f32.mrb[0].mxu0
        %v2552 = vadd.f32 0.0, %v2551
        %2553 = vmatprep.mubr.f32.mxu0 0.0
        %2554 = vmatmul.mubr.f32.gmra.mrb[0].mxu0 %v2265
        %v2555 = vpop.f32.mrb[0].mxu0
        %v2556 = vadd.f32 0.0, %v2555
        %v2557 = vpop.f32.mrb[0].mxu0
        %v2558 = vadd.f32 0.0, %v2557
        %2559 = vmatprep.mubr.f32.mxu0 0.0
        %2560 = vmatmul.mubr.f32.gmra.mrb[0].mxu0 %v2267
        %v2561 = vpop.f32.mrb[0].mxu0
        %v2562 = vadd.f32 0.0, %v2561
        %v2563 = vpop.f32.mrb[0].mxu0
        %v2564 = vadd.f32 0.0, %v2563
        %2565 = vmatprep.mubr.f32.mxu0 0.0
        %2566 = vmatmul.mubr.f32.gmra.mrb[0].mxu0 %v2269
        %v2567 = vpop.f32.mrb[0].mxu0
        %v2568 = vadd.f32 0.0, %v2567
        %v2569 = vpop.f32.mrb[0].mxu0
        %v2570 = vadd.f32 0.0, %v2569
        %2571 = vmatprep.mubr.f32.mxu0 0.0
        %2572 = vmatmul.mubr.f32.gmra.mrb[0].mxu0 %v2271
        %v2573 = vpop.f32.mrb[0].mxu0
        %v2574 = vadd.f32 0.0, %v2573
        %v2575 = vpop.f32.mrb[0].mxu0
        %v2576 = vadd.f32 0.0, %v2575
        %2577 = vmatprep.mubr.f32.mxu0 0.0
        %2578 = vmatmul.mubr.f32.gmra.mrb[0].mxu0 %v2273
        %v2579 = vpop.f32.mrb[0].mxu0
        %v2580 = vadd.f32 0.0, %v2579
        %v2581 = vpop.f32.mrb[0].mxu0
        %v2582 = vadd.f32 0.0, %v2581
        %2583 = vmatprep.mubr.f32.mxu0 0.0
        %2584 = vmatmul.mubr.f32.gmra.mrb[0].mxu0 %v2275
        %v2585 = vpop.f32.mrb[0].mxu0
        %v2586 = vadd.f32 0.0, %v2585
        %v2587 = vpop.f32.mrb[0].mxu0
        %v2588 = vadd.f32 0.0, %v2587
        %2589 = vmatprep.mubr.f32.mxu0 0.0
        %2590 = vmatmul.mubr.f32.gmra.mrb[0].mxu0 %v2277
        %v2591 = vpop.f32.mrb[0].mxu0
        %v2592 = vadd.f32 0.0, %v2591
        %v2593 = vpop.f32.mrb[0].mxu0
        %v2594 = vadd.f32 0.0, %v2593
        %2595 = vmatprep.mubr.f32.mxu0 0.0
        %2596 = vmatmul.mubr.f32.gmra.mrb[0].mxu0 %v2279
        %v2597 = vpop.f32.mrb[0].mxu0
        %v2598 = vadd.f32 0.0, %v2597
        %v2599 = vpop.f32.mrb[0].mxu0
        %v2600 = vadd.f32 0.0, %v2599
        %2601 = vdwg.mxu0
        %v2602 = vmax.f32 %v2412, %v2414
        %2603 = vmax.xlane.f32.xlu0 %v2602
        %v2604 = vpop.xlane.xlu0 %2603
        %v2605 = vmax.f32 %v2418, %v2420
        %2606 = vmax.xlane.f32.xlu0 %v2605
        %v2607 = vpop.xlane.xlu0 %2606
        %v2608 = vmax.f32 %v2424, %v2426
        %2609 = vmax.xlane.f32.xlu0 %v2608
        %v2610 = vpop.xlane.xlu0 %2609
        %v2611 = vmax.f32 %v2430, %v2432
        %2612 = vmax.xlane.f32.xlu0 %v2611
        %v2613 = vpop.xlane.xlu0 %2612
        %v2614 = vmax.f32 %v2436, %v2438
        %2615 = vmax.xlane.f32.xlu0 %v2614
        %v2616 = vpop.xlane.xlu0 %2615
        %v2617 = vmax.f32 %v2442, %v2444
        %2618 = vmax.xlane.f32.xlu0 %v2617
        %v2619 = vpop.xlane.xlu0 %2618
        %v2620 = vmax.f32 %v2448, %v2450
        %2621 = vmax.xlane.f32.xlu0 %v2620
        %v2622 = vpop.xlane.xlu0 %2621
        %v2623 = vmax.f32 %v2454, %v2456
        %2624 = vmax.xlane.f32.xlu0 %v2623
        %v2625 = vpop.xlane.xlu0 %2624
        %v2626 = vmax.f32 %v2460, %v2462
        %2627 = vmax.xlane.f32.xlu0 %v2626
        %v2628 = vpop.xlane.xlu0 %2627
        %v2629 = vmax.f32 %v2466, %v2468
        %2630 = vmax.xlane.f32.xlu0 %v2629
        %v2631 = vpop.xlane.xlu0 %2630
        %v2632 = vmax.f32 %v2472, %v2474
        %2633 = vmax.xlane.f32.xlu0 %v2632
        %v2634 = vpop.xlane.xlu0 %2633
        %v2635 = vmax.f32 %v2478, %v2480
        %2636 = vmax.xlane.f32.xlu0 %v2635
        %v2637 = vpop.xlane.xlu0 %2636
        %v2638 = vmax.f32 %v2484, %v2486
        %2639 = vmax.xlane.f32.xlu0 %v2638
        %v2640 = vpop.xlane.xlu0 %2639
        %v2641 = vmax.f32 %v2490, %v2492
        %2642 = vmax.xlane.f32.xlu0 %v2641
        %v2643 = vpop.xlane.xlu0 %2642
        %v2644 = vmax.f32 %v2496, %v2498
        %2645 = vmax.xlane.f32.xlu0 %v2644
        %v2646 = vpop.xlane.xlu0 %2645
        %v2647 = vmax.f32 %v2502, %v2504
        %2648 = vmax.xlane.f32.xlu0 %v2647
        %v2649 = vpop.xlane.xlu0 %2648
        %v2650 = vmax.f32 %v2508, %v2510
        %2651 = vmax.xlane.f32.xlu0 %v2650
        %v2652 = vpop.xlane.xlu0 %2651
        %v2653 = vmax.f32 %v2514, %v2516
        %2654 = vmax.xlane.f32.xlu0 %v2653
        %v2655 = vpop.xlane.xlu0 %2654
        %v2656 = vmax.f32 %v2520, %v2522
        %2657 = vmax.xlane.f32.xlu0 %v2656
        %v2658 = vpop.xlane.xlu0 %2657
        %v2659 = vmax.f32 %v2526, %v2528
        %2660 = vmax.xlane.f32.xlu0 %v2659
        %v2661 = vpop.xlane.xlu0 %2660
        %v2662 = vmax.f32 %v2532, %v2534
        %2663 = vmax.xlane.f32.xlu0 %v2662
        %v2664 = vpop.xlane.xlu0 %2663
        %v2665 = vmax.f32 %v2538, %v2540
        %2666 = vmax.xlane.f32.xlu0 %v2665
        %v2667 = vpop.xlane.xlu0 %2666
        %v2668 = vmax.f32 %v2544, %v2546
        %2669 = vmax.xlane.f32.xlu0 %v2668
        %v2670 = vpop.xlane.xlu0 %2669
        %v2671 = vmax.f32 %v2550, %v2552
        %2672 = vmax.xlane.f32.xlu0 %v2671
        %v2673 = vpop.xlane.xlu0 %2672
        %v2674 = vmax.f32 %v2556, %v2558
        %2675 = vmax.xlane.f32.xlu0 %v2674
        %v2676 = vpop.xlane.xlu0 %2675
        %v2677 = vmax.f32 %v2562, %v2564
        %2678 = vmax.xlane.f32.xlu0 %v2677
        %v2679 = vpop.xlane.xlu0 %2678
        %v2680 = vmax.f32 %v2568, %v2570
        %2681 = vmax.xlane.f32.xlu0 %v2680
        %v2682 = vpop.xlane.xlu0 %2681
        %v2683 = vmax.f32 %v2574, %v2576
        %2684 = vmax.xlane.f32.xlu0 %v2683
        %v2685 = vpop.xlane.xlu0 %2684
        %v2686 = vmax.f32 %v2580, %v2582
        %2687 = vmax.xlane.f32.xlu0 %v2686
        %v2688 = vpop.xlane.xlu0 %2687
        %v2689 = vmax.f32 %v2586, %v2588
        %2690 = vmax.xlane.f32.xlu0 %v2689
        %v2691 = vpop.xlane.xlu0 %2690
        %v2692 = vmax.f32 %v2592, %v2594
        %2693 = vmax.xlane.f32.xlu0 %v2692
        %v2694 = vpop.xlane.xlu0 %2693
        %v2695 = vmax.f32 %v2598, %v2600
        %2696 = vmax.xlane.f32.xlu0 %v2695
        %v2697 = vpop.xlane.xlu0 %2696
        %v2698 = vsub.f32 %v2412, %v2604
        %v2699 = vsub.f32 %v2414, %v2604
        %v2700 = vsub.f32 %v2418, %v2607
        %v2701 = vsub.f32 %v2420, %v2607
        %v2702 = vsub.f32 %v2424, %v2610
        %v2703 = vsub.f32 %v2426, %v2610
        %v2704 = vsub.f32 %v2430, %v2613
        %v2705 = vsub.f32 %v2432, %v2613
        %v2706 = vsub.f32 %v2436, %v2616
        %v2707 = vsub.f32 %v2438, %v2616
        %v2708 = vsub.f32 %v2442, %v2619
        %v2709 = vsub.f32 %v2444, %v2619
        %v2710 = vsub.f32 %v2448, %v2622
        %v2711 = vsub.f32 %v2450, %v2622
        %v2712 = vsub.f32 %v2454, %v2625
        %v2713 = vsub.f32 %v2456, %v2625
        %v2714 = vsub.f32 %v2460, %v2628
        %v2715 = vsub.f32 %v2462, %v2628
        %v2716 = vsub.f32 %v2466, %v2631
        %v2717 = vsub.f32 %v2468, %v2631
        %v2718 = vsub.f32 %v2472, %v2634
        %v2719 = vsub.f32 %v2474, %v2634
        %v2720 = vsub.f32 %v2478, %v2637
        %v2721 = vsub.f32 %v2480, %v2637
        %v2722 = vsub.f32 %v2484, %v2640
        %v2723 = vsub.f32 %v2486, %v2640
        %v2724 = vsub.f32 %v2490, %v2643
        %v2725 = vsub.f32 %v2492, %v2643
        %v2726 = vsub.f32 %v2496, %v2646
        %v2727 = vsub.f32 %v2498, %v2646
        %v2728 = vsub.f32 %v2502, %v2649
        %v2729 = vsub.f32 %v2504, %v2649
        %v2730 = vsub.f32 %v2508, %v2652
        %v2731 = vsub.f32 %v2510, %v2652
        %v2732 = vsub.f32 %v2514, %v2655
        %v2733 = vsub.f32 %v2516, %v2655
        %v2734 = vsub.f32 %v2520, %v2658
        %v2735 = vsub.f32 %v2522, %v2658
        %v2736 = vsub.f32 %v2526, %v2661
        %v2737 = vsub.f32 %v2528, %v2661
        %v2738 = vsub.f32 %v2532, %v2664
        %v2739 = vsub.f32 %v2534, %v2664
        %v2740 = vsub.f32 %v2538, %v2667
        %v2741 = vsub.f32 %v2540, %v2667
        %v2742 = vsub.f32 %v2544, %v2670
        %v2743 = vsub.f32 %v2546, %v2670
        %v2744 = vsub.f32 %v2550, %v2673
        %v2745 = vsub.f32 %v2552, %v2673
        %v2746 = vsub.f32 %v2556, %v2676
        %v2747 = vsub.f32 %v2558, %v2676
        %v2748 = vsub.f32 %v2562, %v2679
        %v2749 = vsub.f32 %v2564, %v2679
        %v2750 = vsub.f32 %v2568, %v2682
        %v2751 = vsub.f32 %v2570, %v2682
        %v2752 = vsub.f32 %v2574, %v2685
        %v2753 = vsub.f32 %v2576, %v2685
        %v2754 = vsub.f32 %v2580, %v2688
        %v2755 = vsub.f32 %v2582, %v2688
        %v2756 = vsub.f32 %v2586, %v2691
        %v2757 = vsub.f32 %v2588, %v2691
        %v2758 = vsub.f32 %v2592, %v2694
        %v2759 = vsub.f32 %v2594, %v2694
        %v2760 = vsub.f32 %v2598, %v2697
        %v2761 = vsub.f32 %v2600, %v2697
        %v2762 = vmul.f32 %v2698, 1.442695
        %v2763 = vpow.pop %v2762
        %v2764 = vmul.f32 %v2699, 1.442695
        %v2765 = vpow.pop %v2764
        %v2766 = vmul.f32 %v2700, 1.442695
        %v2767 = vpow.pop %v2766
        %v2768 = vmul.f32 %v2701, 1.442695
        %v2769 = vpow.pop %v2768
        %v2770 = vmul.f32 %v2702, 1.442695
        %v2771 = vpow.pop %v2770
        %v2772 = vmul.f32 %v2703, 1.442695
        %v2773 = vpow.pop %v2772
        %v2774 = vmul.f32 %v2704, 1.442695
        %v2775 = vpow.pop %v2774
        %v2776 = vmul.f32 %v2705, 1.442695
        %v2777 = vpow.pop %v2776
        %v2778 = vmul.f32 %v2706, 1.442695
        %v2779 = vpow.pop %v2778
        %v2780 = vmul.f32 %v2707, 1.442695
        %v2781 = vpow.pop %v2780
        %v2782 = vmul.f32 %v2708, 1.442695
        %v2783 = vpow.pop %v2782
        %v2784 = vmul.f32 %v2709, 1.442695
        %v2785 = vpow.pop %v2784
        %v2786 = vmul.f32 %v2710, 1.442695
        %v2787 = vpow.pop %v2786
        %v2788 = vmul.f32 %v2711, 1.442695
        %v2789 = vpow.pop %v2788
        %v2790 = vmul.f32 %v2712, 1.442695
        %v2791 = vpow.pop %v2790
        %v2792 = vmul.f32 %v2713, 1.442695
        %v2793 = vpow.pop %v2792
        %v2794 = vmul.f32 %v2714, 1.442695
        %v2795 = vpow.pop %v2794
        %v2796 = vmul.f32 %v2715, 1.442695
        %v2797 = vpow.pop %v2796
        %v2798 = vmul.f32 %v2716, 1.442695
        %v2799 = vpow.pop %v2798
        %v2800 = vmul.f32 %v2717, 1.442695
        %v2801 = vpow.pop %v2800
        %v2802 = vmul.f32 %v2718, 1.442695
        %v2803 = vpow.pop %v2802
        %v2804 = vmul.f32 %v2719, 1.442695
        %v2805 = vpow.pop %v2804
        %v2806 = vmul.f32 %v2720, 1.442695
        %v2807 = vpow.pop %v2806
        %v2808 = vmul.f32 %v2721, 1.442695
        %v2809 = vpow.pop %v2808
        %v2810 = vmul.f32 %v2722, 1.442695
        %v2811 = vpow.pop %v2810
        %v2812 = vmul.f32 %v2723, 1.442695
        %v2813 = vpow.pop %v2812
        %v2814 = vmul.f32 %v2724, 1.442695
        %v2815 = vpow.pop %v2814
        %v2816 = vmul.f32 %v2725, 1.442695
        %v2817 = vpow.pop %v2816
        %v2818 = vmul.f32 %v2726, 1.442695
        %v2819 = vpow.pop %v2818
        %v2820 = vmul.f32 %v2727, 1.442695
        %v2821 = vpow.pop %v2820
        %v2822 = vmul.f32 %v2728, 1.442695
        %v2823 = vpow.pop %v2822
        %v2824 = vmul.f32 %v2729, 1.442695
        %v2825 = vpow.pop %v2824
        %v2826 = vmul.f32 %v2730, 1.442695
        %v2827 = vpow.pop %v2826
        %v2828 = vmul.f32 %v2731, 1.442695
        %v2829 = vpow.pop %v2828
        %v2830 = vmul.f32 %v2732, 1.442695
        %v2831 = vpow.pop %v2830
        %v2832 = vmul.f32 %v2733, 1.442695
        %v2833 = vpow.pop %v2832
        %v2834 = vmul.f32 %v2734, 1.442695
        %v2835 = vpow.pop %v2834
        %v2836 = vmul.f32 %v2735, 1.442695
        %v2837 = vpow.pop %v2836
        %v2838 = vmul.f32 %v2736, 1.442695
        %v2839 = vpow.pop %v2838
        %v2840 = vmul.f32 %v2737, 1.442695
        %v2841 = vpow.pop %v2840
        %v2842 = vmul.f32 %v2738, 1.442695
        %v2843 = vpow.pop %v2842
        %v2844 = vmul.f32 %v2739, 1.442695
        %v2845 = vpow.pop %v2844
        %v2846 = vmul.f32 %v2740, 1.442695
        %v2847 = vpow.pop %v2846
        %v2848 = vmul.f32 %v2741, 1.442695
        %v2849 = vpow.pop %v2848
        %v2850 = vmul.f32 %v2742, 1.442695
        %v2851 = vpow.pop %v2850
        %v2852 = vmul.f32 %v2743, 1.442695
        %v2853 = vpow.pop %v2852
        %v2854 = vmul.f32 %v2744, 1.442695
        %v2855 = vpow.pop %v2854
        %v2856 = vmul.f32 %v2745, 1.442695
        %v2857 = vpow.pop %v2856
        %v2858 = vmul.f32 %v2746, 1.442695
        %v2859 = vpow.pop %v2858
        %v2860 = vmul.f32 %v2747, 1.442695
        %v2861 = vpow.pop %v2860
        %v2862 = vmul.f32 %v2748, 1.442695
        %v2863 = vpow.pop %v2862
        %v2864 = vmul.f32 %v2749, 1.442695
        %v2865 = vpow.pop %v2864
        %v2866 = vmul.f32 %v2750, 1.442695
        %v2867 = vpow.pop %v2866
        %v2868 = vmul.f32 %v2751, 1.442695
        %v2869 = vpow.pop %v2868
        %v2870 = vmul.f32 %v2752, 1.442695
        %v2871 = vpow.pop %v2870
        %v2872 = vmul.f32 %v2753, 1.442695
        %v2873 = vpow.pop %v2872
        %v2874 = vmul.f32 %v2754, 1.442695
        %v2875 = vpow.pop %v2874
        %v2876 = vmul.f32 %v2755, 1.442695
        %v2877 = vpow.pop %v2876
        %v2878 = vmul.f32 %v2756, 1.442695
        %v2879 = vpow.pop %v2878
        %v2880 = vmul.f32 %v2757, 1.442695
        %v2881 = vpow.pop %v2880
        %v2882 = vmul.f32 %v2758, 1.442695
        %v2883 = vpow.pop %v2882
        %v2884 = vmul.f32 %v2759, 1.442695
        %v2885 = vpow.pop %v2884
        %v2886 = vmul.f32 %v2760, 1.442695
        %v2887 = vpow.pop %v2886
        %v2888 = vmul.f32 %v2761, 1.442695
        %v2889 = vpow.pop %v2888
        %v2890 = vadd.f32 %v2763, %v2765
        %2891 = vadd.xlane.f32.xlu0 %v2890
        %v2892 = vpop.xlane.xlu0 %2891
        %v2893 = vadd.f32 %v2767, %v2769
        %2894 = vadd.xlane.f32.xlu0 %v2893
        %v2895 = vpop.xlane.xlu0 %2894
        %v2896 = vadd.f32 %v2771, %v2773
        %2897 = vadd.xlane.f32.xlu0 %v2896
        %v2898 = vpop.xlane.xlu0 %2897
        %v2899 = vadd.f32 %v2775, %v2777
        %2900 = vadd.xlane.f32.xlu0 %v2899
        %v2901 = vpop.xlane.xlu0 %2900
        %v2902 = vadd.f32 %v2779, %v2781
        %2903 = vadd.xlane.f32.xlu0 %v2902
        %v2904 = vpop.xlane.xlu0 %2903
        %v2905 = vadd.f32 %v2783, %v2785
        %2906 = vadd.xlane.f32.xlu0 %v2905
        %v2907 = vpop.xlane.xlu0 %2906
        %v2908 = vadd.f32 %v2787, %v2789
        %2909 = vadd.xlane.f32.xlu0 %v2908
        %v2910 = vpop.xlane.xlu0 %2909
        %v2911 = vadd.f32 %v2791, %v2793
        %2912 = vadd.xlane.f32.xlu0 %v2911
        %v2913 = vpop.xlane.xlu0 %2912
        %v2914 = vadd.f32 %v2795, %v2797
        %2915 = vadd.xlane.f32.xlu0 %v2914
        %v2916 = vpop.xlane.xlu0 %2915
        %v2917 = vadd.f32 %v2799, %v2801
        %2918 = vadd.xlane.f32.xlu0 %v2917
        %v2919 = vpop.xlane.xlu0 %2918
        %v2920 = vadd.f32 %v2803, %v2805
        %2921 = vadd.xlane.f32.xlu0 %v2920
        %v2922 = vpop.xlane.xlu0 %2921
        %v2923 = vadd.f32 %v2807, %v2809
        %2924 = vadd.xlane.f32.xlu0 %v2923
        %v2925 = vpop.xlane.xlu0 %2924
        %v2926 = vadd.f32 %v2811, %v2813
        %2927 = vadd.xlane.f32.xlu0 %v2926
        %v2928 = vpop.xlane.xlu0 %2927
        %v2929 = vadd.f32 %v2815, %v2817
        %2930 = vadd.xlane.f32.xlu0 %v2929
        %v2931 = vpop.xlane.xlu0 %2930
        %v2932 = vadd.f32 %v2819, %v2821
        %2933 = vadd.xlane.f32.xlu0 %v2932
        %v2934 = vpop.xlane.xlu0 %2933
        %v2935 = vadd.f32 %v2823, %v2825
        %2936 = vadd.xlane.f32.xlu0 %v2935
        %v2937 = vpop.xlane.xlu0 %2936
        %v2938 = vadd.f32 %v2827, %v2829
        %2939 = vadd.xlane.f32.xlu0 %v2938
        %v2940 = vpop.xlane.xlu0 %2939
        %v2941 = vadd.f32 %v2831, %v2833
        %2942 = vadd.xlane.f32.xlu0 %v2941
        %v2943 = vpop.xlane.xlu0 %2942
        %v2944 = vadd.f32 %v2835, %v2837
        %2945 = vadd.xlane.f32.xlu0 %v2944
        %v2946 = vpop.xlane.xlu0 %2945
        %v2947 = vadd.f32 %v2839, %v2841
        %2948 = vadd.xlane.f32.xlu0 %v2947
        %v2949 = vpop.xlane.xlu0 %2948
        %v2950 = vadd.f32 %v2843, %v2845
        %2951 = vadd.xlane.f32.xlu0 %v2950
        %v2952 = vpop.xlane.xlu0 %2951
        %v2953 = vadd.f32 %v2847, %v2849
        %2954 = vadd.xlane.f32.xlu0 %v2953
        %v2955 = vpop.xlane.xlu0 %2954
        %v2956 = vadd.f32 %v2851, %v2853
        %2957 = vadd.xlane.f32.xlu0 %v2956
        %v2958 = vpop.xlane.xlu0 %2957
        %v2959 = vadd.f32 %v2855, %v2857
        %2960 = vadd.xlane.f32.xlu0 %v2959
        %v2961 = vpop.xlane.xlu0 %2960
        %v2962 = vadd.f32 %v2859, %v2861
        %2963 = vadd.xlane.f32.xlu0 %v2962
        %v2964 = vpop.xlane.xlu0 %2963
        %v2965 = vadd.f32 %v2863, %v2865
        %2966 = vadd.xlane.f32.xlu0 %v2965
        %v2967 = vpop.xlane.xlu0 %2966
        %v2968 = vadd.f32 %v2867, %v2869
        %2969 = vadd.xlane.f32.xlu0 %v2968
        %v2970 = vpop.xlane.xlu0 %2969
        %v2971 = vadd.f32 %v2871, %v2873
        %2972 = vadd.xlane.f32.xlu0 %v2971
        %v2973 = vpop.xlane.xlu0 %2972
        %v2974 = vadd.f32 %v2875, %v2877
        %2975 = vadd.xlane.f32.xlu0 %v2974
        %v2976 = vpop.xlane.xlu0 %2975
        %v2977 = vadd.f32 %v2879, %v2881
        %2978 = vadd.xlane.f32.xlu0 %v2977
        %v2979 = vpop.xlane.xlu0 %2978
        %v2980 = vadd.f32 %v2883, %v2885
        %2981 = vadd.xlane.f32.xlu0 %v2980
        %v2982 = vpop.xlane.xlu0 %2981
        %v2983 = vadd.f32 %v2887, %v2889
        %2984 = vadd.xlane.f32.xlu0 %v2983
        %v2985 = vpop.xlane.xlu0 %2984
        %3018 = vrot.lane.b32.xlu0 %v550, 120
        %v3019 = vpop.permute.xlu0 %3018
        %3020 = vrot.lane.b32.xlu0 %v551, 120
        %v3021 = vpop.permute.xlu0 %3020
        %3022 = vrot.lane.b32.xlu0 %v552, 120
        %v3023 = vpop.permute.xlu0 %3022
        %3024 = vrot.lane.b32.xlu0 %v553, 120
        %v3025 = vpop.permute.xlu0 %3024
        %3026 = vrot.lane.b32.xlu0 %v554, 120
        %v3027 = vpop.permute.xlu0 %3026
        %3028 = vrot.lane.b32.xlu0 %v555, 120
        %v3029 = vpop.permute.xlu0 %3028
        %3030 = vrot.lane.b32.xlu0 %v556, 120
        %v3031 = vpop.permute.xlu0 %3030
        %3032 = vrot.lane.b32.xlu0 %v557, 120
        %v3033 = vpop.permute.xlu0 %3032
        %3034 = vrot.lane.b32.xlu0 %v558, 120
        %v3035 = vpop.permute.xlu0 %3034
        %3036 = vrot.lane.b32.xlu0 %v559, 120
        %v3037 = vpop.permute.xlu0 %3036
        %3038 = vrot.lane.b32.xlu0 %v560, 120
        %v3039 = vpop.permute.xlu0 %3038
        %3040 = vrot.lane.b32.xlu0 %v561, 120
        %v3041 = vpop.permute.xlu0 %3040
        %3042 = vrot.lane.b32.xlu0 %v562, 120
        %v3043 = vpop.permute.xlu0 %3042
        %3044 = vrot.lane.b32.xlu0 %v563, 120
        %v3045 = vpop.permute.xlu0 %3044
        %3046 = vrot.lane.b32.xlu0 %v564, 120
        %v3047 = vpop.permute.xlu0 %3046
        %3048 = vrot.lane.b32.xlu0 %v565, 120
        %v3049 = vpop.permute.xlu0 %3048
        %3050 = vrot.lane.b32.xlu0 %v566, 120
        %v3051 = vpop.permute.xlu0 %3050
        %3052 = vrot.lane.b32.xlu0 %v567, 120
        %v3053 = vpop.permute.xlu0 %3052
        %3054 = vrot.lane.b32.xlu0 %v568, 120
        %v3055 = vpop.permute.xlu0 %3054
        %3056 = vrot.lane.b32.xlu0 %v569, 120
        %v3057 = vpop.permute.xlu0 %3056
        %3058 = vrot.lane.b32.xlu0 %v570, 120
        %v3059 = vpop.permute.xlu0 %3058
        %3060 = vrot.lane.b32.xlu0 %v571, 120
        %v3061 = vpop.permute.xlu0 %3060
        %3062 = vrot.lane.b32.xlu0 %v572, 120
        %v3063 = vpop.permute.xlu0 %3062
        %3064 = vrot.lane.b32.xlu0 %v573, 120
        %v3065 = vpop.permute.xlu0 %3064
        %3066 = vrot.lane.b32.xlu0 %v574, 120
        %v3067 = vpop.permute.xlu0 %3066
        %3068 = vrot.lane.b32.xlu0 %v575, 120
        %v3069 = vpop.permute.xlu0 %3068
        %3070 = vrot.lane.b32.xlu0 %v576, 120
        %v3071 = vpop.permute.xlu0 %3070
        %3072 = vrot.lane.b32.xlu0 %v577, 120
        %v3073 = vpop.permute.xlu0 %3072
        %3074 = vrot.lane.b32.xlu0 %v578, 120
        %v3075 = vpop.permute.xlu0 %3074
        %3076 = vrot.lane.b32.xlu0 %v579, 120
        %v3077 = vpop.permute.xlu0 %3076
        %3078 = vrot.lane.b32.xlu0 %v580, 120
        %v3079 = vpop.permute.xlu0 %3078
        %3080 = vrot.lane.b32.xlu0 %v581, 120
        %v3081 = vpop.permute.xlu0 %3080
        %3114 = vmatprep.subr.mxu0 0.0
        %3115 = vmatpush1.msra.mxu0 %v3019
        %3116 = vmatprep.subr.mxu0 0.0
        %3117 = vmatpush1.msra.mxu0 %v3021
        %3118 = vmatprep.subr.mxu0 0.0
        %3119 = vmatpush1.msra.mxu0 %v3023
        %3120 = vmatprep.subr.mxu0 0.0
        %3121 = vmatpush1.msra.mxu0 %v3025
        %3122 = vmatprep.subr.mxu0 0.0
        %3123 = vmatpush1.msra.mxu0 %v3027
        %3124 = vmatprep.subr.mxu0 0.0
        %3125 = vmatpush1.msra.mxu0 %v3029
        %3126 = vmatprep.subr.mxu0 0.0
        %3127 = vmatpush1.msra.mxu0 %v3031
        %3128 = vmatprep.subr.mxu0 0.0
        %3129 = vmatpush1.msra.mxu0 %v3033
        %3130 = vmatprep.subr.mxu0 0.0
        %3131 = vmatpush1.msra.mxu0 %v3035
        %3132 = vmatprep.subr.mxu0 0.0
        %3133 = vmatpush1.msra.mxu0 %v3037
        %3134 = vmatprep.subr.mxu0 0.0
        %3135 = vmatpush1.msra.mxu0 %v3039
        %3136 = vmatprep.subr.mxu0 0.0
        %3137 = vmatpush1.msra.mxu0 %v3041
        %3138 = vmatprep.subr.mxu0 0.0
        %3139 = vmatpush1.msra.mxu0 %v3043
        %3140 = vmatprep.subr.mxu0 0.0
        %3141 = vmatpush1.msra.mxu0 %v3045
        %3142 = vmatprep.subr.mxu0 0.0
        %3143 = vmatpush1.msra.mxu0 %v3047
        %3144 = vmatprep.subr.mxu0 0.0
        %3145 = vmatpush1.msra.mxu0 %v3049
        %3146 = vmatprep.subr.mxu0 0.0
        %3147 = vmatpush1.msra.mxu0 %v3051
        %3148 = vmatprep.subr.mxu0 0.0
        %3149 = vmatpush1.msra.mxu0 %v3053
        %3150 = vmatprep.subr.mxu0 0.0
        %3151 = vmatpush1.msra.mxu0 %v3055
        %3152 = vmatprep.subr.mxu0 0.0
        %3153 = vmatpush1.msra.mxu0 %v3057
        %3154 = vmatprep.subr.mxu0 0.0
        %3155 = vmatpush1.msra.mxu0 %v3059
        %3156 = vmatprep.subr.mxu0 0.0
        %3157 = vmatpush1.msra.mxu0 %v3061
        %3158 = vmatprep.subr.mxu0 0.0
        %3159 = vmatpush1.msra.mxu0 %v3063
        %3160 = vmatprep.subr.mxu0 0.0
        %3161 = vmatpush1.msra.mxu0 %v3065
        %3162 = vmatprep.subr.mxu0 0.0
        %3163 = vmatpush1.msra.mxu0 %v3067
        %3164 = vmatprep.subr.mxu0 0.0
        %3165 = vmatpush1.msra.mxu0 %v3069
        %3166 = vmatprep.subr.mxu0 0.0
        %3167 = vmatpush1.msra.mxu0 %v3071
        %3168 = vmatprep.subr.mxu0 0.0
        %3169 = vmatpush1.msra.mxu0 %v3073
        %3170 = vmatprep.subr.mxu0 0.0
        %3171 = vmatpush1.msra.mxu0 %v3075
        %3172 = vmatprep.subr.mxu0 0.0
        %3173 = vmatpush1.msra.mxu0 %v3077
        %3174 = vmatprep.subr.mxu0 0.0
        %3175 = vmatpush1.msra.mxu0 %v3079
        %3176 = vmatprep.subr.mxu0 0.0
        %3177 = vmatpush1.msra.mxu0 %v3081
        %3178 = vmatprep.mubr.f32.mxu0 %v2765
        %3179 = vmatmul.mubr.f32.gmra.mrb[0].mxu0 %v2763
        %v3180 = vpop.f32.mrb[0].mxu0
        %v3181 = vadd.f32 0.0, %v3180
        %v3182 = vpop.f32.mrb[0].mxu0
        %3183 = vmatprep.mubr.f32.mxu0 %v2769
        %3184 = vmatmul.mubr.f32.gmra.mrb[0].mxu0 %v2767
        %v3185 = vpop.f32.mrb[0].mxu0
        %v3186 = vadd.f32 0.0, %v3185
        %v3187 = vpop.f32.mrb[0].mxu0
        %3188 = vmatprep.mubr.f32.mxu0 %v2773
        %3189 = vmatmul.mubr.f32.gmra.mrb[0].mxu0 %v2771
        %v3190 = vpop.f32.mrb[0].mxu0
        %v3191 = vadd.f32 0.0, %v3190
        %v3192 = vpop.f32.mrb[0].mxu0
        %3193 = vmatprep.mubr.f32.mxu0 %v2777
        %3194 = vmatmul.mubr.f32.gmra.mrb[0].mxu0 %v2775
        %v3195 = vpop.f32.mrb[0].mxu0
        %v3196 = vadd.f32 0.0, %v3195
        %v3197 = vpop.f32.mrb[0].mxu0
        %3198 = vmatprep.mubr.f32.mxu0 %v2781
        %3199 = vmatmul.mubr.f32.gmra.mrb[0].mxu0 %v2779
        %v3200 = vpop.f32.mrb[0].mxu0
        %v3201 = vadd.f32 0.0, %v3200
        %v3202 = vpop.f32.mrb[0].mxu0
        %3203 = vmatprep.mubr.f32.mxu0 %v2785
        %3204 = vmatmul.mubr.f32.gmra.mrb[0].mxu0 %v2783
        %v3205 = vpop.f32.mrb[0].mxu0
        %v3206 = vadd.f32 0.0, %v3205
        %v3207 = vpop.f32.mrb[0].mxu0
        %3208 = vmatprep.mubr.f32.mxu0 %v2789
        %3209 = vmatmul.mubr.f32.gmra.mrb[0].mxu0 %v2787
        %v3210 = vpop.f32.mrb[0].mxu0
        %v3211 = vadd.f32 0.0, %v3210
        %v3212 = vpop.f32.mrb[0].mxu0
        %3213 = vmatprep.mubr.f32.mxu0 %v2793
        %3214 = vmatmul.mubr.f32.gmra.mrb[0].mxu0 %v2791
        %v3215 = vpop.f32.mrb[0].mxu0
        %v3216 = vadd.f32 0.0, %v3215
        %v3217 = vpop.f32.mrb[0].mxu0
        %3218 = vmatprep.mubr.f32.mxu0 %v2797
        %3219 = vmatmul.mubr.f32.gmra.mrb[0].mxu0 %v2795
        %v3220 = vpop.f32.mrb[0].mxu0
        %v3221 = vadd.f32 0.0, %v3220
        %v3222 = vpop.f32.mrb[0].mxu0
        %3223 = vmatprep.mubr.f32.mxu0 %v2801
        %3224 = vmatmul.mubr.f32.gmra.mrb[0].mxu0 %v2799
        %v3225 = vpop.f32.mrb[0].mxu0
        %v3226 = vadd.f32 0.0, %v3225
        %v3227 = vpop.f32.mrb[0].mxu0
        %3228 = vmatprep.mubr.f32.mxu0 %v2805
        %3229 = vmatmul.mubr.f32.gmra.mrb[0].mxu0 %v2803
        %v3230 = vpop.f32.mrb[0].mxu0
        %v3231 = vadd.f32 0.0, %v3230
        %v3232 = vpop.f32.mrb[0].mxu0
        %3233 = vmatprep.mubr.f32.mxu0 %v2809
        %3234 = vmatmul.mubr.f32.gmra.mrb[0].mxu0 %v2807
        %v3235 = vpop.f32.mrb[0].mxu0
        %v3236 = vadd.f32 0.0, %v3235
        %v3237 = vpop.f32.mrb[0].mxu0
        %3238 = vmatprep.mubr.f32.mxu0 %v2813
        %3239 = vmatmul.mubr.f32.gmra.mrb[0].mxu0 %v2811
        %v3240 = vpop.f32.mrb[0].mxu0
        %v3241 = vadd.f32 0.0, %v3240
        %v3242 = vpop.f32.mrb[0].mxu0
        %3243 = vmatprep.mubr.f32.mxu0 %v2817
        %3244 = vmatmul.mubr.f32.gmra.mrb[0].mxu0 %v2815
        %v3245 = vpop.f32.mrb[0].mxu0
        %v3246 = vadd.f32 0.0, %v3245
        %v3247 = vpop.f32.mrb[0].mxu0
        %3248 = vmatprep.mubr.f32.mxu0 %v2821
        %3249 = vmatmul.mubr.f32.gmra.mrb[0].mxu0 %v2819
        %v3250 = vpop.f32.mrb[0].mxu0
        %v3251 = vadd.f32 0.0, %v3250
        %v3252 = vpop.f32.mrb[0].mxu0
        %3253 = vmatprep.mubr.f32.mxu0 %v2825
        %3254 = vmatmul.mubr.f32.gmra.mrb[0].mxu0 %v2823
        %v3255 = vpop.f32.mrb[0].mxu0
        %v3256 = vadd.f32 0.0, %v3255
        %v3257 = vpop.f32.mrb[0].mxu0
        %3258 = vmatprep.mubr.f32.mxu0 %v2829
        %3259 = vmatmul.mubr.f32.gmra.mrb[0].mxu0 %v2827
        %v3260 = vpop.f32.mrb[0].mxu0
        %v3261 = vadd.f32 0.0, %v3260
        %v3262 = vpop.f32.mrb[0].mxu0
        %3263 = vmatprep.mubr.f32.mxu0 %v2833
        %3264 = vmatmul.mubr.f32.gmra.mrb[0].mxu0 %v2831
        %v3265 = vpop.f32.mrb[0].mxu0
        %v3266 = vadd.f32 0.0, %v3265
        %v3267 = vpop.f32.mrb[0].mxu0
        %3268 = vmatprep.mubr.f32.mxu0 %v2837
        %3269 = vmatmul.mubr.f32.gmra.mrb[0].mxu0 %v2835
        %v3270 = vpop.f32.mrb[0].mxu0
        %v3271 = vadd.f32 0.0, %v3270
        %v3272 = vpop.f32.mrb[0].mxu0
        %3273 = vmatprep.mubr.f32.mxu0 %v2841
        %3274 = vmatmul.mubr.f32.gmra.mrb[0].mxu0 %v2839
        %v3275 = vpop.f32.mrb[0].mxu0
        %v3276 = vadd.f32 0.0, %v3275
        %v3277 = vpop.f32.mrb[0].mxu0
        %3278 = vmatprep.mubr.f32.mxu0 %v2845
        %3279 = vmatmul.mubr.f32.gmra.mrb[0].mxu0 %v2843
        %v3280 = vpop.f32.mrb[0].mxu0
        %v3281 = vadd.f32 0.0, %v3280
        %v3282 = vpop.f32.mrb[0].mxu0
        %3283 = vmatprep.mubr.f32.mxu0 %v2849
        %3284 = vmatmul.mubr.f32.gmra.mrb[0].mxu0 %v2847
        %v3285 = vpop.f32.mrb[0].mxu0
        %v3286 = vadd.f32 0.0, %v3285
        %v3287 = vpop.f32.mrb[0].mxu0
        %3288 = vmatprep.mubr.f32.mxu0 %v2853
        %3289 = vmatmul.mubr.f32.gmra.mrb[0].mxu0 %v2851
        %v3290 = vpop.f32.mrb[0].mxu0
        %v3291 = vadd.f32 0.0, %v3290
        %v3292 = vpop.f32.mrb[0].mxu0
        %3293 = vmatprep.mubr.f32.mxu0 %v2857
        %3294 = vmatmul.mubr.f32.gmra.mrb[0].mxu0 %v2855
        %v3295 = vpop.f32.mrb[0].mxu0
        %v3296 = vadd.f32 0.0, %v3295
        %v3297 = vpop.f32.mrb[0].mxu0
        %3298 = vmatprep.mubr.f32.mxu0 %v2861
        %3299 = vmatmul.mubr.f32.gmra.mrb[0].mxu0 %v2859
        %v3300 = vpop.f32.mrb[0].mxu0
        %v3301 = vadd.f32 0.0, %v3300
        %v3302 = vpop.f32.mrb[0].mxu0
        %3303 = vmatprep.mubr.f32.mxu0 %v2865
        %3304 = vmatmul.mubr.f32.gmra.mrb[0].mxu0 %v2863
        %v3305 = vpop.f32.mrb[0].mxu0
        %v3306 = vadd.f32 0.0, %v3305
        %v3307 = vpop.f32.mrb[0].mxu0
        %3308 = vmatprep.mubr.f32.mxu0 %v2869
        %3309 = vmatmul.mubr.f32.gmra.mrb[0].mxu0 %v2867
        %v3310 = vpop.f32.mrb[0].mxu0
        %v3311 = vadd.f32 0.0, %v3310
        %v3312 = vpop.f32.mrb[0].mxu0
        %3313 = vmatprep.mubr.f32.mxu0 %v2873
        %3314 = vmatmul.mubr.f32.gmra.mrb[0].mxu0 %v2871
        %v3315 = vpop.f32.mrb[0].mxu0
        %v3316 = vadd.f32 0.0, %v3315
        %v3317 = vpop.f32.mrb[0].mxu0
        %3318 = vmatprep.mubr.f32.mxu0 %v2877
        %3319 = vmatmul.mubr.f32.gmra.mrb[0].mxu0 %v2875
        %v3320 = vpop.f32.mrb[0].mxu0
        %v3321 = vadd.f32 0.0, %v3320
        %v3322 = vpop.f32.mrb[0].mxu0
        %3323 = vmatprep.mubr.f32.mxu0 %v2881
        %3324 = vmatmul.mubr.f32.gmra.mrb[0].mxu0 %v2879
        %v3325 = vpop.f32.mrb[0].mxu0
        %v3326 = vadd.f32 0.0, %v3325
        %v3327 = vpop.f32.mrb[0].mxu0
        %3328 = vmatprep.mubr.f32.mxu0 %v2885
        %3329 = vmatmul.mubr.f32.gmra.mrb[0].mxu0 %v2883
        %v3330 = vpop.f32.mrb[0].mxu0
        %v3331 = vadd.f32 0.0, %v3330
        %v3332 = vpop.f32.mrb[0].mxu0
        %3333 = vmatprep.mubr.f32.mxu0 %v2889
        %3334 = vmatmul.mubr.f32.gmra.mrb[0].mxu0 %v2887
        %v3335 = vpop.f32.mrb[0].mxu0
        %v3336 = vadd.f32 0.0, %v3335
        %v3337 = vpop.f32.mrb[0].mxu0
        %3338 = vdwg.mxu0
        %v3339 = vrcp.pop %v2892
        %v3340 = vmul.f32 %v3181, %v3339
        %v3341 = vrcp.pop %v2895
        %v3342 = vmul.f32 %v3186, %v3341
        %v3343 = vrcp.pop %v2898
        %v3344 = vmul.f32 %v3191, %v3343
        %v3345 = vrcp.pop %v2901
        %v3346 = vmul.f32 %v3196, %v3345
        %v3347 = vrcp.pop %v2904
        %v3348 = vmul.f32 %v3201, %v3347
        %v3349 = vrcp.pop %v2907
        %v3350 = vmul.f32 %v3206, %v3349
        %v3351 = vrcp.pop %v2910
        %v3352 = vmul.f32 %v3211, %v3351
        %v3353 = vrcp.pop %v2913
        %v3354 = vmul.f32 %v3216, %v3353
        %v3355 = vrcp.pop %v2916
        %v3356 = vmul.f32 %v3221, %v3355
        %v3357 = vrcp.pop %v2919
        %v3358 = vmul.f32 %v3226, %v3357
        %v3359 = vrcp.pop %v2922
        %v3360 = vmul.f32 %v3231, %v3359
        %v3361 = vrcp.pop %v2925
        %v3362 = vmul.f32 %v3236, %v3361
        %v3363 = vrcp.pop %v2928
        %v3364 = vmul.f32 %v3241, %v3363
        %v3365 = vrcp.pop %v2931
        %v3366 = vmul.f32 %v3246, %v3365
        %v3367 = vrcp.pop %v2934
        %v3368 = vmul.f32 %v3251, %v3367
        %v3369 = vrcp.pop %v2937
        %v3370 = vmul.f32 %v3256, %v3369
        %v3371 = vrcp.pop %v2940
        %v3372 = vmul.f32 %v3261, %v3371
        %v3373 = vrcp.pop %v2943
        %v3374 = vmul.f32 %v3266, %v3373
        %v3375 = vrcp.pop %v2946
        %v3376 = vmul.f32 %v3271, %v3375
        %v3377 = vrcp.pop %v2949
        %v3378 = vmul.f32 %v3276, %v3377
        %v3379 = vrcp.pop %v2952
        %v3380 = vmul.f32 %v3281, %v3379
        %v3381 = vrcp.pop %v2955
        %v3382 = vmul.f32 %v3286, %v3381
        %v3383 = vrcp.pop %v2958
        %v3384 = vmul.f32 %v3291, %v3383
        %v3385 = vrcp.pop %v2961
        %v3386 = vmul.f32 %v3296, %v3385
        %v3387 = vrcp.pop %v2964
        %v3388 = vmul.f32 %v3301, %v3387
        %v3389 = vrcp.pop %v2967
        %v3390 = vmul.f32 %v3306, %v3389
        %v3391 = vrcp.pop %v2970
        %v3392 = vmul.f32 %v3311, %v3391
        %v3393 = vrcp.pop %v2973
        %v3394 = vmul.f32 %v3316, %v3393
        %v3395 = vrcp.pop %v2976
        %v3396 = vmul.f32 %v3321, %v3395
        %v3397 = vrcp.pop %v2979
        %v3398 = vmul.f32 %v3326, %v3397
        %v3399 = vrcp.pop %v2982
        %v3400 = vmul.f32 %v3331, %v3399
        %v3401 = vrcp.pop %v2985
        %v3402 = vmul.f32 %v3336, %v3401
        %3435 = vrot.lane.b32.xlu0 %v3340, 8
        %v3436 = vpop.permute.xlu0 %3435
        %3437 = vrot.lane.b32.xlu0 %v3342, 8
        %v3438 = vpop.permute.xlu0 %3437
        %3439 = vrot.lane.b32.xlu0 %v3344, 8
        %v3440 = vpop.permute.xlu0 %3439
        %3441 = vrot.lane.b32.xlu0 %v3346, 8
        %v3442 = vpop.permute.xlu0 %3441
        %3443 = vrot.lane.b32.xlu0 %v3348, 8
        %v3444 = vpop.permute.xlu0 %3443
        %3445 = vrot.lane.b32.xlu0 %v3350, 8
        %v3446 = vpop.permute.xlu0 %3445
        %3447 = vrot.lane.b32.xlu0 %v3352, 8
        %v3448 = vpop.permute.xlu0 %3447
        %3449 = vrot.lane.b32.xlu0 %v3354, 8
        %v3450 = vpop.permute.xlu0 %3449
        %3451 = vrot.lane.b32.xlu0 %v3356, 8
        %v3452 = vpop.permute.xlu0 %3451
        %3453 = vrot.lane.b32.xlu0 %v3358, 8
        %v3454 = vpop.permute.xlu0 %3453
        %3455 = vrot.lane.b32.xlu0 %v3360, 8
        %v3456 = vpop.permute.xlu0 %3455
        %3457 = vrot.lane.b32.xlu0 %v3362, 8
        %v3458 = vpop.permute.xlu0 %3457
        %3459 = vrot.lane.b32.xlu0 %v3364, 8
        %v3460 = vpop.permute.xlu0 %3459
        %3461 = vrot.lane.b32.xlu0 %v3366, 8
        %v3462 = vpop.permute.xlu0 %3461
        %3463 = vrot.lane.b32.xlu0 %v3368, 8
        %v3464 = vpop.permute.xlu0 %3463
        %3465 = vrot.lane.b32.xlu0 %v3370, 8
        %v3466 = vpop.permute.xlu0 %3465
        %3467 = vrot.lane.b32.xlu0 %v3372, 8
        %v3468 = vpop.permute.xlu0 %3467
        %3469 = vrot.lane.b32.xlu0 %v3374, 8
        %v3470 = vpop.permute.xlu0 %3469
        %3471 = vrot.lane.b32.xlu0 %v3376, 8
        %v3472 = vpop.permute.xlu0 %3471
        %3473 = vrot.lane.b32.xlu0 %v3378, 8
        %v3474 = vpop.permute.xlu0 %3473
        %3475 = vrot.lane.b32.xlu0 %v3380, 8
        %v3476 = vpop.permute.xlu0 %3475
        %3477 = vrot.lane.b32.xlu0 %v3382, 8
        %v3478 = vpop.permute.xlu0 %3477
        %3479 = vrot.lane.b32.xlu0 %v3384, 8
        %v3480 = vpop.permute.xlu0 %3479
        %3481 = vrot.lane.b32.xlu0 %v3386, 8
        %v3482 = vpop.permute.xlu0 %3481
        %3483 = vrot.lane.b32.xlu0 %v3388, 8
        %v3484 = vpop.permute.xlu0 %3483
        %3485 = vrot.lane.b32.xlu0 %v3390, 8
        %v3486 = vpop.permute.xlu0 %3485
        %3487 = vrot.lane.b32.xlu0 %v3392, 8
        %v3488 = vpop.permute.xlu0 %3487
        %3489 = vrot.lane.b32.xlu0 %v3394, 8
        %v3490 = vpop.permute.xlu0 %3489
        %3491 = vrot.lane.b32.xlu0 %v3396, 8
        %v3492 = vpop.permute.xlu0 %3491
        %3493 = vrot.lane.b32.xlu0 %v3398, 8
        %v3494 = vpop.permute.xlu0 %3493
        %3495 = vrot.lane.b32.xlu0 %v3400, 8
        %v3496 = vpop.permute.xlu0 %3495
        %3497 = vrot.lane.b32.xlu0 %v3402, 8
        %v3498 = vpop.permute.xlu0 %3497
        %v3531 = vsel %vm998, %v2026, %v3436
        %v3532 = vsel %vm998, %v2028, %v3438
        %v3533 = vsel %vm998, %v2030, %v3440
        %v3534 = vsel %vm998, %v2032, %v3442
        %v3535 = vsel %vm998, %v2034, %v3444
        %v3536 = vsel %vm998, %v2036, %v3446
        %v3537 = vsel %vm998, %v2038, %v3448
        %v3538 = vsel %vm998, %v2040, %v3450
        %v3539 = vsel %vm998, %v2042, %v3452
        %v3540 = vsel %vm998, %v2044, %v3454
        %v3541 = vsel %vm998, %v2046, %v3456
        %v3542 = vsel %vm998, %v2048, %v3458
        %v3543 = vsel %vm998, %v2050, %v3460
        %v3544 = vsel %vm998, %v2052, %v3462
        %v3545 = vsel %vm998, %v2054, %v3464
        %v3546 = vsel %vm998, %v2056, %v3466
        %v3547 = vsel %vm998, %v2058, %v3468
        %v3548 = vsel %vm998, %v2060, %v3470
        %v3549 = vsel %vm998, %v2062, %v3472
        %v3550 = vsel %vm998, %v2064, %v3474
        %v3551 = vsel %vm998, %v2066, %v3476
        %v3552 = vsel %vm998, %v2068, %v3478
        %v3553 = vsel %vm998, %v2070, %v3480
        %v3554 = vsel %vm998, %v2072, %v3482
        %v3555 = vsel %vm998, %v2074, %v3484
        %v3556 = vsel %vm998, %v2076, %v3486
        %v3557 = vsel %vm998, %v2078, %v3488
        %v3558 = vsel %vm998, %v2080, %v3490
        %v3559 = vsel %vm998, %v2082, %v3492
        %v3560 = vsel %vm998, %v2084, %v3494
        %v3561 = vsel %vm998, %v2086, %v3496
        %v3562 = vsel %vm998, %v2088, %v3498
        %v3563 = vadd.f32 %v3531, %v615
        %v3564 = vadd.f32 %v3532, %v617
        %v3565 = vadd.f32 %v3533, %v619
        %v3566 = vadd.f32 %v3534, %v621
        %v3567 = vadd.f32 %v3535, %v623
        %v3568 = vadd.f32 %v3536, %v625
        %v3569 = vadd.f32 %v3537, %v627
        %v3570 = vadd.f32 %v3538, %v629
        %v3571 = vadd.f32 %v3539, %v631
        %v3572 = vadd.f32 %v3540, %v633
        %v3573 = vadd.f32 %v3541, %v635
        %v3574 = vadd.f32 %v3542, %v637
        %v3575 = vadd.f32 %v3543, %v639
        %v3576 = vadd.f32 %v3544, %v641
        %v3577 = vadd.f32 %v3545, %v643
        %v3578 = vadd.f32 %v3546, %v645
        %v3579 = vadd.f32 %v3547, %v647
        %v3580 = vadd.f32 %v3548, %v649
        %v3581 = vadd.f32 %v3549, %v651
        %v3582 = vadd.f32 %v3550, %v653
        %v3583 = vadd.f32 %v3551, %v655
        %v3584 = vadd.f32 %v3552, %v657
        %v3585 = vadd.f32 %v3553, %v659
        %v3586 = vadd.f32 %v3554, %v661
        %v3587 = vadd.f32 %v3555, %v663
        %v3588 = vadd.f32 %v3556, %v665
        %v3589 = vadd.f32 %v3557, %v667
        %v3590 = vadd.f32 %v3558, %v669
        %v3591 = vadd.f32 %v3559, %v671
        %v3592 = vadd.f32 %v3560, %v673
        %v3593 = vadd.f32 %v3561, %v675
        %v3594 = vadd.f32 %v3562, %v677
        %vm3595 = vcmask 130048
        %3596 = vst.msk [vmem:[%s514] sm:$0xff] %vm3595, %v3563
        %3597 = vst.msk [vmem:[%s514 + $0x8] sm:$0xff] %vm3595, %v3564
        %3598 = vst.msk [vmem:[%s514 + $0x10] sm:$0xff] %vm3595, %v3565
        %3599 = vst.msk [vmem:[%s514 + $0x18] sm:$0xff] %vm3595, %v3566
        %3600 = vst.msk [vmem:[%s514 + $0x20] sm:$0xff] %vm3595, %v3567
        %3601 = vst.msk [vmem:[%s514 + $0x28] sm:$0xff] %vm3595, %v3568
        %3602 = vst.msk [vmem:[%s514 + $0x30] sm:$0xff] %vm3595, %v3569
        %3603 = vst.msk [vmem:[%s514 + $0x38] sm:$0xff] %vm3595, %v3570
        %3604 = vst.msk [vmem:[%s514 + $0x40] sm:$0xff] %vm3595, %v3571
        %3605 = vst.msk [vmem:[%s514 + $0x48] sm:$0xff] %vm3595, %v3572
        %3606 = vst.msk [vmem:[%s514 + $0x50] sm:$0xff] %vm3595, %v3573
        %3607 = vst.msk [vmem:[%s514 + $0x58] sm:$0xff] %vm3595, %v3574
        %3608 = vst.msk [vmem:[%s514 + $0x60] sm:$0xff] %vm3595, %v3575
        %3609 = vst.msk [vmem:[%s514 + $0x68] sm:$0xff] %vm3595, %v3576
        %3610 = vst.msk [vmem:[%s514 + $0x70] sm:$0xff] %vm3595, %v3577
        %3611 = vst.msk [vmem:[%s514 + $0x78] sm:$0xff] %vm3595, %v3578
        %3612 = vst.msk [vmem:[%s514 + $0x80] sm:$0xff] %vm3595, %v3579
        %3613 = vst.msk [vmem:[%s514 + $0x88] sm:$0xff] %vm3595, %v3580
        %3614 = vst.msk [vmem:[%s514 + $0x90] sm:$0xff] %vm3595, %v3581
        %3615 = vst.msk [vmem:[%s514 + $0x98] sm:$0xff] %vm3595, %v3582
        %3616 = vst.msk [vmem:[%s514 + $0xa0] sm:$0xff] %vm3595, %v3583
        %3617 = vst.msk [vmem:[%s514 + $0xa8] sm:$0xff] %vm3595, %v3584
        %3618 = vst.msk [vmem:[%s514 + $0xb0] sm:$0xff] %vm3595, %v3585
        %3619 = vst.msk [vmem:[%s514 + $0xb8] sm:$0xff] %vm3595, %v3586
        %3620 = vst.msk [vmem:[%s514 + $0xc0] sm:$0xff] %vm3595, %v3587
        %3621 = vst.msk [vmem:[%s514 + $0xc8] sm:$0xff] %vm3595, %v3588
        %3622 = vst.msk [vmem:[%s514 + $0xd0] sm:$0xff] %vm3595, %v3589
        %3623 = vst.msk [vmem:[%s514 + $0xd8] sm:$0xff] %vm3595, %v3590
        %3624 = vst.msk [vmem:[%s514 + $0xe0] sm:$0xff] %vm3595, %v3591
        %3625 = vst.msk [vmem:[%s514 + $0xe8] sm:$0xff] %vm3595, %v3592
        %3626 = vst.msk [vmem:[%s514 + $0xf0] sm:$0xff] %vm3595, %v3593
        %3627 = vst.msk [vmem:[%s514 + $0xf8] sm:$0xff] %vm3595, %v3594
        %s3628 = sand.u32 %s104, 1
        %s3629 = sand.u32 %s104, 1
        %s3630 = smul.addr %s3629, 256
        %s3631 = scalar_lea.vmem [#allocation4], %s3630
        // Predicated region
        $region105: #{lepe_attention_forward.3} parent=95 // pred_check
          %p3632 = pneg %p114
        $region106: #{lepe_attention_forward.3} parent=95 // pred_check_branch
          %3634 = sbr.rel (%p3632) target = $region108
        $region107: #{lepe_attention_forward.3} parent=95 // pred_region
          %s3635 = smul.u32 32, %s19
          %s3636 = smul.addr %s3635, 2
          %s3637 = sadd.s32 %s20, %s3636
          %s3638 = smul.addr %s18, 64
          %s3639 = sadd.s32 %s3637, %s3638
          %s3640 = smul.addr %s3639, 8
          %s3641 = scalar_lea.vmem %s2, %s3640
          // Predicated region
          $region109: #{lepe_attention_forward.3} parent=107 // pred_check
            _
          $region110: #{lepe_attention_forward.3} parent=107 // pred_check_branch
            %3643 = sbr.rel (0) target = $region112
          $region111: #{lepe_attention_forward.3} parent=107 // pred_region
            // Predicated region
            $region113: #{lepe_attention_forward.3} parent=111 // pred_check
              _
            $region114: #{lepe_attention_forward.3} parent=111 // pred_check_branch
              %3645 = sbr.rel (0) target = $region116
            $region115: #{lepe_attention_forward.3} parent=111 // pred_region
              // Predicated region
              $region128: #{lepe_attention_forward.3} parent=115 // pred_check
                _
              $region129: #{lepe_attention_forward.3} parent=115 // pred_check_branch
                %3722 = sbr.rel (0) target = $region131
              $region130: #{lepe_attention_forward.3} parent=115 // pred_region
                loop: start=0, step=1, limit=1
                $region132: #{lepe_attention_forward.3} parent=130 // loop_pre_header
                  _
                $region133: #{lepe_attention_forward.3} parent=130 // loop_header
                  %s3724 = sphi 0, %s3728
                  %p3725 = scmp.ge.s32.totalorder %s3724, 1
                  %s3729 = sphi %s3631, %s3631
                  %s3730 = sphi %s3641, %s3641
                $region134: #{lepe_attention_forward.3} parent=130 // loop_header_branch
                  %3727 = sbr.rel (%p3725) target = $region138
                $region135: #{lepe_attention_forward.3} parent=130 // loop_body
                  %v3731 = vld [vmem:[%s3729] sm:$0xff]
                  %3732 = vst [vmem:[%s3730] sm:$0xff] %v3731
                  %v3733 = vld [vmem:[%s3729 + $0x8] sm:$0xff]
                  %3734 = vst [vmem:[%s3730 + $0x10] sm:$0xff] %v3733
                  %v3735 = vld [vmem:[%s3729 + $0x10] sm:$0xff]
                  %3736 = vst [vmem:[%s3730 + $0x20] sm:$0xff] %v3735
                  %v3737 = vld [vmem:[%s3729 + $0x18] sm:$0xff]
                  %3738 = vst [vmem:[%s3730 + $0x30] sm:$0xff] %v3737
                  %v3739 = vld [vmem:[%s3729 + $0x20] sm:$0xff]
                  %3740 = vst [vmem:[%s3730 + $0x40] sm:$0xff] %v3739
                  %v3741 = vld [vmem:[%s3729 + $0x28] sm:$0xff]
                  %3742 = vst [vmem:[%s3730 + $0x50] sm:$0xff] %v3741
                  %v3743 = vld [vmem:[%s3729 + $0x30] sm:$0xff]
                  %3744 = vst [vmem:[%s3730 + $0x60] sm:$0xff] %v3743
                  %v3745 = vld [vmem:[%s3729 + $0x38] sm:$0xff]
                  %3746 = vst [vmem:[%s3730 + $0x70] sm:$0xff] %v3745
                  %v3747 = vld [vmem:[%s3729 + $0x40] sm:$0xff]
                  %3748 = vst [vmem:[%s3730 + $0x80] sm:$0xff] %v3747
                  %v3749 = vld [vmem:[%s3729 + $0x48] sm:$0xff]
                  %3750 = vst [vmem:[%s3730 + $0x90] sm:$0xff] %v3749
                  %v3751 = vld [vmem:[%s3729 + $0x50] sm:$0xff]
                  %3752 = vst [vmem:[%s3730 + $0xa0] sm:$0xff] %v3751
                  %v3753 = vld [vmem:[%s3729 + $0x58] sm:$0xff]
                  %3754 = vst [vmem:[%s3730 + $0xb0] sm:$0xff] %v3753
                  %v3755 = vld [vmem:[%s3729 + $0x60] sm:$0xff]
                  %3756 = vst [vmem:[%s3730 + $0xc0] sm:$0xff] %v3755
                  %v3757 = vld [vmem:[%s3729 + $0x68] sm:$0xff]
                  %3758 = vst [vmem:[%s3730 + $0xd0] sm:$0xff] %v3757
                  %v3759 = vld [vmem:[%s3729 + $0x70] sm:$0xff]
                  %3760 = vst [vmem:[%s3730 + $0xe0] sm:$0xff] %v3759
                  %v3761 = vld [vmem:[%s3729 + $0x78] sm:$0xff]
                  %3762 = vst [vmem:[%s3730 + $0xf0] sm:$0xff] %v3761
                  %v3763 = vld [vmem:[%s3729 + $0x80] sm:$0xff]
                  %3764 = vst [vmem:[%s3730 + $0x100] sm:$0xff] %v3763
                  %v3765 = vld [vmem:[%s3729 + $0x88] sm:$0xff]
                  %3766 = vst [vmem:[%s3730 + $0x110] sm:$0xff] %v3765
                  %v3767 = vld [vmem:[%s3729 + $0x90] sm:$0xff]
                  %3768 = vst [vmem:[%s3730 + $0x120] sm:$0xff] %v3767
                  %v3769 = vld [vmem:[%s3729 + $0x98] sm:$0xff]
                  %3770 = vst [vmem:[%s3730 + $0x130] sm:$0xff] %v3769
                  %v3771 = vld [vmem:[%s3729 + $0xa0] sm:$0xff]
                  %3772 = vst [vmem:[%s3730 + $0x140] sm:$0xff] %v3771
                  %v3773 = vld [vmem:[%s3729 + $0xa8] sm:$0xff]
                  %3774 = vst [vmem:[%s3730 + $0x150] sm:$0xff] %v3773
                  %v3775 = vld [vmem:[%s3729 + $0xb0] sm:$0xff]
                  %3776 = vst [vmem:[%s3730 + $0x160] sm:$0xff] %v3775
                  %v3777 = vld [vmem:[%s3729 + $0xb8] sm:$0xff]
                  %3778 = vst [vmem:[%s3730 + $0x170] sm:$0xff] %v3777
                  %v3779 = vld [vmem:[%s3729 + $0xc0] sm:$0xff]
                  %3780 = vst [vmem:[%s3730 + $0x180] sm:$0xff] %v3779
                  %v3781 = vld [vmem:[%s3729 + $0xc8] sm:$0xff]
                  %3782 = vst [vmem:[%s3730 + $0x190] sm:$0xff] %v3781
                  %v3783 = vld [vmem:[%s3729 + $0xd0] sm:$0xff]
                  %3784 = vst [vmem:[%s3730 + $0x1a0] sm:$0xff] %v3783
                  %v3785 = vld [vmem:[%s3729 + $0xd8] sm:$0xff]
                  %3786 = vst [vmem:[%s3730 + $0x1b0] sm:$0xff] %v3785
                  %v3787 = vld [vmem:[%s3729 + $0xe0] sm:$0xff]
                  %3788 = vst [vmem:[%s3730 + $0x1c0] sm:$0xff] %v3787
                  %v3789 = vld [vmem:[%s3729 + $0xe8] sm:$0xff]
                  %3790 = vst [vmem:[%s3730 + $0x1d0] sm:$0xff] %v3789
                  %v3791 = vld [vmem:[%s3729 + $0xf0] sm:$0xff]
                  %3792 = vst [vmem:[%s3730 + $0x1e0] sm:$0xff] %v3791
                  %v3793 = vld [vmem:[%s3729 + $0xf8] sm:$0xff]
                  %3794 = vst [vmem:[%s3730 + $0x1f0] sm:$0xff] %v3793
                $region136: #{lepe_attention_forward.3} parent=130 // loop_footer
                  %s3728 = sadd.s32 1, %s3724
                $region137: #{lepe_attention_forward.3} parent=130 // loop_footer_branch
                  %3723 = sbr.rel target = $region133
                $region138: #{lepe_attention_forward.3} parent=130 // loop_exit
                  _
              $region131: #{lepe_attention_forward.3} parent=115 // pred_fallthru
                _
              // Predicated region
              $region139: #{lepe_attention_forward.3} parent=115 // pred_check
                _
              $region140: #{lepe_attention_forward.3} parent=115 // pred_check_branch
                %3796 = sbr.rel target = $region142
              $region141: #{lepe_attention_forward.3} parent=115 // pred_region
                _
              $region142: #{lepe_attention_forward.3} parent=115 // pred_fallthru
                _
            $region116: #{lepe_attention_forward.3} parent=111 // pred_fallthru
              _
            // Predicated region
            $region117: #{lepe_attention_forward.3} parent=111 // pred_check
              _
            $region118: #{lepe_attention_forward.3} parent=111 // pred_check_branch
              %3647 = sbr.rel target = $region120
            $region119: #{lepe_attention_forward.3} parent=111 // pred_region
              loop: start=0, step=1, limit=1
              $region121: #{lepe_attention_forward.3} parent=119 // loop_pre_header
                _
              $region122: #{lepe_attention_forward.3} parent=119 // loop_header
                %s3650 = sphi 0, %s3654
                %p3651 = scmp.ge.s32.totalorder %s3650, 1
                %s3655 = sphi %s3631, %s3631
                %s3656 = sphi %s3641, %s3641
              $region123: #{lepe_attention_forward.3} parent=119 // loop_header_branch
                %3653 = sbr.rel (%p3651) target = $region127
              $region124: #{lepe_attention_forward.3} parent=119 // loop_body
                %v3657 = vld [vmem:[%s3655] sm:$0xff]
                %3658 = vst [vmem:[%s3656] sm:$0xff] %v3657
                %v3659 = vld [vmem:[%s3655 + $0x8] sm:$0xff]
                %3660 = vst [vmem:[%s3656 + $0x10] sm:$0xff] %v3659
                %v3661 = vld [vmem:[%s3655 + $0x10] sm:$0xff]
                %3662 = vst [vmem:[%s3656 + $0x20] sm:$0xff] %v3661
                %v3663 = vld [vmem:[%s3655 + $0x18] sm:$0xff]
                %3664 = vst [vmem:[%s3656 + $0x30] sm:$0xff] %v3663
                %v3665 = vld [vmem:[%s3655 + $0x20] sm:$0xff]
                %3666 = vst [vmem:[%s3656 + $0x40] sm:$0xff] %v3665
                %v3667 = vld [vmem:[%s3655 + $0x28] sm:$0xff]
                %3668 = vst [vmem:[%s3656 + $0x50] sm:$0xff] %v3667
                %v3669 = vld [vmem:[%s3655 + $0x30] sm:$0xff]
                %3670 = vst [vmem:[%s3656 + $0x60] sm:$0xff] %v3669
                %v3671 = vld [vmem:[%s3655 + $0x38] sm:$0xff]
                %3672 = vst [vmem:[%s3656 + $0x70] sm:$0xff] %v3671
                %v3673 = vld [vmem:[%s3655 + $0x40] sm:$0xff]
                %3674 = vst [vmem:[%s3656 + $0x80] sm:$0xff] %v3673
                %v3675 = vld [vmem:[%s3655 + $0x48] sm:$0xff]
                %3676 = vst [vmem:[%s3656 + $0x90] sm:$0xff] %v3675
                %v3677 = vld [vmem:[%s3655 + $0x50] sm:$0xff]
                %3678 = vst [vmem:[%s3656 + $0xa0] sm:$0xff] %v3677
                %v3679 = vld [vmem:[%s3655 + $0x58] sm:$0xff]
                %3680 = vst [vmem:[%s3656 + $0xb0] sm:$0xff] %v3679
                %v3681 = vld [vmem:[%s3655 + $0x60] sm:$0xff]
                %3682 = vst [vmem:[%s3656 + $0xc0] sm:$0xff] %v3681
                %v3683 = vld [vmem:[%s3655 + $0x68] sm:$0xff]
                %3684 = vst [vmem:[%s3656 + $0xd0] sm:$0xff] %v3683
                %v3685 = vld [vmem:[%s3655 + $0x70] sm:$0xff]
                %3686 = vst [vmem:[%s3656 + $0xe0] sm:$0xff] %v3685
                %v3687 = vld [vmem:[%s3655 + $0x78] sm:$0xff]
                %3688 = vst [vmem:[%s3656 + $0xf0] sm:$0xff] %v3687
                %v3689 = vld [vmem:[%s3655 + $0x80] sm:$0xff]
                %3690 = vst [vmem:[%s3656 + $0x100] sm:$0xff] %v3689
                %v3691 = vld [vmem:[%s3655 + $0x88] sm:$0xff]
                %3692 = vst [vmem:[%s3656 + $0x110] sm:$0xff] %v3691
                %v3693 = vld [vmem:[%s3655 + $0x90] sm:$0xff]
                %3694 = vst [vmem:[%s3656 + $0x120] sm:$0xff] %v3693
                %v3695 = vld [vmem:[%s3655 + $0x98] sm:$0xff]
                %3696 = vst [vmem:[%s3656 + $0x130] sm:$0xff] %v3695
                %v3697 = vld [vmem:[%s3655 + $0xa0] sm:$0xff]
                %3698 = vst [vmem:[%s3656 + $0x140] sm:$0xff] %v3697
                %v3699 = vld [vmem:[%s3655 + $0xa8] sm:$0xff]
                %3700 = vst [vmem:[%s3656 + $0x150] sm:$0xff] %v3699
                %v3701 = vld [vmem:[%s3655 + $0xb0] sm:$0xff]
                %3702 = vst [vmem:[%s3656 + $0x160] sm:$0xff] %v3701
                %v3703 = vld [vmem:[%s3655 + $0xb8] sm:$0xff]
                %3704 = vst [vmem:[%s3656 + $0x170] sm:$0xff] %v3703
                %v3705 = vld [vmem:[%s3655 + $0xc0] sm:$0xff]
                %3706 = vst [vmem:[%s3656 + $0x180] sm:$0xff] %v3705
                %v3707 = vld [vmem:[%s3655 + $0xc8] sm:$0xff]
                %3708 = vst [vmem:[%s3656 + $0x190] sm:$0xff] %v3707
                %v3709 = vld [vmem:[%s3655 + $0xd0] sm:$0xff]
                %3710 = vst [vmem:[%s3656 + $0x1a0] sm:$0xff] %v3709
                %v3711 = vld [vmem:[%s3655 + $0xd8] sm:$0xff]
                %3712 = vst [vmem:[%s3656 + $0x1b0] sm:$0xff] %v3711
                %v3713 = vld [vmem:[%s3655 + $0xe0] sm:$0xff]
                %3714 = vst [vmem:[%s3656 + $0x1c0] sm:$0xff] %v3713
                %v3715 = vld [vmem:[%s3655 + $0xe8] sm:$0xff]
                %3716 = vst [vmem:[%s3656 + $0x1d0] sm:$0xff] %v3715
                %v3717 = vld [vmem:[%s3655 + $0xf0] sm:$0xff]
                %3718 = vst [vmem:[%s3656 + $0x1e0] sm:$0xff] %v3717
                %v3719 = vld [vmem:[%s3655 + $0xf8] sm:$0xff]
                %3720 = vst [vmem:[%s3656 + $0x1f0] sm:$0xff] %v3719
              $region125: #{lepe_attention_forward.3} parent=119 // loop_footer
                %s3654 = sadd.s32 1, %s3650
              $region126: #{lepe_attention_forward.3} parent=119 // loop_footer_branch
                %3649 = sbr.rel target = $region122
              $region127: #{lepe_attention_forward.3} parent=119 // loop_exit
                _
            $region120: #{lepe_attention_forward.3} parent=111 // pred_fallthru
              _
          $region112: #{lepe_attention_forward.3} parent=107 // pred_fallthru
            _
          %3797 = vnop
        $region108: #{lepe_attention_forward.3} parent=95 // pred_fallthru
          _
      $region96: #{lepe_attention_forward.3} parent=5 // pred_fallthru
        _
      %p3798 = scmp.le.s32.totalorder 2, %s8
      // Predicated region
      $region143: #{lepe_attention_forward.3} parent=5 // pred_check
        %p3799 = pneg %p3798
      $region144: #{lepe_attention_forward.3} parent=5 // pred_check_branch
        %3801 = sbr.rel (%p3799) target = $region146
      $region145: #{lepe_attention_forward.3} parent=5 // pred_region
        %s3802 = ssub.s32 %s8, 2
        // Predicated region
        $region147: #{lepe_attention_forward.3} parent=145 // pred_check
          %p3803 = pneg %p120
        $region148: #{lepe_attention_forward.3} parent=145 // pred_check_branch
          %3805 = sbr.rel (%p3803) target = $region150
        $region149: #{lepe_attention_forward.3} parent=145 // pred_region
          %s3806 = sand.u32 %s105, 1
          %s3807 = sand.u32 %s105, 1
          %s3808 = smul.addr %s3807, 256
          %s3809 = scalar_lea.vmem [#allocation4], %s3808
        $region150: #{lepe_attention_forward.3} parent=145 // pred_fallthru
          _
      $region146: #{lepe_attention_forward.3} parent=5 // pred_fallthru
        _
    $region6: #{lepe_attention_forward.3} parent=1 // loop_footer
      %s12 = sadd.s32 1, %s8
    $region7: #{lepe_attention_forward.3} parent=1 // loop_footer_branch
      %7 = sbr.rel target = $region3
    $region8: #{lepe_attention_forward.3} parent=1 // loop_exit
      _

</llo_original>
